<compile_context>
chip_gen: v7x
topology: tpu7x:2x2x1
jax: 0.10.0
libtpu: 0.0.40
codegen_flags: <defaults>
</compile_context>

<pallas_src>
import functools

import jax
import jax.numpy as jnp
from jax.experimental import pallas as pl
from jax.experimental.pallas import tpu as pltpu


_TILE_M = 512  # rows per grid step for the row-tiled kernels

PARALLEL = pltpu.CompilerParams(dimension_semantics=("parallel",))
PARALLEL_FFN = pltpu.CompilerParams(dimension_semantics=("parallel",),
                                    vmem_limit_bytes=32 * 1024 * 1024)


def _row_plan(M):
    """(tile_m, grid_m) for a row-tiled 1-D grid; ragged last block is fine."""
    tile = min(M, _TILE_M)
    return tile, pl.cdiv(M, tile)


def _bf16(w):
    return w.astype(jnp.bfloat16)


def _layernorm(x, g, b, eps):
    mean = jnp.mean(x, axis=-1, keepdims=True)
    var = jnp.mean(jnp.square(x - mean), axis=-1, keepdims=True)
    return (x - mean) * jax.lax.rsqrt(var + eps) * g + b


# ----------------------------------------------------------------------------
# Pallas kernels
# ----------------------------------------------------------------------------
def _linear_kernel(x_ref, w_ref, b_ref, o_ref):
    x = x_ref[...].astype(jnp.bfloat16)
    y = jnp.dot(x, w_ref[...], preferred_element_type=jnp.float32) + b_ref[...]
    o_ref[...] = y.astype(o_ref.dtype)


def pallas_linear(x, w, b, out_dtype=jnp.float32):
    """out = x @ w + b.  Weights pre-cast (bf16) and bias pre-shaped (1,N)."""
    M, K = x.shape
    N = w.shape[1]
    tile, grid = _row_plan(M)
    return pl.pallas_call(
        _linear_kernel,
        out_shape=jax.ShapeDtypeStruct((M, N), out_dtype),
        grid=(grid,),
        in_specs=[
            pl.BlockSpec((tile, K), lambda i: (i, 0)),
            pl.BlockSpec((K, N), lambda i: (0, 0)),
            pl.BlockSpec((1, N), lambda i: (0, 0)),
        ],
        out_specs=pl.BlockSpec((tile, N), lambda i: (i, 0)),
        compiler_params=PARALLEL,
    )(x, w, b)


def _linear_res_kernel(x_ref, w_ref, b_ref, r_ref, o_ref):
    x = x_ref[...].astype(jnp.bfloat16)
    y = jnp.dot(x, w_ref[...], preferred_element_type=jnp.float32) + b_ref[...]
    o_ref[...] = y + r_ref[...]


def pallas_linear_residual(x, w, b, residual):
    """out = residual + x @ w + b   (attention out-proj + residual add)."""
    M, K = x.shape
    N = w.shape[1]
    tile, grid = _row_plan(M)
    return pl.pallas_call(
        _linear_res_kernel,
        out_shape=jax.ShapeDtypeStruct((M, N), jnp.float32),
        grid=(grid,),
        in_specs=[
            pl.BlockSpec((tile, K), lambda i: (i, 0)),
            pl.BlockSpec((K, N), lambda i: (0, 0)),
            pl.BlockSpec((1, N), lambda i: (0, 0)),
            pl.BlockSpec((tile, N), lambda i: (i, 0)),
        ],
        out_specs=pl.BlockSpec((tile, N), lambda i: (i, 0)),
        compiler_params=PARALLEL,
    )(x, w, b, residual)


def _linear_res_ln_kernel(x_ref, w_ref, b_ref, r_ref, g_ref, bln_ref, o_ref, *, eps):
    x = x_ref[...].astype(jnp.bfloat16)
    y = jnp.dot(x, w_ref[...], preferred_element_type=jnp.float32) + b_ref[...]
    y = y + r_ref[...]
    o_ref[...] = _layernorm(y, g_ref[...], bln_ref[...], eps)


def pallas_linear_res_ln(x, w, b, residual, gamma, beta, eps):
    """out = LN(residual + x @ w + b)   (decoder add&norm fused)."""
    M, K = x.shape
    N = w.shape[1]
    tile, grid = _row_plan(M)
    return pl.pallas_call(
        functools.partial(_linear_res_ln_kernel, eps=eps),
        out_shape=jax.ShapeDtypeStruct((M, N), jnp.float32),
        grid=(grid,),
        in_specs=[
            pl.BlockSpec((tile, K), lambda i: (i, 0)),
            pl.BlockSpec((K, N), lambda i: (0, 0)),
            pl.BlockSpec((1, N), lambda i: (0, 0)),
            pl.BlockSpec((tile, N), lambda i: (i, 0)),
            pl.BlockSpec((1, N), lambda i: (0, 0)),
            pl.BlockSpec((1, N), lambda i: (0, 0)),
        ],
        out_specs=pl.BlockSpec((tile, N), lambda i: (i, 0)),
        compiler_params=PARALLEL,
    )(x, w, b, residual, gamma, beta)


def _ln_kernel(x_ref, g_ref, b_ref, o_ref, *, eps):
    o_ref[...] = _layernorm(x_ref[...].astype(jnp.float32), g_ref[...], b_ref[...], eps)


def pallas_layernorm(x2d, gamma, beta, eps):
    M, H = x2d.shape
    tile, grid = _row_plan(M)
    return pl.pallas_call(
        functools.partial(_ln_kernel, eps=eps),
        out_shape=jax.ShapeDtypeStruct((M, H), jnp.float32),
        grid=(grid,),
        in_specs=[
            pl.BlockSpec((tile, H), lambda i: (i, 0)),
            pl.BlockSpec((1, H), lambda i: (0, 0)),
            pl.BlockSpec((1, H), lambda i: (0, 0)),
        ],
        out_specs=pl.BlockSpec((tile, H), lambda i: (i, 0)),
        compiler_params=PARALLEL,
    )(x2d, gamma, beta)


def _ln_qkv_kernel(x_ref, g_ref, bln_ref, wq_ref, bq_ref, wkv_ref, bkv_ref,
                   qln_ref, q_ref, kv_ref, *, eps):
    """SASRec block pre-stage: xn = LN(x); q = xn Wq; kv = x Wkv."""
    x = x_ref[...].astype(jnp.float32)
    xn = _layernorm(x, g_ref[...], bln_ref[...], eps)
    qln_ref[...] = xn
    q = jnp.dot(xn.astype(jnp.bfloat16), wq_ref[...],
                preferred_element_type=jnp.float32) + bq_ref[...]
    q_ref[...] = q.astype(q_ref.dtype)
    kv = jnp.dot(x.astype(jnp.bfloat16), wkv_ref[...],
                 preferred_element_type=jnp.float32) + bkv_ref[...]
    kv_ref[...] = kv.astype(kv_ref.dtype)


def pallas_ln_qkv(x, blk, eps):
    M, H = x.shape
    N2 = blk["wkv"].shape[1]
    tile, grid = _row_plan(M)
    return pl.pallas_call(
        functools.partial(_ln_qkv_kernel, eps=eps),
        out_shape=(jax.ShapeDtypeStruct((M, H), jnp.float32),     # LN(x) residual
                   jax.ShapeDtypeStruct((M, H), jnp.bfloat16),    # q  (matmul feed)
                   jax.ShapeDtypeStruct((M, N2), jnp.bfloat16)),  # kv (matmul feed)
        grid=(grid,),
        in_specs=[
            pl.BlockSpec((tile, H), lambda i: (i, 0)),
            pl.BlockSpec((1, H), lambda i: (0, 0)),
            pl.BlockSpec((1, H), lambda i: (0, 0)),
            pl.BlockSpec((H, H), lambda i: (0, 0)),
            pl.BlockSpec((1, H), lambda i: (0, 0)),
            pl.BlockSpec((H, N2), lambda i: (0, 0)),
            pl.BlockSpec((1, N2), lambda i: (0, 0)),
        ],
        out_specs=(pl.BlockSpec((tile, H), lambda i: (i, 0)),
                   pl.BlockSpec((tile, H), lambda i: (i, 0)),
                   pl.BlockSpec((tile, N2), lambda i: (i, 0))),
        compiler_params=PARALLEL,
    )(x, blk["attn_ln_g"], blk["attn_ln_b"], blk["wq"], blk["bq"],
      blk["wkv"], blk["bkv"])


def _ln_ffn_kernel(x_ref, g_ref, bln_ref, w1_ref, b1_ref, w2_ref, b2_ref, o_ref, *, eps):
    """SASRec block: xn = LN(x); out = xn + W2 relu(W1 xn + b1) + b2."""
    x = x_ref[...].astype(jnp.float32)
    xn = _layernorm(x, g_ref[...], bln_ref[...], eps)
    h = jnp.dot(xn.astype(jnp.bfloat16), w1_ref[...],
                preferred_element_type=jnp.float32) + b1_ref[...]
    h = jnp.maximum(h, 0.0)
    y = jnp.dot(h.astype(jnp.bfloat16), w2_ref[...],
                preferred_element_type=jnp.float32) + b2_ref[...]
    o_ref[...] = y + xn


def pallas_ln_ffn(x, blk, eps):
    M, H = x.shape
    F = blk["w1"].shape[1]
    tile, grid = _row_plan(M)
    return pl.pallas_call(
        functools.partial(_ln_ffn_kernel, eps=eps),
        out_shape=jax.ShapeDtypeStruct((M, H), jnp.float32),
        grid=(grid,),
        in_specs=[
            pl.BlockSpec((tile, H), lambda i: (i, 0)),
            pl.BlockSpec((1, H), lambda i: (0, 0)),
            pl.BlockSpec((1, H), lambda i: (0, 0)),
            pl.BlockSpec((H, F), lambda i: (0, 0)),
            pl.BlockSpec((1, F), lambda i: (0, 0)),
            pl.BlockSpec((F, H), lambda i: (0, 0)),
            pl.BlockSpec((1, H), lambda i: (0, 0)),
        ],
        out_specs=pl.BlockSpec((tile, H), lambda i: (i, 0)),
        compiler_params=PARALLEL,
    )(x, blk["fwd_ln_g"], blk["fwd_ln_b"], blk["w1"], blk["b1"],
      blk["w2"], blk["b2"])


def _ffn_ln_kernel(x_ref, w1_ref, b1_ref, w2_ref, b2_ref, g_ref, bln_ref, o_ref, *, eps):
    """Decoder (post-norm): out = LN(x + W2 relu(W1 x + b1) + b2)."""
    x = x_ref[...].astype(jnp.float32)
    h = jnp.dot(x.astype(jnp.bfloat16), w1_ref[...],
                preferred_element_type=jnp.float32) + b1_ref[...]
    h = jnp.maximum(h, 0.0)
    y = jnp.dot(h.astype(jnp.bfloat16), w2_ref[...],
                preferred_element_type=jnp.float32) + b2_ref[...]
    o_ref[...] = _layernorm(y + x, g_ref[...], bln_ref[...], eps)


def pallas_ffn_ln(x, w1, b1, w2, b2, gamma, beta, eps):
    M, H = x.shape
    F = w1.shape[1]
    tile, grid = _row_plan(M)
    return pl.pallas_call(
        functools.partial(_ffn_ln_kernel, eps=eps),
        out_shape=jax.ShapeDtypeStruct((M, H), jnp.float32),
        grid=(grid,),
        in_specs=[
            pl.BlockSpec((tile, H), lambda i: (i, 0)),
            pl.BlockSpec((H, F), lambda i: (0, 0)),
            pl.BlockSpec((1, F), lambda i: (0, 0)),
            pl.BlockSpec((F, H), lambda i: (0, 0)),
            pl.BlockSpec((1, H), lambda i: (0, 0)),
            pl.BlockSpec((1, H), lambda i: (0, 0)),
            pl.BlockSpec((1, H), lambda i: (0, 0)),
        ],
        out_specs=pl.BlockSpec((tile, H), lambda i: (i, 0)),
        compiler_params=PARALLEL_FFN,
    )(x, w1, b1, w2, b2, gamma, beta)


# --- multi-head attention: head split/merge done in VMEM, not XLA ------------
def _mha_heads(q, k, v, *, nh, Dh, scale, causal):
    """q: (Lq, H), k/v: (S, H) bf16 values.  Returns (Lq, H) f32."""
    Lq = q.shape[0]
    S = k.shape[0]
    if causal:
        row = jax.lax.broadcasted_iota(jnp.int32, (Lq, S), 0)
        col = jax.lax.broadcasted_iota(jnp.int32, (Lq, S), 1)
        mask = col > row                                  # head-invariant (2-D)
    heads = []
    for h in range(nh):
        qh = q[:, h * Dh:(h + 1) * Dh]
        kh = k[:, h * Dh:(h + 1) * Dh]
        vh = v[:, h * Dh:(h + 1) * Dh]
        s = jax.lax.dot_general(qh, kh, (((1,), (1,)), ((), ())),
                                preferred_element_type=jnp.float32) * scale
        if causal:
            s = jnp.where(mask, -1e9, s)
        s = s - jnp.max(s, axis=-1, keepdims=True)
        p = jnp.exp(s)
        p = p * pl.reciprocal(jnp.sum(p, axis=-1, keepdims=True), approx=True)
        heads.append(jnp.dot(p.astype(jnp.bfloat16), vh,
                             preferred_element_type=jnp.float32))
    return jnp.concatenate(heads, axis=-1)


def _attn_kernel(q_ref, kv_ref, o_ref, *, nh, Dh, scale, causal):
    H = nh * Dh
    q = q_ref[0].astype(jnp.bfloat16)                     # (Lq, H)
    kv = kv_ref[0].astype(jnp.bfloat16)                   # (S, 2H)
    o = _mha_heads(q, kv[:, :H], kv[:, H:], nh=nh, Dh=Dh, scale=scale,
                   causal=causal)
    o_ref[0] = o.astype(o_ref.dtype)


def pallas_attention(q2d, kv2d, B, Lq, S, nh, *, causal):
    """q2d: (B*Lq, H); kv2d: (B*S, 2H) fused K|V projection."""
    H = q2d.shape[-1]
    Dh = H // nh
    q3 = q2d.reshape(B, Lq, H)                            # free metadata reshape
    kv3 = kv2d.reshape(B, S, 2 * H)
    out = pl.pallas_call(
        functools.partial(_attn_kernel, nh=nh, Dh=Dh,
                          scale=1.0 / (Dh ** 0.5), causal=causal),
        out_shape=jax.ShapeDtypeStruct((B, Lq, H), jnp.bfloat16),
        grid=(B,),   # TODO(synk): for v7x with tiny/odd B, flatten more work onto this axis
        in_specs=[
            pl.BlockSpec((1, Lq, H), lambda b: (b, 0, 0)),
            pl.BlockSpec((1, S, 2 * H), lambda b: (b, 0, 0)),
        ],
        out_specs=pl.BlockSpec((1, Lq, H), lambda b: (b, 0, 0)),
        compiler_params=PARALLEL,
    )(q3, kv3)
    return out.reshape(B * Lq, H)


def _attn_packed_kernel(qkv_ref, o_ref, *, nh, Dh, scale, causal):
    H = nh * Dh
    x = qkv_ref[0].astype(jnp.bfloat16)                   # (L, 3H)
    o = _mha_heads(x[:, :H], x[:, H:2 * H], x[:, 2 * H:], nh=nh, Dh=Dh,
                   scale=scale, causal=causal)
    o_ref[0] = o.astype(o_ref.dtype)


def pallas_attention_packed(qkv2d, B, L, nh, *, causal):
    """Self-attention where q=k=v: qkv2d is the fused (B*L, 3H) projection."""
    H3 = qkv2d.shape[-1]
    H = H3 // 3
    Dh = H // nh
    x3 = qkv2d.reshape(B, L, H3)
    out = pl.pallas_call(
        functools.partial(_attn_packed_kernel, nh=nh, Dh=Dh,
                          scale=1.0 / (Dh ** 0.5), causal=causal),
        out_shape=jax.ShapeDtypeStruct((B, L, H), jnp.bfloat16),
        grid=(B,),
        in_specs=[pl.BlockSpec((1, L, H3), lambda b: (b, 0, 0))],
        out_specs=pl.BlockSpec((1, L, H), lambda b: (b, 0, 0)),
        compiler_params=PARALLEL,
    )(x3)
    return out.reshape(B * L, H)


def _gate_logits_kernel(t1_ref, t2_ref, pe_ref, ne_ref, w1_ref, w2_ref, b_ref, o_ref):
    """g = sigmoid(t1 W1 + t2 W2 + b); c = g*t1+(1-g)*t2;
    out[:,0]/[:,1] = rowwise dot of c with pos/neg item embeddings."""
    t1 = t1_ref[...]
    t2 = t2_ref[...]
    z = (jnp.dot(t1.astype(jnp.bfloat16), w1_ref[...],
                 preferred_element_type=jnp.float32)
         + jnp.dot(t2.astype(jnp.bfloat16), w2_ref[...],
                   preferred_element_type=jnp.float32)
         + b_ref[...])
    g = jax.nn.sigmoid(z)
    c = g * t1 + (1.0 - g) * t2
    pos = jnp.sum(c * pe_ref[...], axis=-1, keepdims=True)
    neg = jnp.sum(c * ne_ref[...], axis=-1, keepdims=True)
    o_ref[...] = jnp.concatenate([pos, neg], axis=-1)


def pallas_gate_logits(t1, t2, pos_e, neg_e, w1, w2, b_sum):
    M, H = t1.shape
    tile, grid = _row_plan(M)
    return pl.pallas_call(
        _gate_logits_kernel,
        out_shape=jax.ShapeDtypeStruct((M, 2), jnp.float32),
        grid=(grid,),
        in_specs=[
            pl.BlockSpec((tile, H), lambda i: (i, 0)),
            pl.BlockSpec((tile, H), lambda i: (i, 0)),
            pl.BlockSpec((tile, H), lambda i: (i, 0)),
            pl.BlockSpec((tile, H), lambda i: (i, 0)),
            pl.BlockSpec((H, H), lambda i: (0, 0)),
            pl.BlockSpec((H, H), lambda i: (0, 0)),
            pl.BlockSpec((1, H), lambda i: (0, 0)),
        ],
        out_specs=pl.BlockSpec((tile, 2), lambda i: (i, 0)),
        compiler_params=PARALLEL,
    )(t1, t2, pos_e, neg_e, w1, w2, b_sum)


# ----------------------------------------------------------------------------
# Model glue around the Pallas kernels
# ----------------------------------------------------------------------------
def log2feats(p, log_seqs, seq_pop, cfg):
    B, L = log_seqs.shape
    H = cfg["hidden"]
    nh = cfg["num_heads"]

    seqs = p["item_emb"][log_seqs] * (H ** 0.5)
    seqs = seqs + p["pos_emb"][None, :L, :]
    seqs = seqs + seq_pop * jnp.ones_like(seqs)
    # emb_dropout: identity (eval)
    keep = (log_seqs != 0)[:, :, None].astype(seqs.dtype)
    seqs = seqs * keep
    sf = seqs.reshape(B * L, H)

    for blk in p["blocks"]:
        # fused LN + Q-proj (on LN output) + K|V-proj (on raw seqs)
        q_ln, q, kv = pallas_ln_qkv(sf, blk, eps=1e-8)
        # causal MHA; head split/merge inside the kernel
        ao = pallas_attention(q, kv, B, L, L, nh, causal=True)
        # out-proj + residual (seqs = Q + mha_out), fused
        sf = pallas_linear_residual(ao, blk["wo"], blk["bo"], q_ln)
        # fwd LayerNorm + pointwise FFN + residual, fused
        sf = pallas_ln_ffn(sf, blk, eps=1e-8)
        sf = (sf.reshape(B, L, H) * keep).reshape(B * L, H)

    lf = pallas_layernorm(sf, p["last_ln_g"], p["last_ln_b"], eps=1e-8)
    return lf.reshape(B, L, H)


def decoder_layer(x, memory, d):
    """nn.TransformerDecoderLayer (post-norm, ReLU, nhead=2, eval, no masks)."""
    B, L, H = x.shape
    K = memory.shape[1]
    nh = 2
    xf = x.reshape(B * L, H)
    mf = memory.reshape(B * K, H)

    # ---- self-attention: q = k = v = x  ->  single fused (H, 3H) projection
    qkv = pallas_linear(xf, d["sa_wqkv"], d["sa_bqkv"], out_dtype=jnp.bfloat16)
    ao = pallas_attention_packed(qkv, B, L, nh, causal=False)
    xf = pallas_linear_res_ln(ao, d["sa_wo"], d["sa_bo"], xf,
                              d["norm1_g"], d["norm1_b"], eps=1e-5)

    # ---- cross-attention: q from x, k/v from memory (fused K|V projection)
    q = pallas_linear(xf, d["ca_wq"], d["ca_bq"], out_dtype=jnp.bfloat16)
    kv = pallas_linear(mf, d["ca_wkv"], d["ca_bkv"], out_dtype=jnp.bfloat16)
    ao = pallas_attention(q, kv, B, L, K, nh, causal=False)
    xf = pallas_linear_res_ln(ao, d["ca_wo"], d["ca_bo"], xf,
                              d["norm2_g"], d["norm2_b"], eps=1e-5)

    # ---- FFN + residual + norm3, fused
    xf = pallas_ffn_ln(xf, d["w1"], d["b1"], d["w2"], d["b2"],
                       d["norm3_g"], d["norm3_b"], eps=1e-5)
    return xf.reshape(B, L, H)


def cltsbr_forward(p, user_ids, log_seqs, pos_seqs, neg_seqs, n_sess, seq_pop, cfg):
    log_feats = log2feats(p, log_seqs, seq_pop, cfg)                   # (B,L,H)
    # functional version of `self.sess_emb_dict[user_ids] = log_feats.sum(1)`
    sess_emb = p["sess_emb_dict"].at[user_ids].set(jnp.sum(log_feats, axis=1))
    top_neighbor_feats = sess_emb[n_sess]                              # (B,K,H)
    top_neighbor_feats = decoder_layer(log_feats, top_neighbor_feats, p["decoder"])

    B, L, H = log_feats.shape
    pos_embs = p["item_emb"][pos_seqs].reshape(B * L, H)
    neg_embs = p["item_emb"][neg_seqs].reshape(B * L, H)
    g = p["gate"]
    logits = pallas_gate_logits(log_feats.reshape(B * L, H),
                                top_neighbor_feats.reshape(B * L, H),
                                pos_embs, neg_embs, g["w1"], g["w2"], g["b"])
    pos_l = logits[:, 0].reshape(B, L)
    neg_l = logits[:, 1].reshape(B, L)
    return pos_l, neg_l, sess_emb


# ----------------------------------------------------------------------------
# Parameter init (torch-like raw params) + one-time weight-prep pass
# ----------------------------------------------------------------------------
def init_params(key, cfg):
    H = cfg["hidden"]
    FF = cfg["dim_feedforward"]
    keys = iter(jax.random.split(key, 256))

    def nrm(shape, scale=0.05):
        return scale * jax.random.normal(next(keys), shape, dtype=jnp.float32)

    def attn_params():
        return dict(wq=nrm((H, H)), bq=nrm((H,)),
                    wk=nrm((H, H)), bk=nrm((H,)),
                    wv=nrm((H, H)), bv=nrm((H,)),
                    wo=nrm((H, H)), bo=nrm((H,)))

    item_emb = nrm((cfg["item_num"] + 1, H))
    item_emb = item_emb.at[0].set(0.0)  # padding_idx=0

    blocks = []
    for _ in range(cfg["num_blocks"]):
        blocks.append(dict(
            attn_ln_g=jnp.ones((H,), jnp.float32), attn_ln_b=jnp.zeros((H,), jnp.float32),
            attn=attn_params(),
            fwd_ln_g=jnp.ones((H,), jnp.float32), fwd_ln_b=jnp.zeros((H,), jnp.float32),
            ffn=dict(w1=nrm((H, H)), b1=nrm((H,)), w2=nrm((H, H)), b2=nrm((H,))),
        ))

    decoder = dict(
        self_attn=attn_params(),
        cross_attn=attn_params(),
        w1=nrm((H, FF)), b1=nrm((FF,)),
        w2=nrm((FF, H)), b2=nrm((H,)),
        norm1_g=jnp.ones((H,), jnp.float32), norm1_b=jnp.zeros((H,), jnp.float32),
        norm2_g=jnp.ones((H,), jnp.float32), norm2_b=jnp.zeros((H,), jnp.float32),
        norm3_g=jnp.ones((H,), jnp.float32), norm3_b=jnp.zeros((H,), jnp.float32),
    )

    return dict(
        item_emb=item_emb,
        pos_emb=nrm((cfg["maxlen"], H)),
        sess_emb_dict=nrm((cfg["user_num"], H), scale=1.0),
        blocks=blocks,
        last_ln_g=jnp.ones((H,), jnp.float32),
        last_ln_b=jnp.zeros((H,), jnp.float32),
        gate=dict(w1=nrm((H, H)), b1=nrm((H,)), w2=nrm((H, H)), b2=nrm((H,))),
        decoder=decoder,
    )


def prepare_params(params, cfg):
    """One-time weight-prep pass (outside jit): fuse K|V and Q|K|V projections,
    pre-cast matmul weights to bf16, pre-shape biases/LN params to (1, N) f32."""
    del cfg

    def row(b):
        return b.reshape(1, -1).astype(jnp.float32)

    blocks = []
    for blk in params["blocks"]:
        a = blk["attn"]
        blocks.append(dict(
            attn_ln_g=row(blk["attn_ln_g"]), attn_ln_b=row(blk["attn_ln_b"]),
            wq=_bf16(a["wq"]), bq=row(a["bq"]),
            wkv=_bf16(jnp.concatenate([a["wk"], a["wv"]], axis=1)),
            bkv=row(jnp.concatenate([a["bk"], a["bv"]])),
            wo=_bf16(a["wo"]), bo=row(a["bo"]),
            fwd_ln_g=row(blk["fwd_ln_g"]), fwd_ln_b=row(blk["fwd_ln_b"]),
            w1=_bf16(blk["ffn"]["w1"]), b1=row(blk["ffn"]["b1"]),
            w2=_bf16(blk["ffn"]["w2"]), b2=row(blk["ffn"]["b2"]),
        ))

    d = params["decoder"]
    sa, ca = d["self_attn"], d["cross_attn"]
    decoder = dict(
        sa_wqkv=_bf16(jnp.concatenate([sa["wq"], sa["wk"], sa["wv"]], axis=1)),
        sa_bqkv=row(jnp.concatenate([sa["bq"], sa["bk"], sa["bv"]])),
        sa_wo=_bf16(sa["wo"]), sa_bo=row(sa["bo"]),
        ca_wq=_bf16(ca["wq"]), ca_bq=row(ca["bq"]),
        ca_wkv=_bf16(jnp.concatenate([ca["wk"], ca["wv"]], axis=1)),
        ca_bkv=row(jnp.concatenate([ca["bk"], ca["bv"]])),
        ca_wo=_bf16(ca["wo"]), ca_bo=row(ca["bo"]),
        w1=_bf16(d["w1"]), b1=row(d["b1"]),
        w2=_bf16(d["w2"]), b2=row(d["b2"]),
        norm1_g=row(d["norm1_g"]), norm1_b=row(d["norm1_b"]),
        norm2_g=row(d["norm2_g"]), norm2_b=row(d["norm2_b"]),
        norm3_g=row(d["norm3_g"]), norm3_b=row(d["norm3_b"]),
    )

    g = params["gate"]
    gate = dict(w1=_bf16(g["w1"]), w2=_bf16(g["w2"]), b=row(g["b1"] + g["b2"]))

    return dict(
        item_emb=params["item_emb"],
        pos_emb=params["pos_emb"],
        sess_emb_dict=params["sess_emb_dict"],
        blocks=blocks,
        last_ln_g=row(params["last_ln_g"]),
        last_ln_b=row(params["last_ln_b"]),
        gate=gate,
        decoder=decoder,
    )


# ----------------------------------------------------------------------------
if __name__ == "__main__":
    cfg = dict(
        user_num=10, item_num=20, hidden=32, maxlen=8,
        num_blocks=2, num_heads=2, dim_feedforward=2048,  # decoder-layer default
    )
    B, L, K = 2, cfg["maxlen"], 4

    root = jax.random.PRNGKey(0)
    k_p, k_log, k_pos, k_neg, k_nsess, k_pop = jax.random.split(root, 6)

    raw_params = init_params(k_p, cfg)
    params = prepare_params(raw_params, cfg)   # weight-prep pass, outside jit

    log_seqs = jax.random.randint(k_log, (B, L), 0, cfg["item_num"] + 1, dtype=jnp.int32)
    log_seqs = log_seqs.at[:, :2].set(0)  # some padding positions
    pos_seqs = jax.random.randint(k_pos, (B, L), 1, cfg["item_num"] + 1, dtype=jnp.int32)
    neg_seqs = jax.random.randint(k_neg, (B, L), 1, cfg["item_num"] + 1, dtype=jnp.int32)
    user_ids = jnp.arange(B, dtype=jnp.int32)
    n_sess = jax.random.randint(k_nsess, (B, K), 0, cfg["user_num"], dtype=jnp.int32)
    seq_pop = jax.random.uniform(k_pop, (B, L, 1), dtype=jnp.float32)

    fwd = jax.jit(functools.partial(cltsbr_forward, cfg=cfg))
    pos_logits, neg_logits, new_sess_emb = fwd(
        params, user_ids, log_seqs, pos_seqs, neg_seqs, n_sess, seq_pop)
    jax.block_until_ready((pos_logits, neg_logits, new_sess_emb))

    assert pos_logits.shape == (B, L) and neg_logits.shape == (B, L)
    assert new_sess_emb.shape == (cfg["user_num"], cfg["hidden"])
    assert bool(jnp.all(jnp.isfinite(pos_logits))) and bool(jnp.all(jnp.isfinite(neg_logits)))
    print("KERNEL_OK")
</pallas_src>

<mosaic_0001>
module attributes {stable_mosaic.version = 11 : i64} {
  func.func @_ln_qkv_kernel(%arg0: i32, %arg1: memref<16x32xf32, #tpu.memory_space<vmem>>, %arg2: memref<1x32xf32, #tpu.memory_space<vmem>>, %arg3: memref<1x32xf32, #tpu.memory_space<vmem>>, %arg4: memref<32x32xbf16, #tpu.memory_space<vmem>>, %arg5: memref<1x32xf32, #tpu.memory_space<vmem>>, %arg6: memref<32x64xbf16, #tpu.memory_space<vmem>>, %arg7: memref<1x64xf32, #tpu.memory_space<vmem>>, %arg8: memref<16x32xf32, #tpu.memory_space<vmem>>, %arg9: memref<16x32xbf16, #tpu.memory_space<vmem>>, %arg10: memref<16x64xbf16, #tpu.memory_space<vmem>>) attributes {dimension_semantics = [#tpu.dimension_semantics<parallel>], iteration_bounds = array<i64: 1>, scalar_prefetch = 0 : i64, scratch_operands = 0 : i64, tpu.core_type = #tpu.core_type<tc>, window_params = [{transform_indices = @transform_0, window_bounds = array<i64: 16, 32>}, {pipeline_mode = #tpu.pipeline_mode<synchronous>, transform_indices = @transform_1, window_bounds = array<i64: 1, 32>}, {pipeline_mode = #tpu.pipeline_mode<synchronous>, transform_indices = @transform_2, window_bounds = array<i64: 1, 32>}, {pipeline_mode = #tpu.pipeline_mode<synchronous>, transform_indices = @transform_3, window_bounds = array<i64: 32, 32>}, {pipeline_mode = #tpu.pipeline_mode<synchronous>, transform_indices = @transform_4, window_bounds = array<i64: 1, 32>}, {pipeline_mode = #tpu.pipeline_mode<synchronous>, transform_indices = @transform_5, window_bounds = array<i64: 32, 64>}, {pipeline_mode = #tpu.pipeline_mode<synchronous>, transform_indices = @transform_6, window_bounds = array<i64: 1, 64>}, {transform_indices = @transform_7, window_bounds = array<i64: 16, 32>}, {transform_indices = @transform_8, window_bounds = array<i64: 16, 32>}, {transform_indices = @transform_9, window_bounds = array<i64: 16, 64>}]} {
    %c0 = arith.constant 0 : index
    %c0_0 = arith.constant 0 : index
    %0 = vector.load %arg1[%c0, %c0_0] : memref<16x32xf32, #tpu.memory_space<vmem>>, vector<16x32xf32>
    %c0_1 = arith.constant 0 : index
    %c0_2 = arith.constant 0 : index
    %1 = vector.load %arg2[%c0_1, %c0_2] : memref<1x32xf32, #tpu.memory_space<vmem>>, vector<1x32xf32>
    %c0_3 = arith.constant 0 : index
    %c0_4 = arith.constant 0 : index
    %2 = vector.load %arg3[%c0_3, %c0_4] : memref<1x32xf32, #tpu.memory_space<vmem>>, vector<1x32xf32>
    %cst = arith.constant dense<0.000000e+00> : vector<16xf32>
    %3 = vector.multi_reduction <add>, %0, %cst [1] : vector<16x32xf32> to vector<16xf32>
    %4 = vector.shape_cast %3 : vector<16xf32> to vector<16x1xf32>
    %cst_5 = arith.constant 3.200000e+01 : f32
    %5 = vector.broadcast %cst_5 : f32 to vector<16x1xf32>
    %6 = arith.divf %4, %5 : vector<16x1xf32>
    %7 = vector.broadcast %6 : vector<16x1xf32> to vector<16x32xf32>
    %8 = arith.subf %0, %7 : vector<16x32xf32>
    %9 = arith.mulf %8, %8 : vector<16x32xf32>
    %cst_6 = arith.constant dense<0.000000e+00> : vector<16xf32>
    %10 = vector.multi_reduction <add>, %9, %cst_6 [1] : vector<16x32xf32> to vector<16xf32>
    %11 = vector.shape_cast %10 : vector<16xf32> to vector<16x1xf32>
    %cst_7 = arith.constant 3.200000e+01 : f32
    %12 = vector.broadcast %cst_7 : f32 to vector<16x1xf32>
    %13 = arith.divf %11, %12 : vector<16x1xf32>
    %14 = vector.broadcast %6 : vector<16x1xf32> to vector<16x32xf32>
    %15 = arith.subf %0, %14 : vector<16x32xf32>
    %cst_8 = arith.constant 9.99999993E-9 : f32
    %16 = vector.broadcast %cst_8 : f32 to vector<16x1xf32>
    %17 = arith.addf %13, %16 : vector<16x1xf32>
    %18 = math.rsqrt %17 : vector<16x1xf32>
    %19 = vector.broadcast %18 : vector<16x1xf32> to vector<16x32xf32>
    %20 = arith.mulf %15, %19 : vector<16x32xf32>
    %21 = vector.broadcast %1 : vector<1x32xf32> to vector<16x32xf32>
    %22 = arith.mulf %20, %21 : vector<16x32xf32>
    %23 = vector.broadcast %2 : vector<1x32xf32> to vector<16x32xf32>
    %24 = arith.addf %22, %23 : vector<16x32xf32>
    %c0_9 = arith.constant 0 : index
    %c0_10 = arith.constant 0 : index
    %25 = vector.load %arg8[%c0_9, %c0_10] : memref<16x32xf32, #tpu.memory_space<vmem>>, vector<16x32xf32>
    tpu.vector_store %arg8[%c0_9, %c0_10], %24 {strides = array<i32>} : memref<16x32xf32, #tpu.memory_space<vmem>>, vector<16x32xf32>,
    %26 = arith.truncf %24 : vector<16x32xf32> to vector<16x32xbf16>
    %c0_11 = arith.constant 0 : index
    %c0_12 = arith.constant 0 : index
    %27 = vector.load %arg4[%c0_11, %c0_12] : memref<32x32xbf16, #tpu.memory_space<vmem>>, vector<32x32xbf16>
    %cst_13 = arith.constant dense<0.000000e+00> : vector<16x32xf32>
    %28 = tpu.matmul %26, %27, %cst_13 {dimension_numbers = #tpu.dot_dimension_numbers<[1], [0], [0], [1], [0, 0, 1, 1], [], []>} : vector<16x32xbf16>, vector<32x32xbf16>, vector<16x32xf32> -> vector<16x32xf32>
    %c0_14 = arith.constant 0 : index
    %c0_15 = arith.constant 0 : index
    %29 = vector.load %arg5[%c0_14, %c0_15] : memref<1x32xf32, #tpu.memory_space<vmem>>, vector<1x32xf32>
    %30 = vector.broadcast %29 : vector<1x32xf32> to vector<16x32xf32>
    %31 = arith.addf %28, %30 : vector<16x32xf32>
    %32 = arith.truncf %31 : vector<16x32xf32> to vector<16x32xbf16>
    %c0_16 = arith.constant 0 : index
    %c0_17 = arith.constant 0 : index
    %33 = vector.load %arg9[%c0_16, %c0_17] : memref<16x32xbf16, #tpu.memory_space<vmem>>, vector<16x32xbf16>
    tpu.vector_store %arg9[%c0_16, %c0_17], %32 {strides = array<i32>} : memref<16x32xbf16, #tpu.memory_space<vmem>>, vector<16x32xbf16>,
    %34 = arith.truncf %0 : vector<16x32xf32> to vector<16x32xbf16>
    %c0_18 = arith.constant 0 : index
    %c0_19 = arith.constant 0 : index
    %35 = vector.load %arg6[%c0_18, %c0_19] : memref<32x64xbf16, #tpu.memory_space<vmem>>, vector<32x64xbf16>
    %cst_20 = arith.constant dense<0.000000e+00> : vector<16x64xf32>
    %36 = tpu.matmul %34, %35, %cst_20 {dimension_numbers = #tpu.dot_dimension_numbers<[1], [0], [0], [1], [0, 0, 1, 1], [], []>} : vector<16x32xbf16>, vector<32x64xbf16>, vector<16x64xf32> -> vector<16x64xf32>
    %c0_21 = arith.constant 0 : index
    %c0_22 = arith.constant 0 : index
    %37 = vector.load %arg7[%c0_21, %c0_22] : memref<1x64xf32, #tpu.memory_space<vmem>>, vector<1x64xf32>
    %38 = vector.broadcast %37 : vector<1x64xf32> to vector<16x64xf32>
    %39 = arith.addf %36, %38 : vector<16x64xf32>
    %40 = arith.truncf %39 : vector<16x64xf32> to vector<16x64xbf16>
    %c0_23 = arith.constant 0 : index
    %c0_24 = arith.constant 0 : index
    %41 = vector.load %arg10[%c0_23, %c0_24] : memref<16x64xbf16, #tpu.memory_space<vmem>>, vector<16x64xbf16>
    tpu.vector_store %arg10[%c0_23, %c0_24], %40 {strides = array<i32>} : memref<16x64xbf16, #tpu.memory_space<vmem>>, vector<16x64xbf16>,
    return
  }
  func.func @transform_0(%arg0: i32) -> (i32, i32) {
    %c0_i32 = arith.constant 0 : i32
    %c0_i32_0 = arith.constant 0 : i32
    return %arg0, %c0_i32 : i32, i32
  }
  func.func @transform_1(%arg0: i32) -> (i32, i32) {
    %c0_i32 = arith.constant 0 : i32
    %c0_i32_0 = arith.constant 0 : i32
    %c0_i32_1 = arith.constant 0 : i32
    return %c0_i32, %c0_i32_0 : i32, i32
  }
  func.func @transform_2(%arg0: i32) -> (i32, i32) {
    %c0_i32 = arith.constant 0 : i32
    %c0_i32_0 = arith.constant 0 : i32
    %c0_i32_1 = arith.constant 0 : i32
    return %c0_i32, %c0_i32_0 : i32, i32
  }
  func.func @transform_3(%arg0: i32) -> (i32, i32) {
    %c0_i32 = arith.constant 0 : i32
    %c0_i32_0 = arith.constant 0 : i32
    %c0_i32_1 = arith.constant 0 : i32
    return %c0_i32, %c0_i32_0 : i32, i32
  }
  func.func @transform_4(%arg0: i32) -> (i32, i32) {
    %c0_i32 = arith.constant 0 : i32
    %c0_i32_0 = arith.constant 0 : i32
    %c0_i32_1 = arith.constant 0 : i32
    return %c0_i32, %c0_i32_0 : i32, i32
  }
  func.func @transform_5(%arg0: i32) -> (i32, i32) {
    %c0_i32 = arith.constant 0 : i32
    %c0_i32_0 = arith.constant 0 : i32
    %c0_i32_1 = arith.constant 0 : i32
    return %c0_i32, %c0_i32_0 : i32, i32
  }
  func.func @transform_6(%arg0: i32) -> (i32, i32) {
    %c0_i32 = arith.constant 0 : i32
    %c0_i32_0 = arith.constant 0 : i32
    %c0_i32_1 = arith.constant 0 : i32
    return %c0_i32, %c0_i32_0 : i32, i32
  }
  func.func @transform_7(%arg0: i32) -> (i32, i32) {
    %c0_i32 = arith.constant 0 : i32
    %c0_i32_0 = arith.constant 0 : i32
    return %arg0, %c0_i32 : i32, i32
  }
  func.func @transform_8(%arg0: i32) -> (i32, i32) {
    %c0_i32 = arith.constant 0 : i32
    %c0_i32_0 = arith.constant 0 : i32
    return %arg0, %c0_i32 : i32, i32
  }
  func.func @transform_9(%arg0: i32) -> (i32, i32) {
    %c0_i32 = arith.constant 0 : i32
    %c0_i32_0 = arith.constant 0 : i32
    return %arg0, %c0_i32 : i32, i32
  }
}

module attributes {stable_mosaic.version = 11 : i64} {
  func.func @_linear_res_kernel(%arg0: i32, %arg1: memref<16x32xbf16, #tpu.memory_space<vmem>>, %arg2: memref<32x32xbf16, #tpu.memory_space<vmem>>, %arg3: memref<1x32xf32, #tpu.memory_space<vmem>>, %arg4: memref<16x32xf32, #tpu.memory_space<vmem>>, %arg5: memref<16x32xf32, #tpu.memory_space<vmem>>) attributes {dimension_semantics = [#tpu.dimension_semantics<parallel>], iteration_bounds = array<i64: 1>, scalar_prefetch = 0 : i64, scratch_operands = 0 : i64, tpu.core_type = #tpu.core_type<tc>, window_params = [{transform_indices = @transform_0, window_bounds = array<i64: 16, 32>}, {pipeline_mode = #tpu.pipeline_mode<synchronous>, transform_indices = @transform_1, window_bounds = array<i64: 32, 32>}, {pipeline_mode = #tpu.pipeline_mode<synchronous>, transform_indices = @transform_2, window_bounds = array<i64: 1, 32>}, {transform_indices = @transform_3, window_bounds = array<i64: 16, 32>}, {transform_indices = @transform_4, window_bounds = array<i64: 16, 32>}]} {
    %c0 = arith.constant 0 : index
    %c0_0 = arith.constant 0 : index
    %0 = vector.load %arg1[%c0, %c0_0] : memref<16x32xbf16, #tpu.memory_space<vmem>>, vector<16x32xbf16>
    %c0_1 = arith.constant 0 : index
    %c0_2 = arith.constant 0 : index
    %1 = vector.load %arg2[%c0_1, %c0_2] : memref<32x32xbf16, #tpu.memory_space<vmem>>, vector<32x32xbf16>
    %cst = arith.constant dense<0.000000e+00> : vector<16x32xf32>
    %2 = tpu.matmul %0, %1, %cst {dimension_numbers = #tpu.dot_dimension_numbers<[1], [0], [0], [1], [0, 0, 1, 1], [], []>} : vector<16x32xbf16>, vector<32x32xbf16>, vector<16x32xf32> -> vector<16x32xf32>
    %c0_3 = arith.constant 0 : index
    %c0_4 = arith.constant 0 : index
    %3 = vector.load %arg3[%c0_3, %c0_4] : memref<1x32xf32, #tpu.memory_space<vmem>>, vector<1x32xf32>
    %4 = vector.broadcast %3 : vector<1x32xf32> to vector<16x32xf32>
    %5 = arith.addf %2, %4 : vector<16x32xf32>
    %c0_5 = arith.constant 0 : index
    %c0_6 = arith.constant 0 : index
    %6 = vector.load %arg4[%c0_5, %c0_6] : memref<16x32xf32, #tpu.memory_space<vmem>>, vector<16x32xf32>
    %7 = arith.addf %5, %6 : vector<16x32xf32>
    %c0_7 = arith.constant 0 : index
    %c0_8 = arith.constant 0 : index
    %8 = vector.load %arg5[%c0_7, %c0_8] : memref<16x32xf32, #tpu.memory_space<vmem>>, vector<16x32xf32>
    tpu.vector_store %arg5[%c0_7, %c0_8], %7 {strides = array<i32>} : memref<16x32xf32, #tpu.memory_space<vmem>>, vector<16x32xf32>,
    return
  }
  func.func @transform_0(%arg0: i32) -> (i32, i32) {
    %c0_i32 = arith.constant 0 : i32
    %c0_i32_0 = arith.constant 0 : i32
    return %arg0, %c0_i32 : i32, i32
  }
  func.func @transform_1(%arg0: i32) -> (i32, i32) {
    %c0_i32 = arith.constant 0 : i32
    %c0_i32_0 = arith.constant 0 : i32
    %c0_i32_1 = arith.constant 0 : i32
    return %c0_i32, %c0_i32_0 : i32, i32
  }
  func.func @transform_2(%arg0: i32) -> (i32, i32) {
    %c0_i32 = arith.constant 0 : i32
    %c0_i32_0 = arith.constant 0 : i32
    %c0_i32_1 = arith.constant 0 : i32
    return %c0_i32, %c0_i32_0 : i32, i32
  }
  func.func @transform_3(%arg0: i32) -> (i32, i32) {
    %c0_i32 = arith.constant 0 : i32
    %c0_i32_0 = arith.constant 0 : i32
    return %arg0, %c0_i32 : i32, i32
  }
  func.func @transform_4(%arg0: i32) -> (i32, i32) {
    %c0_i32 = arith.constant 0 : i32
    %c0_i32_0 = arith.constant 0 : i32
    return %arg0, %c0_i32 : i32, i32
  }
}

module attributes {stable_mosaic.version = 11 : i64} {
  func.func @_ln_ffn_kernel(%arg0: i32, %arg1: memref<16x32xf32, #tpu.memory_space<vmem>>, %arg2: memref<1x32xf32, #tpu.memory_space<vmem>>, %arg3: memref<1x32xf32, #tpu.memory_space<vmem>>, %arg4: memref<32x32xbf16, #tpu.memory_space<vmem>>, %arg5: memref<1x32xf32, #tpu.memory_space<vmem>>, %arg6: memref<32x32xbf16, #tpu.memory_space<vmem>>, %arg7: memref<1x32xf32, #tpu.memory_space<vmem>>, %arg8: memref<16x32xf32, #tpu.memory_space<vmem>>) attributes {dimension_semantics = [#tpu.dimension_semantics<parallel>], iteration_bounds = array<i64: 1>, scalar_prefetch = 0 : i64, scratch_operands = 0 : i64, tpu.core_type = #tpu.core_type<tc>, window_params = [{transform_indices = @transform_0, window_bounds = array<i64: 16, 32>}, {pipeline_mode = #tpu.pipeline_mode<synchronous>, transform_indices = @transform_1, window_bounds = array<i64: 1, 32>}, {pipeline_mode = #tpu.pipeline_mode<synchronous>, transform_indices = @transform_2, window_bounds = array<i64: 1, 32>}, {pipeline_mode = #tpu.pipeline_mode<synchronous>, transform_indices = @transform_3, window_bounds = array<i64: 32, 32>}, {pipeline_mode = #tpu.pipeline_mode<synchronous>, transform_indices = @transform_4, window_bounds = array<i64: 1, 32>}, {pipeline_mode = #tpu.pipeline_mode<synchronous>, transform_indices = @transform_5, window_bounds = array<i64: 32, 32>}, {pipeline_mode = #tpu.pipeline_mode<synchronous>, transform_indices = @transform_6, window_bounds = array<i64: 1, 32>}, {transform_indices = @transform_7, window_bounds = array<i64: 16, 32>}]} {
    %c0 = arith.constant 0 : index
    %c0_0 = arith.constant 0 : index
    %0 = vector.load %arg1[%c0, %c0_0] : memref<16x32xf32, #tpu.memory_space<vmem>>, vector<16x32xf32>
    %c0_1 = arith.constant 0 : index
    %c0_2 = arith.constant 0 : index
    %1 = vector.load %arg2[%c0_1, %c0_2] : memref<1x32xf32, #tpu.memory_space<vmem>>, vector<1x32xf32>
    %c0_3 = arith.constant 0 : index
    %c0_4 = arith.constant 0 : index
    %2 = vector.load %arg3[%c0_3, %c0_4] : memref<1x32xf32, #tpu.memory_space<vmem>>, vector<1x32xf32>
    %cst = arith.constant dense<0.000000e+00> : vector<16xf32>
    %3 = vector.multi_reduction <add>, %0, %cst [1] : vector<16x32xf32> to vector<16xf32>
    %4 = vector.shape_cast %3 : vector<16xf32> to vector<16x1xf32>
    %cst_5 = arith.constant 3.200000e+01 : f32
    %5 = vector.broadcast %cst_5 : f32 to vector<16x1xf32>
    %6 = arith.divf %4, %5 : vector<16x1xf32>
    %7 = vector.broadcast %6 : vector<16x1xf32> to vector<16x32xf32>
    %8 = arith.subf %0, %7 : vector<16x32xf32>
    %9 = arith.mulf %8, %8 : vector<16x32xf32>
    %cst_6 = arith.constant dense<0.000000e+00> : vector<16xf32>
    %10 = vector.multi_reduction <add>, %9, %cst_6 [1] : vector<16x32xf32> to vector<16xf32>
    %11 = vector.shape_cast %10 : vector<16xf32> to vector<16x1xf32>
    %cst_7 = arith.constant 3.200000e+01 : f32
    %12 = vector.broadcast %cst_7 : f32 to vector<16x1xf32>
    %13 = arith.divf %11, %12 : vector<16x1xf32>
    %14 = vector.broadcast %6 : vector<16x1xf32> to vector<16x32xf32>
    %15 = arith.subf %0, %14 : vector<16x32xf32>
    %cst_8 = arith.constant 9.99999993E-9 : f32
    %16 = vector.broadcast %cst_8 : f32 to vector<16x1xf32>
    %17 = arith.addf %13, %16 : vector<16x1xf32>
    %18 = math.rsqrt %17 : vector<16x1xf32>
    %19 = vector.broadcast %18 : vector<16x1xf32> to vector<16x32xf32>
    %20 = arith.mulf %15, %19 : vector<16x32xf32>
    %21 = vector.broadcast %1 : vector<1x32xf32> to vector<16x32xf32>
    %22 = arith.mulf %20, %21 : vector<16x32xf32>
    %23 = vector.broadcast %2 : vector<1x32xf32> to vector<16x32xf32>
    %24 = arith.addf %22, %23 : vector<16x32xf32>
    %25 = arith.truncf %24 : vector<16x32xf32> to vector<16x32xbf16>
    %c0_9 = arith.constant 0 : index
    %c0_10 = arith.constant 0 : index
    %26 = vector.load %arg4[%c0_9, %c0_10] : memref<32x32xbf16, #tpu.memory_space<vmem>>, vector<32x32xbf16>
    %cst_11 = arith.constant dense<0.000000e+00> : vector<16x32xf32>
    %27 = tpu.matmul %25, %26, %cst_11 {dimension_numbers = #tpu.dot_dimension_numbers<[1], [0], [0], [1], [0, 0, 1, 1], [], []>} : vector<16x32xbf16>, vector<32x32xbf16>, vector<16x32xf32> -> vector<16x32xf32>
    %c0_12 = arith.constant 0 : index
    %c0_13 = arith.constant 0 : index
    %28 = vector.load %arg5[%c0_12, %c0_13] : memref<1x32xf32, #tpu.memory_space<vmem>>, vector<1x32xf32>
    %29 = vector.broadcast %28 : vector<1x32xf32> to vector<16x32xf32>
    %30 = arith.addf %27, %29 : vector<16x32xf32>
    %cst_14 = arith.constant 0.000000e+00 : f32
    %31 = vector.broadcast %cst_14 : f32 to vector<16x32xf32>
    %32 = arith.maximumf %30, %31 : vector<16x32xf32>
    %33 = arith.truncf %32 : vector<16x32xf32> to vector<16x32xbf16>
    %c0_15 = arith.constant 0 : index
    %c0_16 = arith.constant 0 : index
    %34 = vector.load %arg6[%c0_15, %c0_16] : memref<32x32xbf16, #tpu.memory_space<vmem>>, vector<32x32xbf16>
    %cst_17 = arith.constant dense<0.000000e+00> : vector<16x32xf32>
    %35 = tpu.matmul %33, %34, %cst_17 {dimension_numbers = #tpu.dot_dimension_numbers<[1], [0], [0], [1], [0, 0, 1, 1], [], []>} : vector<16x32xbf16>, vector<32x32xbf16>, vector<16x32xf32> -> vector<16x32xf32>
    %c0_18 = arith.constant 0 : index
    %c0_19 = arith.constant 0 : index
    %36 = vector.load %arg7[%c0_18, %c0_19] : memref<1x32xf32, #tpu.memory_space<vmem>>, vector<1x32xf32>
    %37 = vector.broadcast %36 : vector<1x32xf32> to vector<16x32xf32>
    %38 = arith.addf %35, %37 : vector<16x32xf32>
    %39 = arith.addf %38, %24 : vector<16x32xf32>
    %c0_20 = arith.constant 0 : index
    %c0_21 = arith.constant 0 : index
    %40 = vector.load %arg8[%c0_20, %c0_21] : memref<16x32xf32, #tpu.memory_space<vmem>>, vector<16x32xf32>
    tpu.vector_store %arg8[%c0_20, %c0_21], %39 {strides = array<i32>} : memref<16x32xf32, #tpu.memory_space<vmem>>, vector<16x32xf32>,
    return
  }
  func.func @transform_0(%arg0: i32) -> (i32, i32) {
    %c0_i32 = arith.constant 0 : i32
    %c0_i32_0 = arith.constant 0 : i32
    return %arg0, %c0_i32 : i32, i32
  }
  func.func @transform_1(%arg0: i32) -> (i32, i32) {
    %c0_i32 = arith.constant 0 : i32
    %c0_i32_0 = arith.constant 0 : i32
    %c0_i32_1 = arith.constant 0 : i32
    return %c0_i32, %c0_i32_0 : i32, i32
  }
  func.func @transform_2(%arg0: i32) -> (i32, i32) {
    %c0_i32 = arith.constant 0 : i32
    %c0_i32_0 = arith.constant 0 : i32
    %c0_i32_1 = arith.constant 0 : i32
    return %c0_i32, %c0_i32_0 : i32, i32
  }
  func.func @transform_3(%arg0: i32) -> (i32, i32) {
    %c0_i32 = arith.constant 0 : i32
    %c0_i32_0 = arith.constant 0 : i32
    %c0_i32_1 = arith.constant 0 : i32
    return %c0_i32, %c0_i32_0 : i32, i32
  }
  func.func @transform_4(%arg0: i32) -> (i32, i32) {
    %c0_i32 = arith.constant 0 : i32
    %c0_i32_0 = arith.constant 0 : i32
    %c0_i32_1 = arith.constant 0 : i32
    return %c0_i32, %c0_i32_0 : i32, i32
  }
  func.func @transform_5(%arg0: i32) -> (i32, i32) {
    %c0_i32 = arith.constant 0 : i32
    %c0_i32_0 = arith.constant 0 : i32
    %c0_i32_1 = arith.constant 0 : i32
    return %c0_i32, %c0_i32_0 : i32, i32
  }
  func.func @transform_6(%arg0: i32) -> (i32, i32) {
    %c0_i32 = arith.constant 0 : i32
    %c0_i32_0 = arith.constant 0 : i32
    %c0_i32_1 = arith.constant 0 : i32
    return %c0_i32, %c0_i32_0 : i32, i32
  }
  func.func @transform_7(%arg0: i32) -> (i32, i32) {
    %c0_i32 = arith.constant 0 : i32
    %c0_i32_0 = arith.constant 0 : i32
    return %arg0, %c0_i32 : i32, i32
  }
}

module attributes {stable_mosaic.version = 11 : i64} {
  func.func @_attn_kernel(%arg0: i32, %arg1: memref<1x8x32xbf16, #tpu.memory_space<vmem>>, %arg2: memref<1x8x64xbf16, #tpu.memory_space<vmem>>, %arg3: memref<1x8x32xbf16, #tpu.memory_space<vmem>>) attributes {dimension_semantics = [#tpu.dimension_semantics<parallel>], iteration_bounds = array<i64: 2>, scalar_prefetch = 0 : i64, scratch_operands = 0 : i64, tpu.core_type = #tpu.core_type<tc>, window_params = [{transform_indices = @transform_0, window_bounds = array<i64: 1, 8, 32>}, {transform_indices = @transform_1, window_bounds = array<i64: 1, 8, 64>}, {transform_indices = @transform_2, window_bounds = array<i64: 1, 8, 32>}]} {
    %c0 = arith.constant 0 : index
    %c0_0 = arith.constant 0 : index
    %c0_1 = arith.constant 0 : index
    %0 = vector.load %arg1[%c0, %c0_0, %c0_1] : memref<1x8x32xbf16, #tpu.memory_space<vmem>>, vector<1x8x32xbf16>
    %1 = vector.shape_cast %0 : vector<1x8x32xbf16> to vector<8x32xbf16>
    %c0_2 = arith.constant 0 : index
    %c0_3 = arith.constant 0 : index
    %c0_4 = arith.constant 0 : index
    %2 = vector.load %arg2[%c0_2, %c0_3, %c0_4] : memref<1x8x64xbf16, #tpu.memory_space<vmem>>, vector<1x8x64xbf16>
    %3 = vector.shape_cast %2 : vector<1x8x64xbf16> to vector<8x64xbf16>
    %4 = vector.extract_strided_slice %3 {offsets = [0, 0], sizes = [8, 32], strides = [1, 1]} : vector<8x64xbf16> to vector<8x32xbf16>
    %5 = vector.extract_strided_slice %3 {offsets = [0, 32], sizes = [8, 32], strides = [1, 1]} : vector<8x64xbf16> to vector<8x32xbf16>
    %6 = tpu.iota {dimensions = array<i32: 0>} : vector<8x8xi32>
    %7 = tpu.iota {dimensions = array<i32: 1>} : vector<8x8xi32>
    %8 = arith.cmpi sgt, %7, %6 : vector<8x8xi32>
    %9 = vector.extract_strided_slice %1 {offsets = [0, 0], sizes = [8, 16], strides = [1, 1]} : vector<8x32xbf16> to vector<8x16xbf16>
    %10 = vector.extract_strided_slice %4 {offsets = [0, 0], sizes = [8, 16], strides = [1, 1]} : vector<8x32xbf16> to vector<8x16xbf16>
    %11 = vector.extract_strided_slice %5 {offsets = [0, 0], sizes = [8, 16], strides = [1, 1]} : vector<8x32xbf16> to vector<8x16xbf16>
    %cst = arith.constant dense<0.000000e+00> : vector<8x8xf32>
    %12 = tpu.matmul %9, %10, %cst {dimension_numbers = #tpu.dot_dimension_numbers<[1], [1], [0], [0], [0, 0, 1, 0], [], []>} : vector<8x16xbf16>, vector<8x16xbf16>, vector<8x8xf32> -> vector<8x8xf32>
    %cst_5 = arith.constant 2.500000e-01 : f32
    %13 = vector.broadcast %cst_5 : f32 to vector<8x8xf32>
    %14 = arith.mulf %12, %13 : vector<8x8xf32>
    %cst_6 = arith.constant -1.000000e+09 : f32
    %15 = vector.broadcast %cst_6 : f32 to vector<8x8xf32>
    %16 = arith.select %8, %15, %14 : vector<8x8xi1>, vector<8x8xf32>
    %cst_7 = arith.constant dense<0xFF800000> : vector<8xf32>
    %17 = vector.multi_reduction <maximumf>, %16, %cst_7 [1] : vector<8x8xf32> to vector<8xf32>
    %18 = vector.shape_cast %17 : vector<8xf32> to vector<8x1xf32>
    %19 = vector.broadcast %18 : vector<8x1xf32> to vector<8x8xf32>
    %20 = arith.subf %16, %19 : vector<8x8xf32>
    %21 = math.exp %20 : vector<8x8xf32>
    %cst_8 = arith.constant dense<0.000000e+00> : vector<8xf32>
    %22 = vector.multi_reduction <add>, %21, %cst_8 [1] : vector<8x8xf32> to vector<8xf32>
    %23 = vector.shape_cast %22 : vector<8xf32> to vector<8x1xf32>
    %24 = tpu.reciprocal %23 {approx = true} : vector<8x1xf32> -> vector<8x1xf32>
    %25 = vector.broadcast %24 : vector<8x1xf32> to vector<8x8xf32>
    %26 = arith.mulf %21, %25 : vector<8x8xf32>
    %27 = arith.truncf %26 : vector<8x8xf32> to vector<8x8xbf16>
    %cst_9 = arith.constant dense<0.000000e+00> : vector<8x16xf32>
    %28 = tpu.matmul %27, %11, %cst_9 {dimension_numbers = #tpu.dot_dimension_numbers<[1], [0], [0], [1], [0, 0, 1, 1], [], []>} : vector<8x8xbf16>, vector<8x16xbf16>, vector<8x16xf32> -> vector<8x16xf32>
    %29 = vector.extract_strided_slice %1 {offsets = [0, 16], sizes = [8, 16], strides = [1, 1]} : vector<8x32xbf16> to vector<8x16xbf16>
    %30 = vector.extract_strided_slice %4 {offsets = [0, 16], sizes = [8, 16], strides = [1, 1]} : vector<8x32xbf16> to vector<8x16xbf16>
    %31 = vector.extract_strided_slice %5 {offsets = [0, 16], sizes = [8, 16], strides = [1, 1]} : vector<8x32xbf16> to vector<8x16xbf16>
    %cst_10 = arith.constant dense<0.000000e+00> : vector<8x8xf32>
    %32 = tpu.matmul %29, %30, %cst_10 {dimension_numbers = #tpu.dot_dimension_numbers<[1], [1], [0], [0], [0, 0, 1, 0], [], []>} : vector<8x16xbf16>, vector<8x16xbf16>, vector<8x8xf32> -> vector<8x8xf32>
    %cst_11 = arith.constant 2.500000e-01 : f32
    %33 = vector.broadcast %cst_11 : f32 to vector<8x8xf32>
    %34 = arith.mulf %32, %33 : vector<8x8xf32>
    %cst_12 = arith.constant -1.000000e+09 : f32
    %35 = vector.broadcast %cst_12 : f32 to vector<8x8xf32>
    %36 = arith.select %8, %35, %34 : vector<8x8xi1>, vector<8x8xf32>
    %cst_13 = arith.constant dense<0xFF800000> : vector<8xf32>
    %37 = vector.multi_reduction <maximumf>, %36, %cst_13 [1] : vector<8x8xf32> to vector<8xf32>
    %38 = vector.shape_cast %37 : vector<8xf32> to vector<8x1xf32>
    %39 = vector.broadcast %38 : vector<8x1xf32> to vector<8x8xf32>
    %40 = arith.subf %36, %39 : vector<8x8xf32>
    %41 = math.exp %40 : vector<8x8xf32>
    %cst_14 = arith.constant dense<0.000000e+00> : vector<8xf32>
    %42 = vector.multi_reduction <add>, %41, %cst_14 [1] : vector<8x8xf32> to vector<8xf32>
    %43 = vector.shape_cast %42 : vector<8xf32> to vector<8x1xf32>
    %44 = tpu.reciprocal %43 {approx = true} : vector<8x1xf32> -> vector<8x1xf32>
    %45 = vector.broadcast %44 : vector<8x1xf32> to vector<8x8xf32>
    %46 = arith.mulf %41, %45 : vector<8x8xf32>
    %47 = arith.truncf %46 : vector<8x8xf32> to vector<8x8xbf16>
    %cst_15 = arith.constant dense<0.000000e+00> : vector<8x16xf32>
    %48 = tpu.matmul %47, %31, %cst_15 {dimension_numbers = #tpu.dot_dimension_numbers<[1], [0], [0], [1], [0, 0, 1, 1], [], []>} : vector<8x8xbf16>, vector<8x16xbf16>, vector<8x16xf32> -> vector<8x16xf32>
    %49 = tpu.concatenate %28, %48 in 1 : vector<8x16xf32>, vector<8x16xf32> -> vector<8x32xf32>
    %50 = arith.truncf %49 : vector<8x32xf32> to vector<8x32xbf16>
    %c0_16 = arith.constant 0 : index
    %c0_17 = arith.constant 0 : index
    %c0_18 = arith.constant 0 : index
    %51 = vector.load %arg3[%c0_16, %c0_17, %c0_18] : memref<1x8x32xbf16, #tpu.memory_space<vmem>>, vector<1x8x32xbf16>
    %52 = vector.shape_cast %51 : vector<1x8x32xbf16> to vector<8x32xbf16>
    %53 = vector.shape_cast %50 : vector<8x32xbf16> to vector<1x8x32xbf16>
    tpu.vector_store %arg3[%c0_16, %c0_17, %c0_18], %53 {strides = array<i32>} : memref<1x8x32xbf16, #tpu.memory_space<vmem>>, vector<1x8x32xbf16>,
    return
  }
  func.func @transform_0(%arg0: i32) -> (i32, i32, i32) {
    %c0_i32 = arith.constant 0 : i32
    %c0_i32_0 = arith.constant 0 : i32
    %c0_i32_1 = arith.constant 0 : i32
    return %arg0, %c0_i32, %c0_i32_0 : i32, i32, i32
  }
  func.func @transform_1(%arg0: i32) -> (i32, i32, i32) {
    %c0_i32 = arith.constant 0 : i32
    %c0_i32_0 = arith.constant 0 : i32
    %c0_i32_1 = arith.constant 0 : i32
    return %arg0, %c0_i32, %c0_i32_0 : i32, i32, i32
  }
  func.func @transform_2(%arg0: i32) -> (i32, i32, i32) {
    %c0_i32 = arith.constant 0 : i32
    %c0_i32_0 = arith.constant 0 : i32
    %c0_i32_1 = arith.constant 0 : i32
    return %arg0, %c0_i32, %c0_i32_0 : i32, i32, i32
  }
}

module attributes {stable_mosaic.version = 11 : i64} {
  func.func @_ln_kernel(%arg0: i32, %arg1: memref<16x32xf32, #tpu.memory_space<vmem>>, %arg2: memref<1x32xf32, #tpu.memory_space<vmem>>, %arg3: memref<1x32xf32, #tpu.memory_space<vmem>>, %arg4: memref<16x32xf32, #tpu.memory_space<vmem>>) attributes {dimension_semantics = [#tpu.dimension_semantics<parallel>], iteration_bounds = array<i64: 1>, scalar_prefetch = 0 : i64, scratch_operands = 0 : i64, tpu.core_type = #tpu.core_type<tc>, window_params = [{transform_indices = @transform_0, window_bounds = array<i64: 16, 32>}, {pipeline_mode = #tpu.pipeline_mode<synchronous>, transform_indices = @transform_1, window_bounds = array<i64: 1, 32>}, {pipeline_mode = #tpu.pipeline_mode<synchronous>, transform_indices = @transform_2, window_bounds = array<i64: 1, 32>}, {transform_indices = @transform_3, window_bounds = array<i64: 16, 32>}]} {
    %c0 = arith.constant 0 : index
    %c0_0 = arith.constant 0 : index
    %0 = vector.load %arg1[%c0, %c0_0] : memref<16x32xf32, #tpu.memory_space<vmem>>, vector<16x32xf32>
    %c0_1 = arith.constant 0 : index
    %c0_2 = arith.constant 0 : index
    %1 = vector.load %arg2[%c0_1, %c0_2] : memref<1x32xf32, #tpu.memory_space<vmem>>, vector<1x32xf32>
    %c0_3 = arith.constant 0 : index
    %c0_4 = arith.constant 0 : index
    %2 = vector.load %arg3[%c0_3, %c0_4] : memref<1x32xf32, #tpu.memory_space<vmem>>, vector<1x32xf32>
    %cst = arith.constant dense<0.000000e+00> : vector<16xf32>
    %3 = vector.multi_reduction <add>, %0, %cst [1] : vector<16x32xf32> to vector<16xf32>
    %4 = vector.shape_cast %3 : vector<16xf32> to vector<16x1xf32>
    %cst_5 = arith.constant 3.200000e+01 : f32
    %5 = vector.broadcast %cst_5 : f32 to vector<16x1xf32>
    %6 = arith.divf %4, %5 : vector<16x1xf32>
    %7 = vector.broadcast %6 : vector<16x1xf32> to vector<16x32xf32>
    %8 = arith.subf %0, %7 : vector<16x32xf32>
    %9 = arith.mulf %8, %8 : vector<16x32xf32>
    %cst_6 = arith.constant dense<0.000000e+00> : vector<16xf32>
    %10 = vector.multi_reduction <add>, %9, %cst_6 [1] : vector<16x32xf32> to vector<16xf32>
    %11 = vector.shape_cast %10 : vector<16xf32> to vector<16x1xf32>
    %cst_7 = arith.constant 3.200000e+01 : f32
    %12 = vector.broadcast %cst_7 : f32 to vector<16x1xf32>
    %13 = arith.divf %11, %12 : vector<16x1xf32>
    %14 = vector.broadcast %6 : vector<16x1xf32> to vector<16x32xf32>
    %15 = arith.subf %0, %14 : vector<16x32xf32>
    %cst_8 = arith.constant 9.99999993E-9 : f32
    %16 = vector.broadcast %cst_8 : f32 to vector<16x1xf32>
    %17 = arith.addf %13, %16 : vector<16x1xf32>
    %18 = math.rsqrt %17 : vector<16x1xf32>
    %19 = vector.broadcast %18 : vector<16x1xf32> to vector<16x32xf32>
    %20 = arith.mulf %15, %19 : vector<16x32xf32>
    %21 = vector.broadcast %1 : vector<1x32xf32> to vector<16x32xf32>
    %22 = arith.mulf %20, %21 : vector<16x32xf32>
    %23 = vector.broadcast %2 : vector<1x32xf32> to vector<16x32xf32>
    %24 = arith.addf %22, %23 : vector<16x32xf32>
    %c0_9 = arith.constant 0 : index
    %c0_10 = arith.constant 0 : index
    %25 = vector.load %arg4[%c0_9, %c0_10] : memref<16x32xf32, #tpu.memory_space<vmem>>, vector<16x32xf32>
    tpu.vector_store %arg4[%c0_9, %c0_10], %24 {strides = array<i32>} : memref<16x32xf32, #tpu.memory_space<vmem>>, vector<16x32xf32>,
    return
  }
  func.func @transform_0(%arg0: i32) -> (i32, i32) {
    %c0_i32 = arith.constant 0 : i32
    %c0_i32_0 = arith.constant 0 : i32
    return %arg0, %c0_i32 : i32, i32
  }
  func.func @transform_1(%arg0: i32) -> (i32, i32) {
    %c0_i32 = arith.constant 0 : i32
    %c0_i32_0 = arith.constant 0 : i32
    %c0_i32_1 = arith.constant 0 : i32
    return %c0_i32, %c0_i32_0 : i32, i32
  }
  func.func @transform_2(%arg0: i32) -> (i32, i32) {
    %c0_i32 = arith.constant 0 : i32
    %c0_i32_0 = arith.constant 0 : i32
    %c0_i32_1 = arith.constant 0 : i32
    return %c0_i32, %c0_i32_0 : i32, i32
  }
  func.func @transform_3(%arg0: i32) -> (i32, i32) {
    %c0_i32 = arith.constant 0 : i32
    %c0_i32_0 = arith.constant 0 : i32
    return %arg0, %c0_i32 : i32, i32
  }
}

module attributes {stable_mosaic.version = 11 : i64} {
  func.func @_linear_kernel(%arg0: i32, %arg1: memref<16x32xf32, #tpu.memory_space<vmem>>, %arg2: memref<32x96xbf16, #tpu.memory_space<vmem>>, %arg3: memref<1x96xf32, #tpu.memory_space<vmem>>, %arg4: memref<16x96xbf16, #tpu.memory_space<vmem>>) attributes {dimension_semantics = [#tpu.dimension_semantics<parallel>], iteration_bounds = array<i64: 1>, scalar_prefetch = 0 : i64, scratch_operands = 0 : i64, tpu.core_type = #tpu.core_type<tc>, window_params = [{transform_indices = @transform_0, window_bounds = array<i64: 16, 32>}, {pipeline_mode = #tpu.pipeline_mode<synchronous>, transform_indices = @transform_1, window_bounds = array<i64: 32, 96>}, {pipeline_mode = #tpu.pipeline_mode<synchronous>, transform_indices = @transform_2, window_bounds = array<i64: 1, 96>}, {transform_indices = @transform_3, window_bounds = array<i64: 16, 96>}]} {
    %c0 = arith.constant 0 : index
    %c0_0 = arith.constant 0 : index
    %0 = vector.load %arg1[%c0, %c0_0] : memref<16x32xf32, #tpu.memory_space<vmem>>, vector<16x32xf32>
    %1 = arith.truncf %0 : vector<16x32xf32> to vector<16x32xbf16>
    %c0_1 = arith.constant 0 : index
    %c0_2 = arith.constant 0 : index
    %2 = vector.load %arg2[%c0_1, %c0_2] : memref<32x96xbf16, #tpu.memory_space<vmem>>, vector<32x96xbf16>
    %cst = arith.constant dense<0.000000e+00> : vector<16x96xf32>
    %3 = tpu.matmul %1, %2, %cst {dimension_numbers = #tpu.dot_dimension_numbers<[1], [0], [0], [1], [0, 0, 1, 1], [], []>} : vector<16x32xbf16>, vector<32x96xbf16>, vector<16x96xf32> -> vector<16x96xf32>
    %c0_3 = arith.constant 0 : index
    %c0_4 = arith.constant 0 : index
    %4 = vector.load %arg3[%c0_3, %c0_4] : memref<1x96xf32, #tpu.memory_space<vmem>>, vector<1x96xf32>
    %5 = vector.broadcast %4 : vector<1x96xf32> to vector<16x96xf32>
    %6 = arith.addf %3, %5 : vector<16x96xf32>
    %7 = arith.truncf %6 : vector<16x96xf32> to vector<16x96xbf16>
    %c0_5 = arith.constant 0 : index
    %c0_6 = arith.constant 0 : index
    %8 = vector.load %arg4[%c0_5, %c0_6] : memref<16x96xbf16, #tpu.memory_space<vmem>>, vector<16x96xbf16>
    tpu.vector_store %arg4[%c0_5, %c0_6], %7 {strides = array<i32>} : memref<16x96xbf16, #tpu.memory_space<vmem>>, vector<16x96xbf16>,
    return
  }
  func.func @transform_0(%arg0: i32) -> (i32, i32) {
    %c0_i32 = arith.constant 0 : i32
    %c0_i32_0 = arith.constant 0 : i32
    return %arg0, %c0_i32 : i32, i32
  }
  func.func @transform_1(%arg0: i32) -> (i32, i32) {
    %c0_i32 = arith.constant 0 : i32
    %c0_i32_0 = arith.constant 0 : i32
    %c0_i32_1 = arith.constant 0 : i32
    return %c0_i32, %c0_i32_0 : i32, i32
  }
  func.func @transform_2(%arg0: i32) -> (i32, i32) {
    %c0_i32 = arith.constant 0 : i32
    %c0_i32_0 = arith.constant 0 : i32
    %c0_i32_1 = arith.constant 0 : i32
    return %c0_i32, %c0_i32_0 : i32, i32
  }
  func.func @transform_3(%arg0: i32) -> (i32, i32) {
    %c0_i32 = arith.constant 0 : i32
    %c0_i32_0 = arith.constant 0 : i32
    return %arg0, %c0_i32 : i32, i32
  }
}

module attributes {stable_mosaic.version = 11 : i64} {
  func.func @_linear_res_ln_kernel(%arg0: i32, %arg1: memref<16x32xbf16, #tpu.memory_space<vmem>>, %arg2: memref<32x32xbf16, #tpu.memory_space<vmem>>, %arg3: memref<1x32xf32, #tpu.memory_space<vmem>>, %arg4: memref<16x32xf32, #tpu.memory_space<vmem>>, %arg5: memref<1x32xf32, #tpu.memory_space<vmem>>, %arg6: memref<1x32xf32, #tpu.memory_space<vmem>>, %arg7: memref<16x32xf32, #tpu.memory_space<vmem>>) attributes {dimension_semantics = [#tpu.dimension_semantics<parallel>], iteration_bounds = array<i64: 1>, scalar_prefetch = 0 : i64, scratch_operands = 0 : i64, tpu.core_type = #tpu.core_type<tc>, window_params = [{transform_indices = @transform_0, window_bounds = array<i64: 16, 32>}, {pipeline_mode = #tpu.pipeline_mode<synchronous>, transform_indices = @transform_1, window_bounds = array<i64: 32, 32>}, {pipeline_mode = #tpu.pipeline_mode<synchronous>, transform_indices = @transform_2, window_bounds = array<i64: 1, 32>}, {transform_indices = @transform_3, window_bounds = array<i64: 16, 32>}, {pipeline_mode = #tpu.pipeline_mode<synchronous>, transform_indices = @transform_4, window_bounds = array<i64: 1, 32>}, {pipeline_mode = #tpu.pipeline_mode<synchronous>, transform_indices = @transform_5, window_bounds = array<i64: 1, 32>}, {transform_indices = @transform_6, window_bounds = array<i64: 16, 32>}]} {
    %c0 = arith.constant 0 : index
    %c0_0 = arith.constant 0 : index
    %0 = vector.load %arg1[%c0, %c0_0] : memref<16x32xbf16, #tpu.memory_space<vmem>>, vector<16x32xbf16>
    %c0_1 = arith.constant 0 : index
    %c0_2 = arith.constant 0 : index
    %1 = vector.load %arg2[%c0_1, %c0_2] : memref<32x32xbf16, #tpu.memory_space<vmem>>, vector<32x32xbf16>
    %cst = arith.constant dense<0.000000e+00> : vector<16x32xf32>
    %2 = tpu.matmul %0, %1, %cst {dimension_numbers = #tpu.dot_dimension_numbers<[1], [0], [0], [1], [0, 0, 1, 1], [], []>} : vector<16x32xbf16>, vector<32x32xbf16>, vector<16x32xf32> -> vector<16x32xf32>
    %c0_3 = arith.constant 0 : index
    %c0_4 = arith.constant 0 : index
    %3 = vector.load %arg3[%c0_3, %c0_4] : memref<1x32xf32, #tpu.memory_space<vmem>>, vector<1x32xf32>
    %4 = vector.broadcast %3 : vector<1x32xf32> to vector<16x32xf32>
    %5 = arith.addf %2, %4 : vector<16x32xf32>
    %c0_5 = arith.constant 0 : index
    %c0_6 = arith.constant 0 : index
    %6 = vector.load %arg4[%c0_5, %c0_6] : memref<16x32xf32, #tpu.memory_space<vmem>>, vector<16x32xf32>
    %7 = arith.addf %5, %6 : vector<16x32xf32>
    %c0_7 = arith.constant 0 : index
    %c0_8 = arith.constant 0 : index
    %8 = vector.load %arg5[%c0_7, %c0_8] : memref<1x32xf32, #tpu.memory_space<vmem>>, vector<1x32xf32>
    %c0_9 = arith.constant 0 : index
    %c0_10 = arith.constant 0 : index
    %9 = vector.load %arg6[%c0_9, %c0_10] : memref<1x32xf32, #tpu.memory_space<vmem>>, vector<1x32xf32>
    %cst_11 = arith.constant dense<0.000000e+00> : vector<16xf32>
    %10 = vector.multi_reduction <add>, %7, %cst_11 [1] : vector<16x32xf32> to vector<16xf32>
    %11 = vector.shape_cast %10 : vector<16xf32> to vector<16x1xf32>
    %cst_12 = arith.constant 3.200000e+01 : f32
    %12 = vector.broadcast %cst_12 : f32 to vector<16x1xf32>
    %13 = arith.divf %11, %12 : vector<16x1xf32>
    %14 = vector.broadcast %13 : vector<16x1xf32> to vector<16x32xf32>
    %15 = arith.subf %7, %14 : vector<16x32xf32>
    %16 = arith.mulf %15, %15 : vector<16x32xf32>
    %cst_13 = arith.constant dense<0.000000e+00> : vector<16xf32>
    %17 = vector.multi_reduction <add>, %16, %cst_13 [1] : vector<16x32xf32> to vector<16xf32>
    %18 = vector.shape_cast %17 : vector<16xf32> to vector<16x1xf32>
    %cst_14 = arith.constant 3.200000e+01 : f32
    %19 = vector.broadcast %cst_14 : f32 to vector<16x1xf32>
    %20 = arith.divf %18, %19 : vector<16x1xf32>
    %21 = vector.broadcast %13 : vector<16x1xf32> to vector<16x32xf32>
    %22 = arith.subf %7, %21 : vector<16x32xf32>
    %cst_15 = arith.constant 9.99999974E-6 : f32
    %23 = vector.broadcast %cst_15 : f32 to vector<16x1xf32>
    %24 = arith.addf %20, %23 : vector<16x1xf32>
    %25 = math.rsqrt %24 : vector<16x1xf32>
    %26 = vector.broadcast %25 : vector<16x1xf32> to vector<16x32xf32>
    %27 = arith.mulf %22, %26 : vector<16x32xf32>
    %28 = vector.broadcast %8 : vector<1x32xf32> to vector<16x32xf32>
    %29 = arith.mulf %27, %28 : vector<16x32xf32>
    %30 = vector.broadcast %9 : vector<1x32xf32> to vector<16x32xf32>
    %31 = arith.addf %29, %30 : vector<16x32xf32>
    %c0_16 = arith.constant 0 : index
    %c0_17 = arith.constant 0 : index
    %32 = vector.load %arg7[%c0_16, %c0_17] : memref<16x32xf32, #tpu.memory_space<vmem>>, vector<16x32xf32>
    tpu.vector_store %arg7[%c0_16, %c0_17], %31 {strides = array<i32>} : memref<16x32xf32, #tpu.memory_space<vmem>>, vector<16x32xf32>,
    return
  }
  func.func @transform_0(%arg0: i32) -> (i32, i32) {
    %c0_i32 = arith.constant 0 : i32
    %c0_i32_0 = arith.constant 0 : i32
    return %arg0, %c0_i32 : i32, i32
  }
  func.func @transform_1(%arg0: i32) -> (i32, i32) {
    %c0_i32 = arith.constant 0 : i32
    %c0_i32_0 = arith.constant 0 : i32
    %c0_i32_1 = arith.constant 0 : i32
    return %c0_i32, %c0_i32_0 : i32, i32
  }
  func.func @transform_2(%arg0: i32) -> (i32, i32) {
    %c0_i32 = arith.constant 0 : i32
    %c0_i32_0 = arith.constant 0 : i32
    %c0_i32_1 = arith.constant 0 : i32
    return %c0_i32, %c0_i32_0 : i32, i32
  }
  func.func @transform_3(%arg0: i32) -> (i32, i32) {
    %c0_i32 = arith.constant 0 : i32
    %c0_i32_0 = arith.constant 0 : i32
    return %arg0, %c0_i32 : i32, i32
  }
  func.func @transform_4(%arg0: i32) -> (i32, i32) {
    %c0_i32 = arith.constant 0 : i32
    %c0_i32_0 = arith.constant 0 : i32
    %c0_i32_1 = arith.constant 0 : i32
    return %c0_i32, %c0_i32_0 : i32, i32
  }
  func.func @transform_5(%arg0: i32) -> (i32, i32) {
    %c0_i32 = arith.constant 0 : i32
    %c0_i32_0 = arith.constant 0 : i32
    %c0_i32_1 = arith.constant 0 : i32
    return %c0_i32, %c0_i32_0 : i32, i32
  }
  func.func @transform_6(%arg0: i32) -> (i32, i32) {
    %c0_i32 = arith.constant 0 : i32
    %c0_i32_0 = arith.constant 0 : i32
    return %arg0, %c0_i32 : i32, i32
  }
}

module attributes {stable_mosaic.version = 11 : i64} {
  func.func @_attn_packed_kernel(%arg0: i32, %arg1: memref<1x8x96xbf16, #tpu.memory_space<vmem>>, %arg2: memref<1x8x32xbf16, #tpu.memory_space<vmem>>) attributes {dimension_semantics = [#tpu.dimension_semantics<parallel>], iteration_bounds = array<i64: 2>, scalar_prefetch = 0 : i64, scratch_operands = 0 : i64, tpu.core_type = #tpu.core_type<tc>, window_params = [{transform_indices = @transform_0, window_bounds = array<i64: 1, 8, 96>}, {transform_indices = @transform_1, window_bounds = array<i64: 1, 8, 32>}]} {
    %c0 = arith.constant 0 : index
    %c0_0 = arith.constant 0 : index
    %c0_1 = arith.constant 0 : index
    %0 = vector.load %arg1[%c0, %c0_0, %c0_1] : memref<1x8x96xbf16, #tpu.memory_space<vmem>>, vector<1x8x96xbf16>
    %1 = vector.shape_cast %0 : vector<1x8x96xbf16> to vector<8x96xbf16>
    %2 = vector.extract_strided_slice %1 {offsets = [0, 0], sizes = [8, 32], strides = [1, 1]} : vector<8x96xbf16> to vector<8x32xbf16>
    %3 = vector.extract_strided_slice %1 {offsets = [0, 32], sizes = [8, 32], strides = [1, 1]} : vector<8x96xbf16> to vector<8x32xbf16>
    %4 = vector.extract_strided_slice %1 {offsets = [0, 64], sizes = [8, 32], strides = [1, 1]} : vector<8x96xbf16> to vector<8x32xbf16>
    %5 = vector.extract_strided_slice %2 {offsets = [0, 0], sizes = [8, 16], strides = [1, 1]} : vector<8x32xbf16> to vector<8x16xbf16>
    %6 = vector.extract_strided_slice %3 {offsets = [0, 0], sizes = [8, 16], strides = [1, 1]} : vector<8x32xbf16> to vector<8x16xbf16>
    %7 = vector.extract_strided_slice %4 {offsets = [0, 0], sizes = [8, 16], strides = [1, 1]} : vector<8x32xbf16> to vector<8x16xbf16>
    %cst = arith.constant dense<0.000000e+00> : vector<8x8xf32>
    %8 = tpu.matmul %5, %6, %cst {dimension_numbers = #tpu.dot_dimension_numbers<[1], [1], [0], [0], [0, 0, 1, 0], [], []>} : vector<8x16xbf16>, vector<8x16xbf16>, vector<8x8xf32> -> vector<8x8xf32>
    %cst_2 = arith.constant 2.500000e-01 : f32
    %9 = vector.broadcast %cst_2 : f32 to vector<8x8xf32>
    %10 = arith.mulf %8, %9 : vector<8x8xf32>
    %cst_3 = arith.constant dense<0xFF800000> : vector<8xf32>
    %11 = vector.multi_reduction <maximumf>, %10, %cst_3 [1] : vector<8x8xf32> to vector<8xf32>
    %12 = vector.shape_cast %11 : vector<8xf32> to vector<8x1xf32>
    %13 = vector.broadcast %12 : vector<8x1xf32> to vector<8x8xf32>
    %14 = arith.subf %10, %13 : vector<8x8xf32>
    %15 = math.exp %14 : vector<8x8xf32>
    %cst_4 = arith.constant dense<0.000000e+00> : vector<8xf32>
    %16 = vector.multi_reduction <add>, %15, %cst_4 [1] : vector<8x8xf32> to vector<8xf32>
    %17 = vector.shape_cast %16 : vector<8xf32> to vector<8x1xf32>
    %18 = tpu.reciprocal %17 {approx = true} : vector<8x1xf32> -> vector<8x1xf32>
    %19 = vector.broadcast %18 : vector<8x1xf32> to vector<8x8xf32>
    %20 = arith.mulf %15, %19 : vector<8x8xf32>
    %21 = arith.truncf %20 : vector<8x8xf32> to vector<8x8xbf16>
    %cst_5 = arith.constant dense<0.000000e+00> : vector<8x16xf32>
    %22 = tpu.matmul %21, %7, %cst_5 {dimension_numbers = #tpu.dot_dimension_numbers<[1], [0], [0], [1], [0, 0, 1, 1], [], []>} : vector<8x8xbf16>, vector<8x16xbf16>, vector<8x16xf32> -> vector<8x16xf32>
    %23 = vector.extract_strided_slice %2 {offsets = [0, 16], sizes = [8, 16], strides = [1, 1]} : vector<8x32xbf16> to vector<8x16xbf16>
    %24 = vector.extract_strided_slice %3 {offsets = [0, 16], sizes = [8, 16], strides = [1, 1]} : vector<8x32xbf16> to vector<8x16xbf16>
    %25 = vector.extract_strided_slice %4 {offsets = [0, 16], sizes = [8, 16], strides = [1, 1]} : vector<8x32xbf16> to vector<8x16xbf16>
    %cst_6 = arith.constant dense<0.000000e+00> : vector<8x8xf32>
    %26 = tpu.matmul %23, %24, %cst_6 {dimension_numbers = #tpu.dot_dimension_numbers<[1], [1], [0], [0], [0, 0, 1, 0], [], []>} : vector<8x16xbf16>, vector<8x16xbf16>, vector<8x8xf32> -> vector<8x8xf32>
    %cst_7 = arith.constant 2.500000e-01 : f32
    %27 = vector.broadcast %cst_7 : f32 to vector<8x8xf32>
    %28 = arith.mulf %26, %27 : vector<8x8xf32>
    %cst_8 = arith.constant dense<0xFF800000> : vector<8xf32>
    %29 = vector.multi_reduction <maximumf>, %28, %cst_8 [1] : vector<8x8xf32> to vector<8xf32>
    %30 = vector.shape_cast %29 : vector<8xf32> to vector<8x1xf32>
    %31 = vector.broadcast %30 : vector<8x1xf32> to vector<8x8xf32>
    %32 = arith.subf %28, %31 : vector<8x8xf32>
    %33 = math.exp %32 : vector<8x8xf32>
    %cst_9 = arith.constant dense<0.000000e+00> : vector<8xf32>
    %34 = vector.multi_reduction <add>, %33, %cst_9 [1] : vector<8x8xf32> to vector<8xf32>
    %35 = vector.shape_cast %34 : vector<8xf32> to vector<8x1xf32>
    %36 = tpu.reciprocal %35 {approx = true} : vector<8x1xf32> -> vector<8x1xf32>
    %37 = vector.broadcast %36 : vector<8x1xf32> to vector<8x8xf32>
    %38 = arith.mulf %33, %37 : vector<8x8xf32>
    %39 = arith.truncf %38 : vector<8x8xf32> to vector<8x8xbf16>
    %cst_10 = arith.constant dense<0.000000e+00> : vector<8x16xf32>
    %40 = tpu.matmul %39, %25, %cst_10 {dimension_numbers = #tpu.dot_dimension_numbers<[1], [0], [0], [1], [0, 0, 1, 1], [], []>} : vector<8x8xbf16>, vector<8x16xbf16>, vector<8x16xf32> -> vector<8x16xf32>
    %41 = tpu.concatenate %22, %40 in 1 : vector<8x16xf32>, vector<8x16xf32> -> vector<8x32xf32>
    %42 = arith.truncf %41 : vector<8x32xf32> to vector<8x32xbf16>
    %c0_11 = arith.constant 0 : index
    %c0_12 = arith.constant 0 : index
    %c0_13 = arith.constant 0 : index
    %43 = vector.load %arg2[%c0_11, %c0_12, %c0_13] : memref<1x8x32xbf16, #tpu.memory_space<vmem>>, vector<1x8x32xbf16>
    %44 = vector.shape_cast %43 : vector<1x8x32xbf16> to vector<8x32xbf16>
    %45 = vector.shape_cast %42 : vector<8x32xbf16> to vector<1x8x32xbf16>
    tpu.vector_store %arg2[%c0_11, %c0_12, %c0_13], %45 {strides = array<i32>} : memref<1x8x32xbf16, #tpu.memory_space<vmem>>, vector<1x8x32xbf16>,
    return
  }
  func.func @transform_0(%arg0: i32) -> (i32, i32, i32) {
    %c0_i32 = arith.constant 0 : i32
    %c0_i32_0 = arith.constant 0 : i32
    %c0_i32_1 = arith.constant 0 : i32
    return %arg0, %c0_i32, %c0_i32_0 : i32, i32, i32
  }
  func.func @transform_1(%arg0: i32) -> (i32, i32, i32) {
    %c0_i32 = arith.constant 0 : i32
    %c0_i32_0 = arith.constant 0 : i32
    %c0_i32_1 = arith.constant 0 : i32
    return %arg0, %c0_i32, %c0_i32_0 : i32, i32, i32
  }
}

module attributes {stable_mosaic.version = 11 : i64} {
  func.func @_linear_kernel(%arg0: i32, %arg1: memref<16x32xf32, #tpu.memory_space<vmem>>, %arg2: memref<32x32xbf16, #tpu.memory_space<vmem>>, %arg3: memref<1x32xf32, #tpu.memory_space<vmem>>, %arg4: memref<16x32xbf16, #tpu.memory_space<vmem>>) attributes {dimension_semantics = [#tpu.dimension_semantics<parallel>], iteration_bounds = array<i64: 1>, scalar_prefetch = 0 : i64, scratch_operands = 0 : i64, tpu.core_type = #tpu.core_type<tc>, window_params = [{transform_indices = @transform_0, window_bounds = array<i64: 16, 32>}, {pipeline_mode = #tpu.pipeline_mode<synchronous>, transform_indices = @transform_1, window_bounds = array<i64: 32, 32>}, {pipeline_mode = #tpu.pipeline_mode<synchronous>, transform_indices = @transform_2, window_bounds = array<i64: 1, 32>}, {transform_indices = @transform_3, window_bounds = array<i64: 16, 32>}]} {
    %c0 = arith.constant 0 : index
    %c0_0 = arith.constant 0 : index
    %0 = vector.load %arg1[%c0, %c0_0] : memref<16x32xf32, #tpu.memory_space<vmem>>, vector<16x32xf32>
    %1 = arith.truncf %0 : vector<16x32xf32> to vector<16x32xbf16>
    %c0_1 = arith.constant 0 : index
    %c0_2 = arith.constant 0 : index
    %2 = vector.load %arg2[%c0_1, %c0_2] : memref<32x32xbf16, #tpu.memory_space<vmem>>, vector<32x32xbf16>
    %cst = arith.constant dense<0.000000e+00> : vector<16x32xf32>
    %3 = tpu.matmul %1, %2, %cst {dimension_numbers = #tpu.dot_dimension_numbers<[1], [0], [0], [1], [0, 0, 1, 1], [], []>} : vector<16x32xbf16>, vector<32x32xbf16>, vector<16x32xf32> -> vector<16x32xf32>
    %c0_3 = arith.constant 0 : index
    %c0_4 = arith.constant 0 : index
    %4 = vector.load %arg3[%c0_3, %c0_4] : memref<1x32xf32, #tpu.memory_space<vmem>>, vector<1x32xf32>
    %5 = vector.broadcast %4 : vector<1x32xf32> to vector<16x32xf32>
    %6 = arith.addf %3, %5 : vector<16x32xf32>
    %7 = arith.truncf %6 : vector<16x32xf32> to vector<16x32xbf16>
    %c0_5 = arith.constant 0 : index
    %c0_6 = arith.constant 0 : index
    %8 = vector.load %arg4[%c0_5, %c0_6] : memref<16x32xbf16, #tpu.memory_space<vmem>>, vector<16x32xbf16>
    tpu.vector_store %arg4[%c0_5, %c0_6], %7 {strides = array<i32>} : memref<16x32xbf16, #tpu.memory_space<vmem>>, vector<16x32xbf16>,
    return
  }
  func.func @transform_0(%arg0: i32) -> (i32, i32) {
    %c0_i32 = arith.constant 0 : i32
    %c0_i32_0 = arith.constant 0 : i32
    return %arg0, %c0_i32 : i32, i32
  }
  func.func @transform_1(%arg0: i32) -> (i32, i32) {
    %c0_i32 = arith.constant 0 : i32
    %c0_i32_0 = arith.constant 0 : i32
    %c0_i32_1 = arith.constant 0 : i32
    return %c0_i32, %c0_i32_0 : i32, i32
  }
  func.func @transform_2(%arg0: i32) -> (i32, i32) {
    %c0_i32 = arith.constant 0 : i32
    %c0_i32_0 = arith.constant 0 : i32
    %c0_i32_1 = arith.constant 0 : i32
    return %c0_i32, %c0_i32_0 : i32, i32
  }
  func.func @transform_3(%arg0: i32) -> (i32, i32) {
    %c0_i32 = arith.constant 0 : i32
    %c0_i32_0 = arith.constant 0 : i32
    return %arg0, %c0_i32 : i32, i32
  }
}

module attributes {stable_mosaic.version = 11 : i64} {
  func.func @_linear_kernel(%arg0: i32, %arg1: memref<8x32xf32, #tpu.memory_space<vmem>>, %arg2: memref<32x64xbf16, #tpu.memory_space<vmem>>, %arg3: memref<1x64xf32, #tpu.memory_space<vmem>>, %arg4: memref<8x64xbf16, #tpu.memory_space<vmem>>) attributes {dimension_semantics = [#tpu.dimension_semantics<parallel>], iteration_bounds = array<i64: 1>, scalar_prefetch = 0 : i64, scratch_operands = 0 : i64, tpu.core_type = #tpu.core_type<tc>, window_params = [{transform_indices = @transform_0, window_bounds = array<i64: 8, 32>}, {pipeline_mode = #tpu.pipeline_mode<synchronous>, transform_indices = @transform_1, window_bounds = array<i64: 32, 64>}, {pipeline_mode = #tpu.pipeline_mode<synchronous>, transform_indices = @transform_2, window_bounds = array<i64: 1, 64>}, {transform_indices = @transform_3, window_bounds = array<i64: 8, 64>}]} {
    %c0 = arith.constant 0 : index
    %c0_0 = arith.constant 0 : index
    %0 = vector.load %arg1[%c0, %c0_0] : memref<8x32xf32, #tpu.memory_space<vmem>>, vector<8x32xf32>
    %1 = arith.truncf %0 : vector<8x32xf32> to vector<8x32xbf16>
    %c0_1 = arith.constant 0 : index
    %c0_2 = arith.constant 0 : index
    %2 = vector.load %arg2[%c0_1, %c0_2] : memref<32x64xbf16, #tpu.memory_space<vmem>>, vector<32x64xbf16>
    %cst = arith.constant dense<0.000000e+00> : vector<8x64xf32>
    %3 = tpu.matmul %1, %2, %cst {dimension_numbers = #tpu.dot_dimension_numbers<[1], [0], [0], [1], [0, 0, 1, 1], [], []>} : vector<8x32xbf16>, vector<32x64xbf16>, vector<8x64xf32> -> vector<8x64xf32>
    %c0_3 = arith.constant 0 : index
    %c0_4 = arith.constant 0 : index
    %4 = vector.load %arg3[%c0_3, %c0_4] : memref<1x64xf32, #tpu.memory_space<vmem>>, vector<1x64xf32>
    %5 = vector.broadcast %4 : vector<1x64xf32> to vector<8x64xf32>
    %6 = arith.addf %3, %5 : vector<8x64xf32>
    %7 = arith.truncf %6 : vector<8x64xf32> to vector<8x64xbf16>
    %c0_5 = arith.constant 0 : index
    %c0_6 = arith.constant 0 : index
    %8 = vector.load %arg4[%c0_5, %c0_6] : memref<8x64xbf16, #tpu.memory_space<vmem>>, vector<8x64xbf16>
    tpu.vector_store %arg4[%c0_5, %c0_6], %7 {strides = array<i32>} : memref<8x64xbf16, #tpu.memory_space<vmem>>, vector<8x64xbf16>,
    return
  }
  func.func @transform_0(%arg0: i32) -> (i32, i32) {
    %c0_i32 = arith.constant 0 : i32
    %c0_i32_0 = arith.constant 0 : i32
    return %arg0, %c0_i32 : i32, i32
  }
  func.func @transform_1(%arg0: i32) -> (i32, i32) {
    %c0_i32 = arith.constant 0 : i32
    %c0_i32_0 = arith.constant 0 : i32
    %c0_i32_1 = arith.constant 0 : i32
    return %c0_i32, %c0_i32_0 : i32, i32
  }
  func.func @transform_2(%arg0: i32) -> (i32, i32) {
    %c0_i32 = arith.constant 0 : i32
    %c0_i32_0 = arith.constant 0 : i32
    %c0_i32_1 = arith.constant 0 : i32
    return %c0_i32, %c0_i32_0 : i32, i32
  }
  func.func @transform_3(%arg0: i32) -> (i32, i32) {
    %c0_i32 = arith.constant 0 : i32
    %c0_i32_0 = arith.constant 0 : i32
    return %arg0, %c0_i32 : i32, i32
  }
}

module attributes {stable_mosaic.version = 11 : i64} {
  func.func @_attn_kernel(%arg0: i32, %arg1: memref<1x8x32xbf16, #tpu.memory_space<vmem>>, %arg2: memref<1x4x64xbf16, #tpu.memory_space<vmem>>, %arg3: memref<1x8x32xbf16, #tpu.memory_space<vmem>>) attributes {dimension_semantics = [#tpu.dimension_semantics<parallel>], iteration_bounds = array<i64: 2>, scalar_prefetch = 0 : i64, scratch_operands = 0 : i64, tpu.core_type = #tpu.core_type<tc>, window_params = [{transform_indices = @transform_0, window_bounds = array<i64: 1, 8, 32>}, {transform_indices = @transform_1, window_bounds = array<i64: 1, 4, 64>}, {transform_indices = @transform_2, window_bounds = array<i64: 1, 8, 32>}]} {
    %c0 = arith.constant 0 : index
    %c0_0 = arith.constant 0 : index
    %c0_1 = arith.constant 0 : index
    %0 = vector.load %arg1[%c0, %c0_0, %c0_1] : memref<1x8x32xbf16, #tpu.memory_space<vmem>>, vector<1x8x32xbf16>
    %1 = vector.shape_cast %0 : vector<1x8x32xbf16> to vector<8x32xbf16>
    %c0_2 = arith.constant 0 : index
    %c0_3 = arith.constant 0 : index
    %c0_4 = arith.constant 0 : index
    %2 = vector.load %arg2[%c0_2, %c0_3, %c0_4] : memref<1x4x64xbf16, #tpu.memory_space<vmem>>, vector<1x4x64xbf16>
    %3 = vector.shape_cast %2 : vector<1x4x64xbf16> to vector<4x64xbf16>
    %4 = vector.extract_strided_slice %3 {offsets = [0, 0], sizes = [4, 32], strides = [1, 1]} : vector<4x64xbf16> to vector<4x32xbf16>
    %5 = vector.extract_strided_slice %3 {offsets = [0, 32], sizes = [4, 32], strides = [1, 1]} : vector<4x64xbf16> to vector<4x32xbf16>
    %6 = vector.extract_strided_slice %1 {offsets = [0, 0], sizes = [8, 16], strides = [1, 1]} : vector<8x32xbf16> to vector<8x16xbf16>
    %7 = vector.extract_strided_slice %4 {offsets = [0, 0], sizes = [4, 16], strides = [1, 1]} : vector<4x32xbf16> to vector<4x16xbf16>
    %8 = vector.extract_strided_slice %5 {offsets = [0, 0], sizes = [4, 16], strides = [1, 1]} : vector<4x32xbf16> to vector<4x16xbf16>
    %cst = arith.constant dense<0.000000e+00> : vector<8x4xf32>
    %9 = tpu.matmul %6, %7, %cst {dimension_numbers = #tpu.dot_dimension_numbers<[1], [1], [0], [0], [0, 0, 1, 0], [], []>} : vector<8x16xbf16>, vector<4x16xbf16>, vector<8x4xf32> -> vector<8x4xf32>
    %cst_5 = arith.constant 2.500000e-01 : f32
    %10 = vector.broadcast %cst_5 : f32 to vector<8x4xf32>
    %11 = arith.mulf %9, %10 : vector<8x4xf32>
    %cst_6 = arith.constant dense<0xFF800000> : vector<8xf32>
    %12 = vector.multi_reduction <maximumf>, %11, %cst_6 [1] : vector<8x4xf32> to vector<8xf32>
    %13 = vector.shape_cast %12 : vector<8xf32> to vector<8x1xf32>
    %14 = vector.broadcast %13 : vector<8x1xf32> to vector<8x4xf32>
    %15 = arith.subf %11, %14 : vector<8x4xf32>
    %16 = math.exp %15 : vector<8x4xf32>
    %cst_7 = arith.constant dense<0.000000e+00> : vector<8xf32>
    %17 = vector.multi_reduction <add>, %16, %cst_7 [1] : vector<8x4xf32> to vector<8xf32>
    %18 = vector.shape_cast %17 : vector<8xf32> to vector<8x1xf32>
    %19 = tpu.reciprocal %18 {approx = true} : vector<8x1xf32> -> vector<8x1xf32>
    %20 = vector.broadcast %19 : vector<8x1xf32> to vector<8x4xf32>
    %21 = arith.mulf %16, %20 : vector<8x4xf32>
    %22 = arith.truncf %21 : vector<8x4xf32> to vector<8x4xbf16>
    %cst_8 = arith.constant dense<0.000000e+00> : vector<8x16xf32>
    %23 = tpu.matmul %22, %8, %cst_8 {dimension_numbers = #tpu.dot_dimension_numbers<[1], [0], [0], [1], [0, 0, 1, 1], [], []>} : vector<8x4xbf16>, vector<4x16xbf16>, vector<8x16xf32> -> vector<8x16xf32>
    %24 = vector.extract_strided_slice %1 {offsets = [0, 16], sizes = [8, 16], strides = [1, 1]} : vector<8x32xbf16> to vector<8x16xbf16>
    %25 = vector.extract_strided_slice %4 {offsets = [0, 16], sizes = [4, 16], strides = [1, 1]} : vector<4x32xbf16> to vector<4x16xbf16>
    %26 = vector.extract_strided_slice %5 {offsets = [0, 16], sizes = [4, 16], strides = [1, 1]} : vector<4x32xbf16> to vector<4x16xbf16>
    %cst_9 = arith.constant dense<0.000000e+00> : vector<8x4xf32>
    %27 = tpu.matmul %24, %25, %cst_9 {dimension_numbers = #tpu.dot_dimension_numbers<[1], [1], [0], [0], [0, 0, 1, 0], [], []>} : vector<8x16xbf16>, vector<4x16xbf16>, vector<8x4xf32> -> vector<8x4xf32>
    %cst_10 = arith.constant 2.500000e-01 : f32
    %28 = vector.broadcast %cst_10 : f32 to vector<8x4xf32>
    %29 = arith.mulf %27, %28 : vector<8x4xf32>
    %cst_11 = arith.constant dense<0xFF800000> : vector<8xf32>
    %30 = vector.multi_reduction <maximumf>, %29, %cst_11 [1] : vector<8x4xf32> to vector<8xf32>
    %31 = vector.shape_cast %30 : vector<8xf32> to vector<8x1xf32>
    %32 = vector.broadcast %31 : vector<8x1xf32> to vector<8x4xf32>
    %33 = arith.subf %29, %32 : vector<8x4xf32>
    %34 = math.exp %33 : vector<8x4xf32>
    %cst_12 = arith.constant dense<0.000000e+00> : vector<8xf32>
    %35 = vector.multi_reduction <add>, %34, %cst_12 [1] : vector<8x4xf32> to vector<8xf32>
    %36 = vector.shape_cast %35 : vector<8xf32> to vector<8x1xf32>
    %37 = tpu.reciprocal %36 {approx = true} : vector<8x1xf32> -> vector<8x1xf32>
    %38 = vector.broadcast %37 : vector<8x1xf32> to vector<8x4xf32>
    %39 = arith.mulf %34, %38 : vector<8x4xf32>
    %40 = arith.truncf %39 : vector<8x4xf32> to vector<8x4xbf16>
    %cst_13 = arith.constant dense<0.000000e+00> : vector<8x16xf32>
    %41 = tpu.matmul %40, %26, %cst_13 {dimension_numbers = #tpu.dot_dimension_numbers<[1], [0], [0], [1], [0, 0, 1, 1], [], []>} : vector<8x4xbf16>, vector<4x16xbf16>, vector<8x16xf32> -> vector<8x16xf32>
    %42 = tpu.concatenate %23, %41 in 1 : vector<8x16xf32>, vector<8x16xf32> -> vector<8x32xf32>
    %43 = arith.truncf %42 : vector<8x32xf32> to vector<8x32xbf16>
    %c0_14 = arith.constant 0 : index
    %c0_15 = arith.constant 0 : index
    %c0_16 = arith.constant 0 : index
    %44 = vector.load %arg3[%c0_14, %c0_15, %c0_16] : memref<1x8x32xbf16, #tpu.memory_space<vmem>>, vector<1x8x32xbf16>
    %45 = vector.shape_cast %44 : vector<1x8x32xbf16> to vector<8x32xbf16>
    %46 = vector.shape_cast %43 : vector<8x32xbf16> to vector<1x8x32xbf16>
    tpu.vector_store %arg3[%c0_14, %c0_15, %c0_16], %46 {strides = array<i32>} : memref<1x8x32xbf16, #tpu.memory_space<vmem>>, vector<1x8x32xbf16>,
    return
  }
  func.func @transform_0(%arg0: i32) -> (i32, i32, i32) {
    %c0_i32 = arith.constant 0 : i32
    %c0_i32_0 = arith.constant 0 : i32
    %c0_i32_1 = arith.constant 0 : i32
    return %arg0, %c0_i32, %c0_i32_0 : i32, i32, i32
  }
  func.func @transform_1(%arg0: i32) -> (i32, i32, i32) {
    %c0_i32 = arith.constant 0 : i32
    %c0_i32_0 = arith.constant 0 : i32
    %c0_i32_1 = arith.constant 0 : i32
    return %arg0, %c0_i32, %c0_i32_0 : i32, i32, i32
  }
  func.func @transform_2(%arg0: i32) -> (i32, i32, i32) {
    %c0_i32 = arith.constant 0 : i32
    %c0_i32_0 = arith.constant 0 : i32
    %c0_i32_1 = arith.constant 0 : i32
    return %arg0, %c0_i32, %c0_i32_0 : i32, i32, i32
  }
}

module attributes {stable_mosaic.version = 11 : i64} {
  func.func @_ffn_ln_kernel(%arg0: i32, %arg1: memref<16x32xf32, #tpu.memory_space<vmem>>, %arg2: memref<32x2048xbf16, #tpu.memory_space<vmem>>, %arg3: memref<1x2048xf32, #tpu.memory_space<vmem>>, %arg4: memref<2048x32xbf16, #tpu.memory_space<vmem>>, %arg5: memref<1x32xf32, #tpu.memory_space<vmem>>, %arg6: memref<1x32xf32, #tpu.memory_space<vmem>>, %arg7: memref<1x32xf32, #tpu.memory_space<vmem>>, %arg8: memref<16x32xf32, #tpu.memory_space<vmem>>) attributes {dimension_semantics = [#tpu.dimension_semantics<parallel>], iteration_bounds = array<i64: 1>, scalar_prefetch = 0 : i64, scratch_operands = 0 : i64, tpu.core_type = #tpu.core_type<tc>, window_params = [{transform_indices = @transform_0, window_bounds = array<i64: 16, 32>}, {pipeline_mode = #tpu.pipeline_mode<synchronous>, transform_indices = @transform_1, window_bounds = array<i64: 32, 2048>}, {pipeline_mode = #tpu.pipeline_mode<synchronous>, transform_indices = @transform_2, window_bounds = array<i64: 1, 2048>}, {pipeline_mode = #tpu.pipeline_mode<synchronous>, transform_indices = @transform_3, window_bounds = array<i64: 2048, 32>}, {pipeline_mode = #tpu.pipeline_mode<synchronous>, transform_indices = @transform_4, window_bounds = array<i64: 1, 32>}, {pipeline_mode = #tpu.pipeline_mode<synchronous>, transform_indices = @transform_5, window_bounds = array<i64: 1, 32>}, {pipeline_mode = #tpu.pipeline_mode<synchronous>, transform_indices = @transform_6, window_bounds = array<i64: 1, 32>}, {transform_indices = @transform_7, window_bounds = array<i64: 16, 32>}]} {
    %c0 = arith.constant 0 : index
    %c0_0 = arith.constant 0 : index
    %0 = vector.load %arg1[%c0, %c0_0] : memref<16x32xf32, #tpu.memory_space<vmem>>, vector<16x32xf32>
    %1 = arith.truncf %0 : vector<16x32xf32> to vector<16x32xbf16>
    %c0_1 = arith.constant 0 : index
    %c0_2 = arith.constant 0 : index
    %2 = vector.load %arg2[%c0_1, %c0_2] : memref<32x2048xbf16, #tpu.memory_space<vmem>>, vector<32x2048xbf16>
    %cst = arith.constant dense<0.000000e+00> : vector<16x2048xf32>
    %3 = tpu.matmul %1, %2, %cst {dimension_numbers = #tpu.dot_dimension_numbers<[1], [0], [0], [1], [0, 0, 1, 1], [], []>} : vector<16x32xbf16>, vector<32x2048xbf16>, vector<16x2048xf32> -> vector<16x2048xf32>
    %c0_3 = arith.constant 0 : index
    %c0_4 = arith.constant 0 : index
    %4 = vector.load %arg3[%c0_3, %c0_4] : memref<1x2048xf32, #tpu.memory_space<vmem>>, vector<1x2048xf32>
    %5 = vector.broadcast %4 : vector<1x2048xf32> to vector<16x2048xf32>
    %6 = arith.addf %3, %5 : vector<16x2048xf32>
    %cst_5 = arith.constant 0.000000e+00 : f32
    %7 = vector.broadcast %cst_5 : f32 to vector<16x2048xf32>
    %8 = arith.maximumf %6, %7 : vector<16x2048xf32>
    %9 = arith.truncf %8 : vector<16x2048xf32> to vector<16x2048xbf16>
    %c0_6 = arith.constant 0 : index
    %c0_7 = arith.constant 0 : index
    %10 = vector.load %arg4[%c0_6, %c0_7] : memref<2048x32xbf16, #tpu.memory_space<vmem>>, vector<2048x32xbf16>
    %cst_8 = arith.constant dense<0.000000e+00> : vector<16x32xf32>
    %11 = tpu.matmul %9, %10, %cst_8 {dimension_numbers = #tpu.dot_dimension_numbers<[1], [0], [0], [1], [0, 0, 1, 1], [], []>} : vector<16x2048xbf16>, vector<2048x32xbf16>, vector<16x32xf32> -> vector<16x32xf32>
    %c0_9 = arith.constant 0 : index
    %c0_10 = arith.constant 0 : index
    %12 = vector.load %arg5[%c0_9, %c0_10] : memref<1x32xf32, #tpu.memory_space<vmem>>, vector<1x32xf32>
    %13 = vector.broadcast %12 : vector<1x32xf32> to vector<16x32xf32>
    %14 = arith.addf %11, %13 : vector<16x32xf32>
    %15 = arith.addf %14, %0 : vector<16x32xf32>
    %c0_11 = arith.constant 0 : index
    %c0_12 = arith.constant 0 : index
    %16 = vector.load %arg6[%c0_11, %c0_12] : memref<1x32xf32, #tpu.memory_space<vmem>>, vector<1x32xf32>
    %c0_13 = arith.constant 0 : index
    %c0_14 = arith.constant 0 : index
    %17 = vector.load %arg7[%c0_13, %c0_14] : memref<1x32xf32, #tpu.memory_space<vmem>>, vector<1x32xf32>
    %cst_15 = arith.constant dense<0.000000e+00> : vector<16xf32>
    %18 = vector.multi_reduction <add>, %15, %cst_15 [1] : vector<16x32xf32> to vector<16xf32>
    %19 = vector.shape_cast %18 : vector<16xf32> to vector<16x1xf32>
    %cst_16 = arith.constant 3.200000e+01 : f32
    %20 = vector.broadcast %cst_16 : f32 to vector<16x1xf32>
    %21 = arith.divf %19, %20 : vector<16x1xf32>
    %22 = vector.broadcast %21 : vector<16x1xf32> to vector<16x32xf32>
    %23 = arith.subf %15, %22 : vector<16x32xf32>
    %24 = arith.mulf %23, %23 : vector<16x32xf32>
    %cst_17 = arith.constant dense<0.000000e+00> : vector<16xf32>
    %25 = vector.multi_reduction <add>, %24, %cst_17 [1] : vector<16x32xf32> to vector<16xf32>
    %26 = vector.shape_cast %25 : vector<16xf32> to vector<16x1xf32>
    %cst_18 = arith.constant 3.200000e+01 : f32
    %27 = vector.broadcast %cst_18 : f32 to vector<16x1xf32>
    %28 = arith.divf %26, %27 : vector<16x1xf32>
    %29 = vector.broadcast %21 : vector<16x1xf32> to vector<16x32xf32>
    %30 = arith.subf %15, %29 : vector<16x32xf32>
    %cst_19 = arith.constant 9.99999974E-6 : f32
    %31 = vector.broadcast %cst_19 : f32 to vector<16x1xf32>
    %32 = arith.addf %28, %31 : vector<16x1xf32>
    %33 = math.rsqrt %32 : vector<16x1xf32>
    %34 = vector.broadcast %33 : vector<16x1xf32> to vector<16x32xf32>
    %35 = arith.mulf %30, %34 : vector<16x32xf32>
    %36 = vector.broadcast %16 : vector<1x32xf32> to vector<16x32xf32>
    %37 = arith.mulf %35, %36 : vector<16x32xf32>
    %38 = vector.broadcast %17 : vector<1x32xf32> to vector<16x32xf32>
    %39 = arith.addf %37, %38 : vector<16x32xf32>
    %c0_20 = arith.constant 0 : index
    %c0_21 = arith.constant 0 : index
    %40 = vector.load %arg8[%c0_20, %c0_21] : memref<16x32xf32, #tpu.memory_space<vmem>>, vector<16x32xf32>
    tpu.vector_store %arg8[%c0_20, %c0_21], %39 {strides = array<i32>} : memref<16x32xf32, #tpu.memory_space<vmem>>, vector<16x32xf32>,
    return
  }
  func.func @transform_0(%arg0: i32) -> (i32, i32) {
    %c0_i32 = arith.constant 0 : i32
    %c0_i32_0 = arith.constant 0 : i32
    return %arg0, %c0_i32 : i32, i32
  }
  func.func @transform_1(%arg0: i32) -> (i32, i32) {
    %c0_i32 = arith.constant 0 : i32
    %c0_i32_0 = arith.constant 0 : i32
    %c0_i32_1 = arith.constant 0 : i32
    return %c0_i32, %c0_i32_0 : i32, i32
  }
  func.func @transform_2(%arg0: i32) -> (i32, i32) {
    %c0_i32 = arith.constant 0 : i32
    %c0_i32_0 = arith.constant 0 : i32
    %c0_i32_1 = arith.constant 0 : i32
    return %c0_i32, %c0_i32_0 : i32, i32
  }
  func.func @transform_3(%arg0: i32) -> (i32, i32) {
    %c0_i32 = arith.constant 0 : i32
    %c0_i32_0 = arith.constant 0 : i32
    %c0_i32_1 = arith.constant 0 : i32
    return %c0_i32, %c0_i32_0 : i32, i32
  }
  func.func @transform_4(%arg0: i32) -> (i32, i32) {
    %c0_i32 = arith.constant 0 : i32
    %c0_i32_0 = arith.constant 0 : i32
    %c0_i32_1 = arith.constant 0 : i32
    return %c0_i32, %c0_i32_0 : i32, i32
  }
  func.func @transform_5(%arg0: i32) -> (i32, i32) {
    %c0_i32 = arith.constant 0 : i32
    %c0_i32_0 = arith.constant 0 : i32
    %c0_i32_1 = arith.constant 0 : i32
    return %c0_i32, %c0_i32_0 : i32, i32
  }
  func.func @transform_6(%arg0: i32) -> (i32, i32) {
    %c0_i32 = arith.constant 0 : i32
    %c0_i32_0 = arith.constant 0 : i32
    %c0_i32_1 = arith.constant 0 : i32
    return %c0_i32, %c0_i32_0 : i32, i32
  }
  func.func @transform_7(%arg0: i32) -> (i32, i32) {
    %c0_i32 = arith.constant 0 : i32
    %c0_i32_0 = arith.constant 0 : i32
    return %arg0, %c0_i32 : i32, i32
  }
}

module attributes {stable_mosaic.version = 11 : i64} {
  func.func @_gate_logits_kernel(%arg0: i32, %arg1: memref<16x32xf32, #tpu.memory_space<vmem>>, %arg2: memref<16x32xf32, #tpu.memory_space<vmem>>, %arg3: memref<16x32xf32, #tpu.memory_space<vmem>>, %arg4: memref<16x32xf32, #tpu.memory_space<vmem>>, %arg5: memref<32x32xbf16, #tpu.memory_space<vmem>>, %arg6: memref<32x32xbf16, #tpu.memory_space<vmem>>, %arg7: memref<1x32xf32, #tpu.memory_space<vmem>>, %arg8: memref<16x2xf32, #tpu.memory_space<vmem>>) attributes {dimension_semantics = [#tpu.dimension_semantics<parallel>], iteration_bounds = array<i64: 1>, scalar_prefetch = 0 : i64, scratch_operands = 0 : i64, tpu.core_type = #tpu.core_type<tc>, window_params = [{transform_indices = @transform_0, window_bounds = array<i64: 16, 32>}, {transform_indices = @transform_1, window_bounds = array<i64: 16, 32>}, {transform_indices = @transform_2, window_bounds = array<i64: 16, 32>}, {transform_indices = @transform_3, window_bounds = array<i64: 16, 32>}, {pipeline_mode = #tpu.pipeline_mode<synchronous>, transform_indices = @transform_4, window_bounds = array<i64: 32, 32>}, {pipeline_mode = #tpu.pipeline_mode<synchronous>, transform_indices = @transform_5, window_bounds = array<i64: 32, 32>}, {pipeline_mode = #tpu.pipeline_mode<synchronous>, transform_indices = @transform_6, window_bounds = array<i64: 1, 32>}, {transform_indices = @transform_7, window_bounds = array<i64: 16, 2>}]} {
    %c0 = arith.constant 0 : index
    %c0_0 = arith.constant 0 : index
    %0 = vector.load %arg1[%c0, %c0_0] : memref<16x32xf32, #tpu.memory_space<vmem>>, vector<16x32xf32>
    %c0_1 = arith.constant 0 : index
    %c0_2 = arith.constant 0 : index
    %1 = vector.load %arg2[%c0_1, %c0_2] : memref<16x32xf32, #tpu.memory_space<vmem>>, vector<16x32xf32>
    %2 = arith.truncf %0 : vector<16x32xf32> to vector<16x32xbf16>
    %c0_3 = arith.constant 0 : index
    %c0_4 = arith.constant 0 : index
    %3 = vector.load %arg5[%c0_3, %c0_4] : memref<32x32xbf16, #tpu.memory_space<vmem>>, vector<32x32xbf16>
    %cst = arith.constant dense<0.000000e+00> : vector<16x32xf32>
    %4 = tpu.matmul %2, %3, %cst {dimension_numbers = #tpu.dot_dimension_numbers<[1], [0], [0], [1], [0, 0, 1, 1], [], []>} : vector<16x32xbf16>, vector<32x32xbf16>, vector<16x32xf32> -> vector<16x32xf32>
    %5 = arith.truncf %1 : vector<16x32xf32> to vector<16x32xbf16>
    %c0_5 = arith.constant 0 : index
    %c0_6 = arith.constant 0 : index
    %6 = vector.load %arg6[%c0_5, %c0_6] : memref<32x32xbf16, #tpu.memory_space<vmem>>, vector<32x32xbf16>
    %cst_7 = arith.constant dense<0.000000e+00> : vector<16x32xf32>
    %7 = tpu.matmul %5, %6, %cst_7 {dimension_numbers = #tpu.dot_dimension_numbers<[1], [0], [0], [1], [0, 0, 1, 1], [], []>} : vector<16x32xbf16>, vector<32x32xbf16>, vector<16x32xf32> -> vector<16x32xf32>
    %8 = arith.addf %4, %7 : vector<16x32xf32>
    %c0_8 = arith.constant 0 : index
    %c0_9 = arith.constant 0 : index
    %9 = vector.load %arg7[%c0_8, %c0_9] : memref<1x32xf32, #tpu.memory_space<vmem>>, vector<1x32xf32>
    %10 = vector.broadcast %9 : vector<1x32xf32> to vector<16x32xf32>
    %11 = arith.addf %8, %10 : vector<16x32xf32>
    %12 = arith.negf %11 : vector<16x32xf32>
    %13 = math.exp %12 : vector<16x32xf32>
    %cst_10 = arith.constant 1.000000e+00 : f32
    %14 = vector.broadcast %cst_10 : f32 to vector<16x32xf32>
    %15 = arith.addf %14, %13 : vector<16x32xf32>
    %16 = arith.divf %14, %15 : vector<16x32xf32>
    %17 = arith.mulf %16, %0 : vector<16x32xf32>
    %cst_11 = arith.constant 1.000000e+00 : f32
    %18 = vector.broadcast %cst_11 : f32 to vector<16x32xf32>
    %19 = arith.subf %18, %16 : vector<16x32xf32>
    %20 = arith.mulf %19, %1 : vector<16x32xf32>
    %21 = arith.addf %17, %20 : vector<16x32xf32>
    %c0_12 = arith.constant 0 : index
    %c0_13 = arith.constant 0 : index
    %22 = vector.load %arg3[%c0_12, %c0_13] : memref<16x32xf32, #tpu.memory_space<vmem>>, vector<16x32xf32>
    %23 = arith.mulf %21, %22 : vector<16x32xf32>
    %cst_14 = arith.constant dense<0.000000e+00> : vector<16xf32>
    %24 = vector.multi_reduction <add>, %23, %cst_14 [1] : vector<16x32xf32> to vector<16xf32>
    %25 = vector.shape_cast %24 : vector<16xf32> to vector<16x1xf32>
    %c0_15 = arith.constant 0 : index
    %c0_16 = arith.constant 0 : index
    %26 = vector.load %arg4[%c0_15, %c0_16] : memref<16x32xf32, #tpu.memory_space<vmem>>, vector<16x32xf32>
    %27 = arith.mulf %21, %26 : vector<16x32xf32>
    %cst_17 = arith.constant dense<0.000000e+00> : vector<16xf32>
    %28 = vector.multi_reduction <add>, %27, %cst_17 [1] : vector<16x32xf32> to vector<16xf32>
    %29 = vector.shape_cast %28 : vector<16xf32> to vector<16x1xf32>
    %30 = tpu.concatenate %25, %29 in 1 : vector<16x1xf32>, vector<16x1xf32> -> vector<16x2xf32>
    %c0_18 = arith.constant 0 : index
    %c0_19 = arith.constant 0 : index
    %31 = vector.load %arg8[%c0_18, %c0_19] : memref<16x2xf32, #tpu.memory_space<vmem>>, vector<16x2xf32>
    tpu.vector_store %arg8[%c0_18, %c0_19], %30 {strides = array<i32>} : memref<16x2xf32, #tpu.memory_space<vmem>>, vector<16x2xf32>,
    return
  }
  func.func @transform_0(%arg0: i32) -> (i32, i32) {
    %c0_i32 = arith.constant 0 : i32
    %c0_i32_0 = arith.constant 0 : i32
    return %arg0, %c0_i32 : i32, i32
  }
  func.func @transform_1(%arg0: i32) -> (i32, i32) {
    %c0_i32 = arith.constant 0 : i32
    %c0_i32_0 = arith.constant 0 : i32
    return %arg0, %c0_i32 : i32, i32
  }
  func.func @transform_2(%arg0: i32) -> (i32, i32) {
    %c0_i32 = arith.constant 0 : i32
    %c0_i32_0 = arith.constant 0 : i32
    return %arg0, %c0_i32 : i32, i32
  }
  func.func @transform_3(%arg0: i32) -> (i32, i32) {
    %c0_i32 = arith.constant 0 : i32
    %c0_i32_0 = arith.constant 0 : i32
    return %arg0, %c0_i32 : i32, i32
  }
  func.func @transform_4(%arg0: i32) -> (i32, i32) {
    %c0_i32 = arith.constant 0 : i32
    %c0_i32_0 = arith.constant 0 : i32
    %c0_i32_1 = arith.constant 0 : i32
    return %c0_i32, %c0_i32_0 : i32, i32
  }
  func.func @transform_5(%arg0: i32) -> (i32, i32) {
    %c0_i32 = arith.constant 0 : i32
    %c0_i32_0 = arith.constant 0 : i32
    %c0_i32_1 = arith.constant 0 : i32
    return %c0_i32, %c0_i32_0 : i32, i32
  }
  func.func @transform_6(%arg0: i32) -> (i32, i32) {
    %c0_i32 = arith.constant 0 : i32
    %c0_i32_0 = arith.constant 0 : i32
    %c0_i32_1 = arith.constant 0 : i32
    return %c0_i32, %c0_i32_0 : i32, i32
  }
  func.func @transform_7(%arg0: i32) -> (i32, i32) {
    %c0_i32 = arith.constant 0 : i32
    %c0_i32_0 = arith.constant 0 : i32
    return %arg0, %c0_i32 : i32, i32
  }
}

</mosaic_0001>

<llo_original>
// kernel: cltsbr_forward.19
$region0: #{cltsbr_forward.19}
  #allocation0 [shape = 'u32[]', space=smem, size = 0x4, offset = 0x4, fixed_abs, tag = 'smem constant byte address 0x4 - core index']
  #allocation1 [shape = 'u32[144,128]{1,0:T(1,128)}', space=vmem, size = 0x12000, scoped, tag = 'internal scratch']
  %s0 = inlined_call_operand.vmem [shape: bf16[2,8,32], index: 0, kind: input, shape index: {}]
  %s1 = inlined_call_operand.vmem [shape: bf16[2,8,64], index: 1, kind: input, shape index: {}]
  %s2 = inlined_call_operand.vmem [shape: bf16[2,8,32], index: 2, kind: output, shape index: {}]
  %s3 = sld [smem:[#allocation0]]
  $region41: #{cltsbr_forward.19} parent=0
    _
  %s5 = ssub.s32 1, %s3
  %s6 = scalar_select 0, %s5, %s3
  loop: start=0, step=1, limit=4
  $region2: #{cltsbr_forward.19} parent=0 // loop_pre_header
    _
  $region3: #{cltsbr_forward.19} parent=0 // loop_header
    %s8 = sphi 0, %s12
    %p9 = scmp.ge.s32.totalorder %s8, 4
    %s18 = sphi 0, %s20
    %s21 = sphi 0, %s18
    %s22 = sphi 0, %s21
    %s38 = sphi 0, %s22
    %s44 = sphi 0, %s46
    %s47 = sphi 0, %s44
    %s48 = sphi 0, %s47
    %s64 = sphi 0, %s48
    %s70 = sphi 0, %s72
    %s73 = sphi 0, %s70
    %s74 = sphi 0, %s73
    %s90 = sphi 0, %s74
  $region4: #{cltsbr_forward.19} parent=0 // loop_header_branch
    %11 = sbr.rel (%p9) target = $region8
  $region5: #{cltsbr_forward.19} parent=0 // loop_body
    %s13 = ssub.s32 %s8, 1
    %s14 = ssub.s32 %s8, 2
    %s15 = sadd.s32 %s8, 1
    %s16 = ssub.s32 %s8, %s15
    %p17 = scmp.eq.s32.totalorder %s16, 0
    %s19 = sadd.s32 %s18, 1
    %s20 = scalar_select %p17, %s18, %s19
    %p23 = pneg %p17
    %p24 = scmp.eq.s32.totalorder %s8, 1
    %p25 = por %p23, %p24
    %p26 = scmp.ne.s32.totalorder %s18, %s21
    %p27 = scmp.eq.s32.totalorder %s8, 0
    %p28 = por %p26, %p27
    %p29 = scmp.ne.s32.totalorder %s18, %s21
    %p30 = scmp.eq.s32.totalorder %s13, 1
    %p31 = por %p29, %p30
    %p32 = scmp.ne.s32.totalorder %s21, %s22
    %p33 = scmp.eq.s32.totalorder %s13, 0
    %p34 = por %p32, %p33
    %p35 = scmp.ne.s32.totalorder %s21, %s22
    %p36 = scmp.eq.s32.totalorder %s14, 1
    %p37 = por %p35, %p36
    %p39 = scmp.ne.s32.totalorder %s22, %s38
    %p40 = scmp.eq.s32.totalorder %s14, 0
    %p41 = por %p39, %p40
    %s42 = ssub.s32 %s8, %s15
    %p43 = scmp.eq.s32.totalorder %s42, 0
    %s45 = sadd.s32 %s44, 1
    %s46 = scalar_select %p43, %s44, %s45
    %p49 = pneg %p43
    %p50 = scmp.eq.s32.totalorder %s8, 1
    %p51 = por %p49, %p50
    %p52 = scmp.ne.s32.totalorder %s44, %s47
    %p53 = scmp.eq.s32.totalorder %s8, 0
    %p54 = por %p52, %p53
    %p55 = scmp.ne.s32.totalorder %s44, %s47
    %p56 = scmp.eq.s32.totalorder %s13, 1
    %p57 = por %p55, %p56
    %p58 = scmp.ne.s32.totalorder %s47, %s48
    %p59 = scmp.eq.s32.totalorder %s13, 0
    %p60 = por %p58, %p59
    %p61 = scmp.ne.s32.totalorder %s47, %s48
    %p62 = scmp.eq.s32.totalorder %s14, 1
    %p63 = por %p61, %p62
    %p65 = scmp.ne.s32.totalorder %s48, %s64
    %p66 = scmp.eq.s32.totalorder %s14, 0
    %p67 = por %p65, %p66
    %s68 = ssub.s32 %s8, %s15
    %p69 = scmp.eq.s32.totalorder %s68, 0
    %s71 = sadd.s32 %s70, 1
    %s72 = scalar_select %p69, %s70, %s71
    %p75 = pneg %p69
    %p76 = scmp.eq.s32.totalorder %s8, 1
    %p77 = por %p75, %p76
    %p78 = scmp.ne.s32.totalorder %s70, %s73
    %p79 = scmp.eq.s32.totalorder %s8, 0
    %p80 = por %p78, %p79
    %p81 = scmp.ne.s32.totalorder %s70, %s73
    %p82 = scmp.eq.s32.totalorder %s13, 1
    %p83 = por %p81, %p82
    %p84 = scmp.ne.s32.totalorder %s73, %s74
    %p85 = scmp.eq.s32.totalorder %s13, 0
    %p86 = por %p84, %p85
    %p87 = scmp.ne.s32.totalorder %s73, %s74
    %p88 = scmp.eq.s32.totalorder %s14, 1
    %p89 = por %p87, %p88
    %p91 = scmp.ne.s32.totalorder %s74, %s90
    %p92 = scmp.eq.s32.totalorder %s14, 0
    %p93 = por %p91, %p92
    %p94 = scmp.le.s32.totalorder 1, %s8
    %p95 = scmp.lt.s32.totalorder %s8, 3
    %p96 = pnand %p94, %p95
    %p97 = pneg %p96
    // Predicated region
    $region9: #{cltsbr_forward.19} parent=5 // pred_check
      _
    $region10: #{cltsbr_forward.19} parent=5 // pred_check_branch
      %99 = sbr.rel (%p96) target = $region12
    $region11: #{cltsbr_forward.19} parent=5 // pred_region
      %s100 = ssub.s32 %s8, 1
    $region12: #{cltsbr_forward.19} parent=5 // pred_fallthru
      _
    %p101 = scmp.lt.s32.totalorder %s8, 2
    // Predicated region
    $region13: #{cltsbr_forward.19} parent=5 // pred_check
      %p102 = pneg %p101
    $region14: #{cltsbr_forward.19} parent=5 // pred_check_branch
      %104 = sbr.rel (%p102) target = $region16
    $region15: #{cltsbr_forward.19} parent=5 // pred_region
      // Predicated region
      $region17: #{cltsbr_forward.19} parent=15 // pred_check
        %p105 = pneg %p28
      $region18: #{cltsbr_forward.19} parent=15 // pred_check_branch
        %107 = sbr.rel (%p105) target = $region20
      $region19: #{cltsbr_forward.19} parent=15 // pred_region
        %p108 = scmp.lt.s32.totalorder %s8, 1
        %s109 = scalar_select %p108, %s8, 1
        %s110 = smul.addr %s109, 4
        %s111 = scalar_lea.vmem %s0, %s110
      $region20: #{cltsbr_forward.19} parent=15 // pred_fallthru
        _
      // Predicated region
      $region21: #{cltsbr_forward.19} parent=15 // pred_check
        %p112 = pneg %p54
      $region22: #{cltsbr_forward.19} parent=15 // pred_check_branch
        %114 = sbr.rel (%p112) target = $region24
      $region23: #{cltsbr_forward.19} parent=15 // pred_region
        %p115 = scmp.lt.s32.totalorder %s8, 1
        %s116 = scalar_select %p115, %s8, 1
        %s117 = smul.addr %s116, 4
        %s118 = scalar_lea.vmem %s1, %s117
      $region24: #{cltsbr_forward.19} parent=15 // pred_fallthru
        _
    $region16: #{cltsbr_forward.19} parent=5 // pred_fallthru
      _
    %p119 = scmp.le.s32.totalorder 1, %s8
    %p120 = scmp.lt.s32.totalorder %s8, 3
    %p121 = pnand %p119, %p120
    %p122 = pneg %p121
    // Predicated region
    $region25: #{cltsbr_forward.19} parent=5 // pred_check
      _
    $region26: #{cltsbr_forward.19} parent=5 // pred_check_branch
      %124 = sbr.rel (%p121) target = $region28
    $region27: #{cltsbr_forward.19} parent=5 // pred_region
      %s125 = ssub.s32 %s8, 1
      %p126 = scmp.lt.s32.totalorder %s13, 1
      %s127 = scalar_select %p126, %s13, 1
      %s128 = smul.addr %s127, 4
      %s129 = scalar_lea.vmem %s0, %s128
      %p130 = pneg %p34
      %p131 = pneg %p31
      %p132 = scmp.lt.s32.totalorder %s13, 1
      %s133 = scalar_select %p132, %s13, 1
      %s134 = smul.addr %s133, 4
      %s135 = scalar_lea.vmem %s1, %s134
      %p136 = pneg %p60
      %p137 = pneg %p57
      %p138 = pneg %p86
      %p139 = pneg %p83
      %p140 = scmp.lt.s32.totalorder %s13, 1
      %s141 = scalar_select %p140, %s13, 1
      %s142 = smul.addr %s141, 4
      %s143 = scalar_lea.vmem %s2, %s142
      %p144 = scmp.lt.s32.totalorder %s13, 1
      %s145 = scalar_select %p144, %s13, 1
      %s146 = smul.addr %s145, 4
      %s147 = scalar_lea.vmem %s0, %s146
      %p148 = scmp.lt.s32.totalorder %s13, 1
      %s149 = scalar_select %p148, %s13, 1
      %s150 = smul.addr %s149, 4
      %s151 = scalar_lea.vmem %s1, %s150
      %p152 = scmp.lt.s32.totalorder %s13, 1
      %s153 = scalar_select %p152, %s13, 1
      %s154 = smul.addr %s153, 4
      %s155 = scalar_lea.vmem %s2, %s154
      %v157 = vld [vmem:[%s147] sm:$0xf]
      %v158 = vld [vmem:[%s151] sm:$0xf]
      %v159 = vlaneseq
      %v160 = vshrl.u32 %v159, 7
      %v161 = vlaneseq
      %v162 = vand.u32 %v161, 127
      %vm163 = vcmp.gt.s32.totalorder %v162, %v160
      %vm164 = vcmask 130048
      %v166 = vsel %vm164, %v157, 0
      %v169 = vsel %vm164, %v158, 0
      %171 = vmatprep.subr.bf16.mxu0 0
      %172 = vmatpush1.bf16.xpose.msra.mxu0 %v169
      %173 = vmatprep.subr.bf16.mxu0 0
      %174 = vmatpush1.bf16.xpose.msra.mxu0 0
      %175 = vmatprep.subr.bf16.mxu0 0
      %176 = vmatpush1.bf16.xpose.msra.mxu0 0
      %177 = vmatprep.subr.bf16.mxu0 0
      %178 = vmatpush1.bf16.xpose.msra.mxu0 0
      %179 = vmatprep.subr.bf16.mxu0 0
      %180 = vmatpush1.bf16.xpose.msra.mxu0 0
      %181 = vmatprep.subr.bf16.mxu0 0
      %182 = vmatpush1.bf16.xpose.msra.mxu0 0
      %183 = vmatprep.subr.bf16.mxu0 0
      %184 = vmatpush1.bf16.xpose.msra.mxu0 0
      %185 = vmatprep.subr.bf16.mxu0 0
      %186 = vmatpush1.bf16.xpose.msra.mxu0 0
      %187 = vmatprep.subr.bf16.mxu0 0
      %188 = vmatpush1.bf16.xpose.msra.mxu0 0
      %189 = vmatprep.subr.bf16.mxu0 0
      %190 = vmatpush1.bf16.xpose.msra.mxu0 0
      %191 = vmatprep.subr.bf16.mxu0 0
      %192 = vmatpush1.bf16.xpose.msra.mxu0 0
      %193 = vmatprep.subr.bf16.mxu0 0
      %194 = vmatpush1.bf16.xpose.msra.mxu0 0
      %195 = vmatprep.subr.bf16.mxu0 0
      %196 = vmatpush1.bf16.xpose.msra.mxu0 0
      %197 = vmatprep.subr.bf16.mxu0 0
      %198 = vmatpush1.bf16.xpose.msra.mxu0 0
      %199 = vmatprep.subr.bf16.mxu0 0
      %200 = vmatpush1.bf16.xpose.msra.mxu0 0
      %201 = vmatprep.subr.bf16.mxu0 0
      %202 = vmatpush1.bf16.xpose.msra.mxu0 0
      %203 = vmatprep.mubr.bf16.mxu0 0
      %204 = vmatmul.mubr.bf16.gmra.mrb[0].mxu0 %v166
      %v205 = vpop.f32.mrb[0].mxu0
      %v206 = vadd.f32 0.0, %v205
      %v207 = vpop.f32.mrb[0].mxu0
      %v208 = vpop.f32.mrb[0].mxu0
      %v209 = vpop.f32.mrb[0].mxu0
      %210 = vdwg.mxu0
      %v211 = vmul.f32 %v206, 0.25
      %v212 = vsel %vm163, -1e+09, %v211
      %vm213 = vcmask 64512
      %v214 = vsel %vm213, %v212, -inf
      %215 = vmax.xlane.f32.xlu0 %v214
      %v216 = vpop.xlane.xlu0 %215
      %v217 = vsub.f32 %v212, %v216
      %v218 = vmul.f32 %v217, 1.442695
      %v219 = vpow.pop %v218
      %v220 = vsel %vm213, %v219, 0.0
      %221 = vadd.xlane.f32.xlu0 %v220
      %v222 = vpop.xlane.xlu0 %221
      %v223 = vrcp.pop %v222
      %v224 = vmul.f32 %v219, %v223
      %v225 = vpack.c.bf16 %v224, %v224
      %v227 = vunpack.c.l.b16 %v158
      %v228 = vpack.c.b16 %v227, %v227
      %229 = vrot.lane.b32.xlu0 %v228, 96
      %v230 = vpop.permute.xlu0 %229
      %v232 = vsel %vm213, %v225, 0
      %vm234 = vcmask 1043456
      %v236 = vsel %vm234, %v230, 0
      %238 = vmatprep.subr.bf16.mxu0 0
      %239 = vmatpush1.bf16.msra.mxu0 %v236
      %240 = vmatprep.subr.bf16.mxu0 0
      %241 = vmatpush1.bf16.msra.mxu0 0
      %242 = vmatprep.subr.bf16.mxu0 0
      %243 = vmatpush1.bf16.msra.mxu0 0
      %244 = vmatprep.subr.bf16.mxu0 0
      %245 = vmatpush1.bf16.msra.mxu0 0
      %246 = vmatprep.subr.bf16.mxu0 0
      %247 = vmatpush1.bf16.msra.mxu0 0
      %248 = vmatprep.subr.bf16.mxu0 0
      %249 = vmatpush1.bf16.msra.mxu0 0
      %250 = vmatprep.subr.bf16.mxu0 0
      %251 = vmatpush1.bf16.msra.mxu0 0
      %252 = vmatprep.subr.bf16.mxu0 0
      %253 = vmatpush1.bf16.msra.mxu0 0
      %254 = vmatprep.subr.bf16.mxu0 0
      %255 = vmatpush1.bf16.msra.mxu0 0
      %256 = vmatprep.subr.bf16.mxu0 0
      %257 = vmatpush1.bf16.msra.mxu0 0
      %258 = vmatprep.subr.bf16.mxu0 0
      %259 = vmatpush1.bf16.msra.mxu0 0
      %260 = vmatprep.subr.bf16.mxu0 0
      %261 = vmatpush1.bf16.msra.mxu0 0
      %262 = vmatprep.subr.bf16.mxu0 0
      %263 = vmatpush1.bf16.msra.mxu0 0
      %264 = vmatprep.subr.bf16.mxu0 0
      %265 = vmatpush1.bf16.msra.mxu0 0
      %266 = vmatprep.subr.bf16.mxu0 0
      %267 = vmatpush1.bf16.msra.mxu0 0
      %268 = vmatprep.subr.bf16.mxu0 0
      %269 = vmatpush1.bf16.msra.mxu0 0
      %270 = vmatprep.mubr.bf16.mxu0 0
      %271 = vmatmul.mubr.bf16.gmra.mrb[0].mxu0 %v232
      %v272 = vpop.f32.mrb[0].mxu0
      %v273 = vadd.f32 0.0, %v272
      %v274 = vpop.f32.mrb[0].mxu0
      %v275 = vpop.f32.mrb[0].mxu0
      %v276 = vpop.f32.mrb[0].mxu0
      %277 = vdwg.mxu0
      %v279 = vunpack.c.l.b16 %v157
      %v280 = vpack.c.b16 %v279, %v279
      %281 = vrot.lane.b32.xlu0 %v280, 112
      %v282 = vpop.permute.xlu0 %281
      %283 = vrot.lane.b32.xlu0 %v228, 112
      %v284 = vpop.permute.xlu0 %283
      %v286 = vsel %vm164, %v282, 0
      %v289 = vsel %vm164, %v284, 0
      %291 = vmatprep.subr.bf16.mxu0 0
      %292 = vmatpush1.bf16.xpose.msra.mxu0 %v289
      %293 = vmatprep.subr.bf16.mxu0 0
      %294 = vmatpush1.bf16.xpose.msra.mxu0 0
      %295 = vmatprep.subr.bf16.mxu0 0
      %296 = vmatpush1.bf16.xpose.msra.mxu0 0
      %297 = vmatprep.subr.bf16.mxu0 0
      %298 = vmatpush1.bf16.xpose.msra.mxu0 0
      %299 = vmatprep.subr.bf16.mxu0 0
      %300 = vmatpush1.bf16.xpose.msra.mxu0 0
      %301 = vmatprep.subr.bf16.mxu0 0
      %302 = vmatpush1.bf16.xpose.msra.mxu0 0
      %303 = vmatprep.subr.bf16.mxu0 0
      %304 = vmatpush1.bf16.xpose.msra.mxu0 0
      %305 = vmatprep.subr.bf16.mxu0 0
      %306 = vmatpush1.bf16.xpose.msra.mxu0 0
      %307 = vmatprep.subr.bf16.mxu0 0
      %308 = vmatpush1.bf16.xpose.msra.mxu0 0
      %309 = vmatprep.subr.bf16.mxu0 0
      %310 = vmatpush1.bf16.xpose.msra.mxu0 0
      %311 = vmatprep.subr.bf16.mxu0 0
      %312 = vmatpush1.bf16.xpose.msra.mxu0 0
      %313 = vmatprep.subr.bf16.mxu0 0
      %314 = vmatpush1.bf16.xpose.msra.mxu0 0
      %315 = vmatprep.subr.bf16.mxu0 0
      %316 = vmatpush1.bf16.xpose.msra.mxu0 0
      %317 = vmatprep.subr.bf16.mxu0 0
      %318 = vmatpush1.bf16.xpose.msra.mxu0 0
      %319 = vmatprep.subr.bf16.mxu0 0
      %320 = vmatpush1.bf16.xpose.msra.mxu0 0
      %321 = vmatprep.subr.bf16.mxu0 0
      %322 = vmatpush1.bf16.xpose.msra.mxu0 0
      %323 = vmatprep.mubr.bf16.mxu0 0
      %324 = vmatmul.mubr.bf16.gmra.mrb[0].mxu0 %v286
      %v325 = vpop.f32.mrb[0].mxu0
      %v326 = vadd.f32 0.0, %v325
      %v327 = vpop.f32.mrb[0].mxu0
      %v328 = vpop.f32.mrb[0].mxu0
      %v329 = vpop.f32.mrb[0].mxu0
      %330 = vdwg.mxu0
      %v331 = vmul.f32 %v326, 0.25
      %v332 = vsel %vm163, -1e+09, %v331
      %v333 = vsel %vm213, %v332, -inf
      %334 = vmax.xlane.f32.xlu0 %v333
      %v335 = vpop.xlane.xlu0 %334
      %v336 = vsub.f32 %v332, %v335
      %v337 = vmul.f32 %v336, 1.442695
      %v338 = vpow.pop %v337
      %v339 = vsel %vm213, %v338, 0.0
      %340 = vadd.xlane.f32.xlu0 %v339
      %v341 = vpop.xlane.xlu0 %340
      %v342 = vrcp.pop %v341
      %v343 = vmul.f32 %v338, %v342
      %v344 = vpack.c.bf16 %v343, %v343
      %345 = vrot.lane.b32.xlu0 %v228, 80
      %v346 = vpop.permute.xlu0 %345
      %v348 = vsel %vm213, %v344, 0
      %v351 = vsel %vm234, %v346, 0
      %353 = vmatprep.subr.bf16.mxu0 0
      %354 = vmatpush1.bf16.msra.mxu0 %v351
      %355 = vmatprep.subr.bf16.mxu0 0
      %356 = vmatpush1.bf16.msra.mxu0 0
      %357 = vmatprep.subr.bf16.mxu0 0
      %358 = vmatpush1.bf16.msra.mxu0 0
      %359 = vmatprep.subr.bf16.mxu0 0
      %360 = vmatpush1.bf16.msra.mxu0 0
      %361 = vmatprep.subr.bf16.mxu0 0
      %362 = vmatpush1.bf16.msra.mxu0 0
      %363 = vmatprep.subr.bf16.mxu0 0
      %364 = vmatpush1.bf16.msra.mxu0 0
      %365 = vmatprep.subr.bf16.mxu0 0
      %366 = vmatpush1.bf16.msra.mxu0 0
      %367 = vmatprep.subr.bf16.mxu0 0
      %368 = vmatpush1.bf16.msra.mxu0 0
      %369 = vmatprep.subr.bf16.mxu0 0
      %370 = vmatpush1.bf16.msra.mxu0 0
      %371 = vmatprep.subr.bf16.mxu0 0
      %372 = vmatpush1.bf16.msra.mxu0 0
      %373 = vmatprep.subr.bf16.mxu0 0
      %374 = vmatpush1.bf16.msra.mxu0 0
      %375 = vmatprep.subr.bf16.mxu0 0
      %376 = vmatpush1.bf16.msra.mxu0 0
      %377 = vmatprep.subr.bf16.mxu0 0
      %378 = vmatpush1.bf16.msra.mxu0 0
      %379 = vmatprep.subr.bf16.mxu0 0
      %380 = vmatpush1.bf16.msra.mxu0 0
      %381 = vmatprep.subr.bf16.mxu0 0
      %382 = vmatpush1.bf16.msra.mxu0 0
      %383 = vmatprep.subr.bf16.mxu0 0
      %384 = vmatpush1.bf16.msra.mxu0 0
      %385 = vmatprep.mubr.bf16.mxu0 0
      %386 = vmatmul.mubr.bf16.gmra.mrb[0].mxu0 %v348
      %v387 = vpop.f32.mrb[0].mxu0
      %v388 = vadd.f32 0.0, %v387
      %v389 = vpop.f32.mrb[0].mxu0
      %v390 = vpop.f32.mrb[0].mxu0
      %v391 = vpop.f32.mrb[0].mxu0
      %392 = vdwg.mxu0
      %394 = vrot.lane.b32.xlu0 %v388, 16
      %v395 = vpop.permute.xlu0 %394
      %v397 = vsel %vm164, %v273, %v395
      %v398 = vpack.c.bf16 %v397, %v397
      %vm399 = vcmask 257024
      %400 = vst.msk [vmem:[%s155] sm:$0xf] %vm399, %v398
      %p401 = scmp.lt.s32.totalorder %s13, 1
      %s402 = scalar_select %p401, %s13, 1
      %s403 = smul.addr %s402, 4
      %s404 = scalar_lea.vmem %s2, %s403
      // Predicated region
      $region29: #{cltsbr_forward.19} parent=27 // pred_check
        %p405 = pneg %p83
      $region30: #{cltsbr_forward.19} parent=27 // pred_check_branch
        %407 = sbr.rel (%p405) target = $region32
      $region31: #{cltsbr_forward.19} parent=27 // pred_region
        _
      $region32: #{cltsbr_forward.19} parent=27 // pred_fallthru
        _
    $region28: #{cltsbr_forward.19} parent=5 // pred_fallthru
      _
    %p408 = scmp.le.s32.totalorder 2, %s8
    // Predicated region
    $region33: #{cltsbr_forward.19} parent=5 // pred_check
      %p409 = pneg %p408
    $region34: #{cltsbr_forward.19} parent=5 // pred_check_branch
      %411 = sbr.rel (%p409) target = $region36
    $region35: #{cltsbr_forward.19} parent=5 // pred_region
      %s412 = ssub.s32 %s8, 2
      // Predicated region
      $region37: #{cltsbr_forward.19} parent=35 // pred_check
        %p413 = pneg %p89
      $region38: #{cltsbr_forward.19} parent=35 // pred_check_branch
        %415 = sbr.rel (%p413) target = $region40
      $region39: #{cltsbr_forward.19} parent=35 // pred_region
        %p416 = scmp.lt.s32.totalorder %s14, 1
        %s417 = scalar_select %p416, %s14, 1
        %s418 = smul.addr %s417, 4
        %s419 = scalar_lea.vmem %s2, %s418
      $region40: #{cltsbr_forward.19} parent=35 // pred_fallthru
        _
    $region36: #{cltsbr_forward.19} parent=5 // pred_fallthru
      _
  $region6: #{cltsbr_forward.19} parent=0 // loop_footer
    %s12 = sadd.s32 1, %s8
  $region7: #{cltsbr_forward.19} parent=0 // loop_footer_branch
    %7 = sbr.rel target = $region3
  $region8: #{cltsbr_forward.19} parent=0 // loop_exit
    _

// kernel: cltsbr_forward.20
$region0: #{cltsbr_forward.20}
  #allocation0 [shape = 'u32[]', space=smem, size = 0x4, offset = 0x4, fixed_abs, tag = 'smem constant byte address 0x4 - core index']
  #allocation1 [shape = 'u32[144,128]{1,0:T(1,128)}', space=vmem, size = 0x12000, scoped, tag = 'internal scratch']
  %s0 = inlined_call_operand.vmem [shape: bf16[16,32], index: 0, kind: input, shape index: {}]
  %s1 = inlined_call_operand.vmem [shape: bf16[32,32], index: 1, kind: input, shape index: {}]
  %s2 = inlined_call_operand.vmem [shape: f32[1,32], index: 2, kind: input, shape index: {}]
  %s3 = inlined_call_operand.vmem [shape: f32[16,32], index: 3, kind: input, shape index: {}]
  %s4 = inlined_call_operand.vmem [shape: f32[16,32], index: 4, kind: output, shape index: {}]
  %s5 = sld [smem:[#allocation0]]
  $region26: #{cltsbr_forward.20} parent=0
    _
  %s7 = ssub.s32 1, %s5
  %s8 = scalar_select 0, %s7, %s5
  // Predicated region
  $region2: #{cltsbr_forward.20} parent=0 // pred_check
    _
  $region3: #{cltsbr_forward.20} parent=0 // pred_check_branch
    %10 = sbr.rel (0) target = $region5
  $region4: #{cltsbr_forward.20} parent=0 // pred_region
    _
  $region5: #{cltsbr_forward.20} parent=0 // pred_fallthru
    _
  // Predicated region
  $region6: #{cltsbr_forward.20} parent=0 // pred_check
    _
  $region7: #{cltsbr_forward.20} parent=0 // pred_check_branch
    %12 = sbr.rel (0) target = $region9
  $region8: #{cltsbr_forward.20} parent=0 // pred_region
    _
  $region9: #{cltsbr_forward.20} parent=0 // pred_fallthru
    _
  // Predicated region
  $region10: #{cltsbr_forward.20} parent=0 // pred_check
    _
  $region11: #{cltsbr_forward.20} parent=0 // pred_check_branch
    %14 = sbr.rel (0) target = $region13
  $region12: #{cltsbr_forward.20} parent=0 // pred_region
    _
  $region13: #{cltsbr_forward.20} parent=0 // pred_fallthru
    _
  // Predicated region
  $region14: #{cltsbr_forward.20} parent=0 // pred_check
    _
  $region15: #{cltsbr_forward.20} parent=0 // pred_check_branch
    %16 = sbr.rel (0) target = $region17
  $region16: #{cltsbr_forward.20} parent=0 // pred_region
    _
  $region17: #{cltsbr_forward.20} parent=0 // pred_fallthru
    _
  %v18 = vld [vmem:[%s0] sm:$0xf]
  %v19 = vld [vmem:[%s0 + $0x4] sm:$0xf]
  %v20 = vld [vmem:[%s1] sm:$0xf]
  %v21 = vld [vmem:[%s1 + $0x4] sm:$0xf]
  %v22 = vld [vmem:[%s1 + $0x8] sm:$0xf]
  %v23 = vld [vmem:[%s1 + $0xc] sm:$0xf]
  %v24 = vld [vmem:[%s2] sm:$0x1]
  %v26 = vlaneseq
  %v27 = vshrl.u32 %v26, 7
  %v28 = vsub.s32 0, %v27
  %v29 = vrot.slane %v24, %v28
  %v33 = vunpack.c.l.b16 %v18
  %v34 = vunpack.c.l.b16 %v19
  %v35 = vpack.c.b16 %v34, %v33
  %v40 = vunpack.c.l.b16 %v20
  %v41 = vunpack.c.l.b16 %v21
  %v42 = vunpack.c.l.b16 %v22
  %v43 = vunpack.c.l.b16 %v23
  %v44 = vpack.c.b16 %v41, %v40
  %v45 = vpack.c.b16 %v43, %v42
  %vm48 = vcmask 261120
  %v50 = vsel %vm48, %v35, 0
  %52 = vmatprep.subr.bf16.mxu0 0
  %53 = vmatpush1.bf16.msra.mxu0 %v44
  %54 = vmatprep.subr.bf16.mxu0 0
  %55 = vmatpush1.bf16.msra.mxu0 %v45
  %56 = vmatprep.subr.bf16.mxu0 0
  %57 = vmatpush1.bf16.msra.mxu0 0
  %58 = vmatprep.subr.bf16.mxu0 0
  %59 = vmatpush1.bf16.msra.mxu0 0
  %60 = vmatprep.subr.bf16.mxu0 0
  %61 = vmatpush1.bf16.msra.mxu0 0
  %62 = vmatprep.subr.bf16.mxu0 0
  %63 = vmatpush1.bf16.msra.mxu0 0
  %64 = vmatprep.subr.bf16.mxu0 0
  %65 = vmatpush1.bf16.msra.mxu0 0
  %66 = vmatprep.subr.bf16.mxu0 0
  %67 = vmatpush1.bf16.msra.mxu0 0
  %68 = vmatprep.subr.bf16.mxu0 0
  %69 = vmatpush1.bf16.msra.mxu0 0
  %70 = vmatprep.subr.bf16.mxu0 0
  %71 = vmatpush1.bf16.msra.mxu0 0
  %72 = vmatprep.subr.bf16.mxu0 0
  %73 = vmatpush1.bf16.msra.mxu0 0
  %74 = vmatprep.subr.bf16.mxu0 0
  %75 = vmatpush1.bf16.msra.mxu0 0
  %76 = vmatprep.subr.bf16.mxu0 0
  %77 = vmatpush1.bf16.msra.mxu0 0
  %78 = vmatprep.subr.bf16.mxu0 0
  %79 = vmatpush1.bf16.msra.mxu0 0
  %80 = vmatprep.subr.bf16.mxu0 0
  %81 = vmatpush1.bf16.msra.mxu0 0
  %82 = vmatprep.subr.bf16.mxu0 0
  %83 = vmatpush1.bf16.msra.mxu0 0
  %84 = vmatprep.mubr.bf16.mxu0 0
  %85 = vmatmul.mubr.bf16.gmra.mrb[0].mxu0 %v50
  %v86 = vpop.f32.mrb[0].mxu0
  %v87 = vadd.f32 %v29, %v86
  %v88 = vpop.f32.mrb[0].mxu0
  %v89 = vpop.f32.mrb[0].mxu0
  %v90 = vadd.f32 %v29, %v89
  %v91 = vpop.f32.mrb[0].mxu0
  %92 = vdwg.mxu0
  %v93 = vld [vmem:[%s3] sm:$0xff]
  %v94 = vld [vmem:[%s3 + $0x8] sm:$0xff]
  %v95 = vadd.f32 %v87, %v93
  %v96 = vadd.f32 %v90, %v94
  %97 = vst.msk [vmem:[%s4] sm:$0xff] %vm48, %v95
  %98 = vst.msk [vmem:[%s4 + $0x8] sm:$0xff] %vm48, %v96
  // Predicated region
  $region18: #{cltsbr_forward.20} parent=0 // pred_check
    _
  $region19: #{cltsbr_forward.20} parent=0 // pred_check_branch
    %100 = sbr.rel (0) target = $region21
  $region20: #{cltsbr_forward.20} parent=0 // pred_region
    _
  $region21: #{cltsbr_forward.20} parent=0 // pred_fallthru
    _
  // Predicated region
  $region22: #{cltsbr_forward.20} parent=0 // pred_check
    _
  $region23: #{cltsbr_forward.20} parent=0 // pred_check_branch
    %102 = sbr.rel (0) target = $region25
  $region24: #{cltsbr_forward.20} parent=0 // pred_region
    _
  $region25: #{cltsbr_forward.20} parent=0 // pred_fallthru
    _

// kernel: cltsbr_forward.21
$region0: #{cltsbr_forward.21}
  #allocation0 [shape = 'u32[]', space=smem, size = 0x4, offset = 0x4, fixed_abs, tag = 'smem constant byte address 0x4 - core index']
  #allocation1 [shape = 'u32[144,128]{1,0:T(1,128)}', space=vmem, size = 0x12000, scoped, tag = 'internal scratch']
  %s0 = inlined_call_operand.vmem [shape: f32[16,32], index: 0, kind: input, shape index: {}]
  %s1 = inlined_call_operand.vmem [shape: f32[1,32], index: 1, kind: input, shape index: {}]
  %s2 = inlined_call_operand.vmem [shape: f32[1,32], index: 2, kind: input, shape index: {}]
  %s3 = inlined_call_operand.vmem [shape: bf16[32,32], index: 3, kind: input, shape index: {}]
  %s4 = inlined_call_operand.vmem [shape: f32[1,32], index: 4, kind: input, shape index: {}]
  %s5 = inlined_call_operand.vmem [shape: bf16[32,32], index: 5, kind: input, shape index: {}]
  %s6 = inlined_call_operand.vmem [shape: f32[1,32], index: 6, kind: input, shape index: {}]
  %s7 = inlined_call_operand.vmem [shape: f32[16,32], index: 7, kind: output, shape index: {}]
  %s8 = sld [smem:[#allocation0]]
  $region38: #{cltsbr_forward.21} parent=0
    _
  %s10 = ssub.s32 1, %s8
  %s11 = scalar_select 0, %s10, %s8
  // Predicated region
  $region2: #{cltsbr_forward.21} parent=0 // pred_check
    _
  $region3: #{cltsbr_forward.21} parent=0 // pred_check_branch
    %13 = sbr.rel (0) target = $region5
  $region4: #{cltsbr_forward.21} parent=0 // pred_region
    _
  $region5: #{cltsbr_forward.21} parent=0 // pred_fallthru
    _
  // Predicated region
  $region6: #{cltsbr_forward.21} parent=0 // pred_check
    _
  $region7: #{cltsbr_forward.21} parent=0 // pred_check_branch
    %15 = sbr.rel (0) target = $region9
  $region8: #{cltsbr_forward.21} parent=0 // pred_region
    _
  $region9: #{cltsbr_forward.21} parent=0 // pred_fallthru
    _
  // Predicated region
  $region10: #{cltsbr_forward.21} parent=0 // pred_check
    _
  $region11: #{cltsbr_forward.21} parent=0 // pred_check_branch
    %17 = sbr.rel (0) target = $region13
  $region12: #{cltsbr_forward.21} parent=0 // pred_region
    _
  $region13: #{cltsbr_forward.21} parent=0 // pred_fallthru
    _
  // Predicated region
  $region14: #{cltsbr_forward.21} parent=0 // pred_check
    _
  $region15: #{cltsbr_forward.21} parent=0 // pred_check_branch
    %19 = sbr.rel (0) target = $region17
  $region16: #{cltsbr_forward.21} parent=0 // pred_region
    _
  $region17: #{cltsbr_forward.21} parent=0 // pred_fallthru
    _
  // Predicated region
  $region18: #{cltsbr_forward.21} parent=0 // pred_check
    _
  $region19: #{cltsbr_forward.21} parent=0 // pred_check_branch
    %21 = sbr.rel (0) target = $region21
  $region20: #{cltsbr_forward.21} parent=0 // pred_region
    _
  $region21: #{cltsbr_forward.21} parent=0 // pred_fallthru
    _
  // Predicated region
  $region22: #{cltsbr_forward.21} parent=0 // pred_check
    _
  $region23: #{cltsbr_forward.21} parent=0 // pred_check_branch
    %23 = sbr.rel (0) target = $region25
  $region24: #{cltsbr_forward.21} parent=0 // pred_region
    _
  $region25: #{cltsbr_forward.21} parent=0 // pred_fallthru
    _
  // Predicated region
  $region26: #{cltsbr_forward.21} parent=0 // pred_check
    _
  $region27: #{cltsbr_forward.21} parent=0 // pred_check_branch
    %25 = sbr.rel (0) target = $region29
  $region28: #{cltsbr_forward.21} parent=0 // pred_region
    _
  $region29: #{cltsbr_forward.21} parent=0 // pred_fallthru
    _
  %v27 = vld [vmem:[%s0] sm:$0xff]
  %v28 = vld [vmem:[%s0 + $0x8] sm:$0xff]
  %v29 = vld [vmem:[%s1] sm:$0x1]
  %v30 = vld [vmem:[%s2] sm:$0x1]
  %vm31 = vcmask 261120
  %v32 = vsel %vm31, %v27, 0.0
  %33 = vadd.xlane.f32.xlu0 %v32
  %v34 = vpop.xlane.xlu0 %33
  %v35 = vsel %vm31, %v28, 0.0
  %36 = vadd.xlane.f32.xlu0 %v35
  %v37 = vpop.xlane.xlu0 %36
  %v38 = vrcp.pop 32.0
  %v39 = vmul.f32 %v34, %v38
  %v40 = vmul.f32 %v37, %v38
  %v41 = vsub.f32 %v27, %v39
  %v42 = vsub.f32 %v28, %v40
  %v43 = vmul.f32 %v41, %v41
  %v44 = vmul.f32 %v42, %v42
  %v45 = vsel %vm31, %v43, 0.0
  %46 = vadd.xlane.f32.xlu0 %v45
  %v47 = vpop.xlane.xlu0 %46
  %v48 = vsel %vm31, %v44, 0.0
  %49 = vadd.xlane.f32.xlu0 %v48
  %v50 = vpop.xlane.xlu0 %49
  %v51 = vmul.f32 %v47, %v38
  %v52 = vmul.f32 %v50, %v38
  %v53 = vadd.f32 %v51, 1e-08
  %v54 = vadd.f32 %v52, 1e-08
  %v55 = vrsqrt.pop %v53
  %v56 = vrsqrt.pop %v54
  %v57 = vmul.f32 %v41, %v55
  %v58 = vmul.f32 %v42, %v56
  %v60 = vlaneseq
  %v61 = vshrl.u32 %v60, 7
  %v62 = vsub.s32 0, %v61
  %v63 = vrot.slane %v29, %v62
  %v65 = vmul.f32 %v57, %v63
  %v66 = vmul.f32 %v58, %v63
  %v68 = vlaneseq
  %v69 = vshrl.u32 %v68, 7
  %v70 = vsub.s32 0, %v69
  %v71 = vrot.slane %v30, %v70
  %v73 = vadd.f32 %v65, %v71
  %v74 = vadd.f32 %v66, %v71
  %v75 = vpack.c.bf16 %v74, %v73
  %v76 = vld [vmem:[%s3] sm:$0xf]
  %v77 = vld [vmem:[%s3 + $0x4] sm:$0xf]
  %v78 = vld [vmem:[%s3 + $0x8] sm:$0xf]
  %v79 = vld [vmem:[%s3 + $0xc] sm:$0xf]
  %v80 = vld [vmem:[%s4] sm:$0x1]
  %v82 = vlaneseq
  %v83 = vshrl.u32 %v82, 7
  %v84 = vsub.s32 0, %v83
  %v85 = vrot.slane %v80, %v84
  %v91 = vunpack.c.l.b16 %v76
  %v92 = vunpack.c.l.b16 %v77
  %v93 = vunpack.c.l.b16 %v78
  %v94 = vunpack.c.l.b16 %v79
  %v95 = vpack.c.b16 %v92, %v91
  %v96 = vpack.c.b16 %v94, %v93
  %v100 = vsel %vm31, %v75, 0
  %102 = vmatprep.subr.bf16.mxu0 0
  %103 = vmatpush1.bf16.msra.mxu0 %v95
  %104 = vmatprep.subr.bf16.mxu0 0
  %105 = vmatpush1.bf16.msra.mxu0 %v96
  %106 = vmatprep.subr.bf16.mxu0 0
  %107 = vmatpush1.bf16.msra.mxu0 0
  %108 = vmatprep.subr.bf16.mxu0 0
  %109 = vmatpush1.bf16.msra.mxu0 0
  %110 = vmatprep.subr.bf16.mxu0 0
  %111 = vmatpush1.bf16.msra.mxu0 0
  %112 = vmatprep.subr.bf16.mxu0 0
  %113 = vmatpush1.bf16.msra.mxu0 0
  %114 = vmatprep.subr.bf16.mxu0 0
  %115 = vmatpush1.bf16.msra.mxu0 0
  %116 = vmatprep.subr.bf16.mxu0 0
  %117 = vmatpush1.bf16.msra.mxu0 0
  %118 = vmatprep.subr.bf16.mxu0 0
  %119 = vmatpush1.bf16.msra.mxu0 0
  %120 = vmatprep.subr.bf16.mxu0 0
  %121 = vmatpush1.bf16.msra.mxu0 0
  %122 = vmatprep.subr.bf16.mxu0 0
  %123 = vmatpush1.bf16.msra.mxu0 0
  %124 = vmatprep.subr.bf16.mxu0 0
  %125 = vmatpush1.bf16.msra.mxu0 0
  %126 = vmatprep.subr.bf16.mxu0 0
  %127 = vmatpush1.bf16.msra.mxu0 0
  %128 = vmatprep.subr.bf16.mxu0 0
  %129 = vmatpush1.bf16.msra.mxu0 0
  %130 = vmatprep.subr.bf16.mxu0 0
  %131 = vmatpush1.bf16.msra.mxu0 0
  %132 = vmatprep.subr.bf16.mxu0 0
  %133 = vmatpush1.bf16.msra.mxu0 0
  %134 = vmatprep.mubr.bf16.mxu0 0
  %135 = vmatmul.mubr.bf16.gmra.mrb[0].mxu0 %v100
  %v136 = vpop.f32.mrb[0].mxu0
  %v137 = vadd.f32 %v85, %v136
  %v138 = vpop.f32.mrb[0].mxu0
  %v139 = vpop.f32.mrb[0].mxu0
  %v140 = vadd.f32 %v85, %v139
  %v141 = vpop.f32.mrb[0].mxu0
  %142 = vdwg.mxu0
  %v143 = vmax.f32 %v137, 0.0
  %v144 = vmax.f32 %v140, 0.0
  %v145 = vpack.c.bf16 %v144, %v143
  %v146 = vld [vmem:[%s5] sm:$0xf]
  %v147 = vld [vmem:[%s5 + $0x4] sm:$0xf]
  %v148 = vld [vmem:[%s5 + $0x8] sm:$0xf]
  %v149 = vld [vmem:[%s5 + $0xc] sm:$0xf]
  %v150 = vld [vmem:[%s6] sm:$0x1]
  %v152 = vlaneseq
  %v153 = vshrl.u32 %v152, 7
  %v154 = vsub.s32 0, %v153
  %v155 = vrot.slane %v150, %v154
  %v161 = vunpack.c.l.b16 %v146
  %v162 = vunpack.c.l.b16 %v147
  %v163 = vunpack.c.l.b16 %v148
  %v164 = vunpack.c.l.b16 %v149
  %v165 = vpack.c.b16 %v162, %v161
  %v166 = vpack.c.b16 %v164, %v163
  %v170 = vsel %vm31, %v145, 0
  %172 = vmatprep.subr.bf16.mxu0 0
  %173 = vmatpush1.bf16.msra.mxu0 %v165
  %174 = vmatprep.subr.bf16.mxu0 0
  %175 = vmatpush1.bf16.msra.mxu0 %v166
  %176 = vmatprep.subr.bf16.mxu0 0
  %177 = vmatpush1.bf16.msra.mxu0 0
  %178 = vmatprep.subr.bf16.mxu0 0
  %179 = vmatpush1.bf16.msra.mxu0 0
  %180 = vmatprep.subr.bf16.mxu0 0
  %181 = vmatpush1.bf16.msra.mxu0 0
  %182 = vmatprep.subr.bf16.mxu0 0
  %183 = vmatpush1.bf16.msra.mxu0 0
  %184 = vmatprep.subr.bf16.mxu0 0
  %185 = vmatpush1.bf16.msra.mxu0 0
  %186 = vmatprep.subr.bf16.mxu0 0
  %187 = vmatpush1.bf16.msra.mxu0 0
  %188 = vmatprep.subr.bf16.mxu0 0
  %189 = vmatpush1.bf16.msra.mxu0 0
  %190 = vmatprep.subr.bf16.mxu0 0
  %191 = vmatpush1.bf16.msra.mxu0 0
  %192 = vmatprep.subr.bf16.mxu0 0
  %193 = vmatpush1.bf16.msra.mxu0 0
  %194 = vmatprep.subr.bf16.mxu0 0
  %195 = vmatpush1.bf16.msra.mxu0 0
  %196 = vmatprep.subr.bf16.mxu0 0
  %197 = vmatpush1.bf16.msra.mxu0 0
  %198 = vmatprep.subr.bf16.mxu0 0
  %199 = vmatpush1.bf16.msra.mxu0 0
  %200 = vmatprep.subr.bf16.mxu0 0
  %201 = vmatpush1.bf16.msra.mxu0 0
  %202 = vmatprep.subr.bf16.mxu0 0
  %203 = vmatpush1.bf16.msra.mxu0 0
  %204 = vmatprep.mubr.bf16.mxu0 0
  %205 = vmatmul.mubr.bf16.gmra.mrb[0].mxu0 %v170
  %v206 = vpop.f32.mrb[0].mxu0
  %v207 = vadd.f32 %v155, %v206
  %v208 = vpop.f32.mrb[0].mxu0
  %v209 = vpop.f32.mrb[0].mxu0
  %v210 = vadd.f32 %v155, %v209
  %v211 = vpop.f32.mrb[0].mxu0
  %212 = vdwg.mxu0
  %v213 = vadd.f32 %v207, %v73
  %v214 = vadd.f32 %v210, %v74
  %215 = vst.msk [vmem:[%s7] sm:$0xff] %vm31, %v213
  %216 = vst.msk [vmem:[%s7 + $0x8] sm:$0xff] %vm31, %v214
  // Predicated region
  $region30: #{cltsbr_forward.21} parent=0 // pred_check
    _
  $region31: #{cltsbr_forward.21} parent=0 // pred_check_branch
    %218 = sbr.rel (0) target = $region33
  $region32: #{cltsbr_forward.21} parent=0 // pred_region
    _
  $region33: #{cltsbr_forward.21} parent=0 // pred_fallthru
    _
  // Predicated region
  $region34: #{cltsbr_forward.21} parent=0 // pred_check
    _
  $region35: #{cltsbr_forward.21} parent=0 // pred_check_branch
    %220 = sbr.rel (0) target = $region37
  $region36: #{cltsbr_forward.21} parent=0 // pred_region
    _
  $region37: #{cltsbr_forward.21} parent=0 // pred_fallthru
    _

// kernel: cltsbr_forward.18
$region0: #{cltsbr_forward.18}
  #allocation0 [shape = 'u32[]', space=smem, size = 0x4, offset = 0x4, fixed_abs, tag = 'smem constant byte address 0x4 - core index']
  #allocation1 [shape = 'u32[144,128]{1,0:T(1,128)}', space=vmem, size = 0x12000, scoped, tag = 'internal scratch']
  %s0 = inlined_call_operand.vmem [shape: f32[16,32], index: 0, kind: input, shape index: {}]
  %s1 = inlined_call_operand.vmem [shape: f32[1,32], index: 1, kind: input, shape index: {}]
  %s2 = inlined_call_operand.vmem [shape: f32[1,32], index: 2, kind: input, shape index: {}]
  %s3 = inlined_call_operand.vmem [shape: bf16[32,32], index: 3, kind: input, shape index: {}]
  %s4 = inlined_call_operand.vmem [shape: f32[1,32], index: 4, kind: input, shape index: {}]
  %s5 = inlined_call_operand.vmem [shape: bf16[32,64], index: 5, kind: input, shape index: {}]
  %s6 = inlined_call_operand.vmem [shape: f32[1,64], index: 6, kind: input, shape index: {}]
  %s7 = inlined_call_operand.vmem [shape: f32[16,32], index: 7, kind: output, shape index: {0}]
  %s8 = inlined_call_operand.vmem [shape: bf16[16,32], index: 8, kind: output, shape index: {1}]
  %s9 = inlined_call_operand.vmem [shape: bf16[16,64], index: 9, kind: output, shape index: {2}]
  %10 = xla_tuple %s7, %s8, %s9
  %s11 = sld [smem:[#allocation0]]
  $region54: #{cltsbr_forward.18} parent=0
    _
  %s13 = ssub.s32 1, %s11
  %s14 = scalar_select 0, %s13, %s11
  // Predicated region
  $region2: #{cltsbr_forward.18} parent=0 // pred_check
    _
  $region3: #{cltsbr_forward.18} parent=0 // pred_check_branch
    %16 = sbr.rel (0) target = $region5
  $region4: #{cltsbr_forward.18} parent=0 // pred_region
    _
  $region5: #{cltsbr_forward.18} parent=0 // pred_fallthru
    _
  // Predicated region
  $region6: #{cltsbr_forward.18} parent=0 // pred_check
    _
  $region7: #{cltsbr_forward.18} parent=0 // pred_check_branch
    %18 = sbr.rel (0) target = $region9
  $region8: #{cltsbr_forward.18} parent=0 // pred_region
    _
  $region9: #{cltsbr_forward.18} parent=0 // pred_fallthru
    _
  // Predicated region
  $region10: #{cltsbr_forward.18} parent=0 // pred_check
    _
  $region11: #{cltsbr_forward.18} parent=0 // pred_check_branch
    %20 = sbr.rel (0) target = $region13
  $region12: #{cltsbr_forward.18} parent=0 // pred_region
    _
  $region13: #{cltsbr_forward.18} parent=0 // pred_fallthru
    _
  // Predicated region
  $region14: #{cltsbr_forward.18} parent=0 // pred_check
    _
  $region15: #{cltsbr_forward.18} parent=0 // pred_check_branch
    %22 = sbr.rel (0) target = $region17
  $region16: #{cltsbr_forward.18} parent=0 // pred_region
    _
  $region17: #{cltsbr_forward.18} parent=0 // pred_fallthru
    _
  // Predicated region
  $region18: #{cltsbr_forward.18} parent=0 // pred_check
    _
  $region19: #{cltsbr_forward.18} parent=0 // pred_check_branch
    %24 = sbr.rel (0) target = $region21
  $region20: #{cltsbr_forward.18} parent=0 // pred_region
    _
  $region21: #{cltsbr_forward.18} parent=0 // pred_fallthru
    _
  // Predicated region
  $region22: #{cltsbr_forward.18} parent=0 // pred_check
    _
  $region23: #{cltsbr_forward.18} parent=0 // pred_check_branch
    %26 = sbr.rel (0) target = $region25
  $region24: #{cltsbr_forward.18} parent=0 // pred_region
    _
  $region25: #{cltsbr_forward.18} parent=0 // pred_fallthru
    _
  // Predicated region
  $region26: #{cltsbr_forward.18} parent=0 // pred_check
    _
  $region27: #{cltsbr_forward.18} parent=0 // pred_check_branch
    %28 = sbr.rel (0) target = $region29
  $region28: #{cltsbr_forward.18} parent=0 // pred_region
    _
  $region29: #{cltsbr_forward.18} parent=0 // pred_fallthru
    _
  %v30 = vld [vmem:[%s0] sm:$0xff]
  %v31 = vld [vmem:[%s0 + $0x8] sm:$0xff]
  %v32 = vld [vmem:[%s1] sm:$0x1]
  %v33 = vld [vmem:[%s2] sm:$0x1]
  %vm34 = vcmask 261120
  %v35 = vsel %vm34, %v30, 0.0
  %36 = vadd.xlane.f32.xlu0 %v35
  %v37 = vpop.xlane.xlu0 %36
  %v38 = vsel %vm34, %v31, 0.0
  %39 = vadd.xlane.f32.xlu0 %v38
  %v40 = vpop.xlane.xlu0 %39
  %v41 = vrcp.pop 32.0
  %v42 = vmul.f32 %v37, %v41
  %v43 = vmul.f32 %v40, %v41
  %v44 = vsub.f32 %v30, %v42
  %v45 = vsub.f32 %v31, %v43
  %v46 = vmul.f32 %v44, %v44
  %v47 = vmul.f32 %v45, %v45
  %v48 = vsel %vm34, %v46, 0.0
  %49 = vadd.xlane.f32.xlu0 %v48
  %v50 = vpop.xlane.xlu0 %49
  %v51 = vsel %vm34, %v47, 0.0
  %52 = vadd.xlane.f32.xlu0 %v51
  %v53 = vpop.xlane.xlu0 %52
  %v54 = vmul.f32 %v50, %v41
  %v55 = vmul.f32 %v53, %v41
  %v56 = vadd.f32 %v54, 1e-08
  %v57 = vadd.f32 %v55, 1e-08
  %v58 = vrsqrt.pop %v56
  %v59 = vrsqrt.pop %v57
  %v60 = vmul.f32 %v44, %v58
  %v61 = vmul.f32 %v45, %v59
  %v63 = vlaneseq
  %v64 = vshrl.u32 %v63, 7
  %v65 = vsub.s32 0, %v64
  %v66 = vrot.slane %v32, %v65
  %v68 = vmul.f32 %v60, %v66
  %v69 = vmul.f32 %v61, %v66
  %v71 = vlaneseq
  %v72 = vshrl.u32 %v71, 7
  %v73 = vsub.s32 0, %v72
  %v74 = vrot.slane %v33, %v73
  %v76 = vadd.f32 %v68, %v74
  %v77 = vadd.f32 %v69, %v74
  %78 = vst.msk [vmem:[%s7] sm:$0xff] %vm34, %v76
  %79 = vst.msk [vmem:[%s7 + $0x8] sm:$0xff] %vm34, %v77
  %v80 = vpack.c.bf16 %v77, %v76
  %v81 = vld [vmem:[%s3] sm:$0xf]
  %v82 = vld [vmem:[%s3 + $0x4] sm:$0xf]
  %v83 = vld [vmem:[%s3 + $0x8] sm:$0xf]
  %v84 = vld [vmem:[%s3 + $0xc] sm:$0xf]
  %v85 = vld [vmem:[%s4] sm:$0x1]
  %v87 = vlaneseq
  %v88 = vshrl.u32 %v87, 7
  %v89 = vsub.s32 0, %v88
  %v90 = vrot.slane %v85, %v89
  %v96 = vunpack.c.l.b16 %v81
  %v97 = vunpack.c.l.b16 %v82
  %v98 = vunpack.c.l.b16 %v83
  %v99 = vunpack.c.l.b16 %v84
  %v100 = vpack.c.b16 %v97, %v96
  %v101 = vpack.c.b16 %v99, %v98
  %v105 = vsel %vm34, %v80, 0
  %107 = vmatprep.subr.bf16.mxu0 0
  %108 = vmatpush1.bf16.msra.mxu0 %v100
  %109 = vmatprep.subr.bf16.mxu0 0
  %110 = vmatpush1.bf16.msra.mxu0 %v101
  %111 = vmatprep.subr.bf16.mxu0 0
  %112 = vmatpush1.bf16.msra.mxu0 0
  %113 = vmatprep.subr.bf16.mxu0 0
  %114 = vmatpush1.bf16.msra.mxu0 0
  %115 = vmatprep.subr.bf16.mxu0 0
  %116 = vmatpush1.bf16.msra.mxu0 0
  %117 = vmatprep.subr.bf16.mxu0 0
  %118 = vmatpush1.bf16.msra.mxu0 0
  %119 = vmatprep.subr.bf16.mxu0 0
  %120 = vmatpush1.bf16.msra.mxu0 0
  %121 = vmatprep.subr.bf16.mxu0 0
  %122 = vmatpush1.bf16.msra.mxu0 0
  %123 = vmatprep.subr.bf16.mxu0 0
  %124 = vmatpush1.bf16.msra.mxu0 0
  %125 = vmatprep.subr.bf16.mxu0 0
  %126 = vmatpush1.bf16.msra.mxu0 0
  %127 = vmatprep.subr.bf16.mxu0 0
  %128 = vmatpush1.bf16.msra.mxu0 0
  %129 = vmatprep.subr.bf16.mxu0 0
  %130 = vmatpush1.bf16.msra.mxu0 0
  %131 = vmatprep.subr.bf16.mxu0 0
  %132 = vmatpush1.bf16.msra.mxu0 0
  %133 = vmatprep.subr.bf16.mxu0 0
  %134 = vmatpush1.bf16.msra.mxu0 0
  %135 = vmatprep.subr.bf16.mxu0 0
  %136 = vmatpush1.bf16.msra.mxu0 0
  %137 = vmatprep.subr.bf16.mxu0 0
  %138 = vmatpush1.bf16.msra.mxu0 0
  %139 = vmatprep.mubr.bf16.mxu0 0
  %140 = vmatmul.mubr.bf16.gmra.mrb[0].mxu0 %v105
  %v141 = vpop.f32.mrb[0].mxu0
  %v142 = vadd.f32 %v90, %v141
  %v143 = vpop.f32.mrb[0].mxu0
  %v144 = vpop.f32.mrb[0].mxu0
  %v145 = vadd.f32 %v90, %v144
  %v146 = vpop.f32.mrb[0].mxu0
  %147 = vdwg.mxu0
  %v148 = vpack.c.bf16 %v145, %v142
  %v150 = vunpack.c.l.b16 %v148
  %v151 = vunpack.c.h.b16 %v148
  %v152 = vpack.c.b16 %v150, %v150
  %v153 = vpack.c.b16 %v151, %v151
  %vm156 = vcmask 257024
  %157 = vst.msk [vmem:[%s8] sm:$0xf] %vm156, %v152
  %158 = vst.msk [vmem:[%s8 + $0x4] sm:$0xf] %vm156, %v153
  %v159 = vpack.c.bf16 %v31, %v30
  %v160 = vld [vmem:[%s5] sm:$0xf]
  %v161 = vld [vmem:[%s5 + $0x4] sm:$0xf]
  %v162 = vld [vmem:[%s5 + $0x8] sm:$0xf]
  %v163 = vld [vmem:[%s5 + $0xc] sm:$0xf]
  %v164 = vld [vmem:[%s6] sm:$0x1]
  %v166 = vlaneseq
  %v167 = vshrl.u32 %v166, 7
  %v168 = vsub.s32 0, %v167
  %v169 = vrot.slane %v164, %v168
  %v175 = vunpack.c.l.b16 %v160
  %v176 = vunpack.c.l.b16 %v161
  %v177 = vunpack.c.l.b16 %v162
  %v178 = vunpack.c.l.b16 %v163
  %v179 = vpack.c.b16 %v176, %v175
  %v180 = vpack.c.b16 %v178, %v177
  %v184 = vsel %vm34, %v159, 0
  %186 = vmatprep.subr.bf16.mxu0 0
  %187 = vmatpush1.bf16.msra.mxu0 %v179
  %188 = vmatprep.subr.bf16.mxu0 0
  %189 = vmatpush1.bf16.msra.mxu0 %v180
  %190 = vmatprep.subr.bf16.mxu0 0
  %191 = vmatpush1.bf16.msra.mxu0 0
  %192 = vmatprep.subr.bf16.mxu0 0
  %193 = vmatpush1.bf16.msra.mxu0 0
  %194 = vmatprep.subr.bf16.mxu0 0
  %195 = vmatpush1.bf16.msra.mxu0 0
  %196 = vmatprep.subr.bf16.mxu0 0
  %197 = vmatpush1.bf16.msra.mxu0 0
  %198 = vmatprep.subr.bf16.mxu0 0
  %199 = vmatpush1.bf16.msra.mxu0 0
  %200 = vmatprep.subr.bf16.mxu0 0
  %201 = vmatpush1.bf16.msra.mxu0 0
  %202 = vmatprep.subr.bf16.mxu0 0
  %203 = vmatpush1.bf16.msra.mxu0 0
  %204 = vmatprep.subr.bf16.mxu0 0
  %205 = vmatpush1.bf16.msra.mxu0 0
  %206 = vmatprep.subr.bf16.mxu0 0
  %207 = vmatpush1.bf16.msra.mxu0 0
  %208 = vmatprep.subr.bf16.mxu0 0
  %209 = vmatpush1.bf16.msra.mxu0 0
  %210 = vmatprep.subr.bf16.mxu0 0
  %211 = vmatpush1.bf16.msra.mxu0 0
  %212 = vmatprep.subr.bf16.mxu0 0
  %213 = vmatpush1.bf16.msra.mxu0 0
  %214 = vmatprep.subr.bf16.mxu0 0
  %215 = vmatpush1.bf16.msra.mxu0 0
  %216 = vmatprep.subr.bf16.mxu0 0
  %217 = vmatpush1.bf16.msra.mxu0 0
  %218 = vmatprep.mubr.bf16.mxu0 0
  %219 = vmatmul.mubr.bf16.gmra.mrb[0].mxu0 %v184
  %v220 = vpop.f32.mrb[0].mxu0
  %v221 = vadd.f32 %v169, %v220
  %v222 = vpop.f32.mrb[0].mxu0
  %v223 = vpop.f32.mrb[0].mxu0
  %v224 = vadd.f32 %v169, %v223
  %v225 = vpop.f32.mrb[0].mxu0
  %226 = vdwg.mxu0
  %v227 = vpack.c.bf16 %v224, %v221
  %v229 = vunpack.c.l.b16 %v227
  %v230 = vunpack.c.h.b16 %v227
  %v231 = vpack.c.b16 %v229, %v229
  %v232 = vpack.c.b16 %v230, %v230
  %vm235 = vcmask 519168
  %236 = vst.msk [vmem:[%s9] sm:$0xf] %vm235, %v231
  %237 = vst.msk [vmem:[%s9 + $0x4] sm:$0xf] %vm235, %v232
  // Predicated region
  $region30: #{cltsbr_forward.18} parent=0 // pred_check
    _
  $region31: #{cltsbr_forward.18} parent=0 // pred_check_branch
    %239 = sbr.rel (0) target = $region33
  $region32: #{cltsbr_forward.18} parent=0 // pred_region
    _
  $region33: #{cltsbr_forward.18} parent=0 // pred_fallthru
    _
  // Predicated region
  $region34: #{cltsbr_forward.18} parent=0 // pred_check
    _
  $region35: #{cltsbr_forward.18} parent=0 // pred_check_branch
    %241 = sbr.rel (0) target = $region37
  $region36: #{cltsbr_forward.18} parent=0 // pred_region
    _
  $region37: #{cltsbr_forward.18} parent=0 // pred_fallthru
    _
  // Predicated region
  $region38: #{cltsbr_forward.18} parent=0 // pred_check
    _
  $region39: #{cltsbr_forward.18} parent=0 // pred_check_branch
    %243 = sbr.rel (0) target = $region41
  $region40: #{cltsbr_forward.18} parent=0 // pred_region
    _
  $region41: #{cltsbr_forward.18} parent=0 // pred_fallthru
    _
  // Predicated region
  $region42: #{cltsbr_forward.18} parent=0 // pred_check
    _
  $region43: #{cltsbr_forward.18} parent=0 // pred_check_branch
    %245 = sbr.rel (0) target = $region45
  $region44: #{cltsbr_forward.18} parent=0 // pred_region
    _
  $region45: #{cltsbr_forward.18} parent=0 // pred_fallthru
    _
  // Predicated region
  $region46: #{cltsbr_forward.18} parent=0 // pred_check
    _
  $region47: #{cltsbr_forward.18} parent=0 // pred_check_branch
    %247 = sbr.rel (0) target = $region49
  $region48: #{cltsbr_forward.18} parent=0 // pred_region
    _
  $region49: #{cltsbr_forward.18} parent=0 // pred_fallthru
    _
  // Predicated region
  $region50: #{cltsbr_forward.18} parent=0 // pred_check
    _
  $region51: #{cltsbr_forward.18} parent=0 // pred_check_branch
    %249 = sbr.rel (0) target = $region53
  $region52: #{cltsbr_forward.18} parent=0 // pred_region
    _
  $region53: #{cltsbr_forward.18} parent=0 // pred_fallthru
    _

// kernel: cltsbr_forward.27
$region0: #{cltsbr_forward.27}
  #allocation0 [shape = 'u32[]', space=smem, size = 0x4, offset = 0x4, fixed_abs, tag = 'smem constant byte address 0x4 - core index']
  #allocation1 [shape = 'u32[144,128]{1,0:T(1,128)}', space=vmem, size = 0x12000, scoped, tag = 'internal scratch']
  %s0 = inlined_call_operand.vmem [shape: f32[16,32], index: 0, kind: input, shape index: {}]
  %s1 = inlined_call_operand.vmem [shape: bf16[32,96], index: 1, kind: input, shape index: {}]
  %s2 = inlined_call_operand.vmem [shape: f32[1,96], index: 2, kind: input, shape index: {}]
  %s3 = inlined_call_operand.vmem [shape: bf16[16,96], index: 3, kind: output, shape index: {}]
  %s4 = sld [smem:[#allocation0]]
  $region22: #{cltsbr_forward.27} parent=0
    _
  %s6 = ssub.s32 1, %s4
  %s7 = scalar_select 0, %s6, %s4
  // Predicated region
  $region2: #{cltsbr_forward.27} parent=0 // pred_check
    _
  $region3: #{cltsbr_forward.27} parent=0 // pred_check_branch
    %9 = sbr.rel (0) target = $region5
  $region4: #{cltsbr_forward.27} parent=0 // pred_region
    _
  $region5: #{cltsbr_forward.27} parent=0 // pred_fallthru
    _
  // Predicated region
  $region6: #{cltsbr_forward.27} parent=0 // pred_check
    _
  $region7: #{cltsbr_forward.27} parent=0 // pred_check_branch
    %11 = sbr.rel (0) target = $region9
  $region8: #{cltsbr_forward.27} parent=0 // pred_region
    _
  $region9: #{cltsbr_forward.27} parent=0 // pred_fallthru
    _
  // Predicated region
  $region10: #{cltsbr_forward.27} parent=0 // pred_check
    _
  $region11: #{cltsbr_forward.27} parent=0 // pred_check_branch
    %13 = sbr.rel (0) target = $region13
  $region12: #{cltsbr_forward.27} parent=0 // pred_region
    _
  $region13: #{cltsbr_forward.27} parent=0 // pred_fallthru
    _
  %v15 = vld [vmem:[%s0] sm:$0xff]
  %v16 = vld [vmem:[%s0 + $0x8] sm:$0xff]
  %v17 = vpack.c.bf16 %v16, %v15
  %v18 = vld [vmem:[%s1] sm:$0xf]
  %v19 = vld [vmem:[%s1 + $0x4] sm:$0xf]
  %v20 = vld [vmem:[%s1 + $0x8] sm:$0xf]
  %v21 = vld [vmem:[%s1 + $0xc] sm:$0xf]
  %v22 = vld [vmem:[%s2] sm:$0x1]
  %v24 = vlaneseq
  %v25 = vshrl.u32 %v24, 7
  %v26 = vsub.s32 0, %v25
  %v27 = vrot.slane %v22, %v26
  %v33 = vunpack.c.l.b16 %v18
  %v34 = vunpack.c.l.b16 %v19
  %v35 = vunpack.c.l.b16 %v20
  %v36 = vunpack.c.l.b16 %v21
  %v37 = vpack.c.b16 %v34, %v33
  %v38 = vpack.c.b16 %v36, %v35
  %vm41 = vcmask 261120
  %v43 = vsel %vm41, %v17, 0
  %45 = vmatprep.subr.bf16.mxu0 0
  %46 = vmatpush1.bf16.msra.mxu0 %v37
  %47 = vmatprep.subr.bf16.mxu0 0
  %48 = vmatpush1.bf16.msra.mxu0 %v38
  %49 = vmatprep.subr.bf16.mxu0 0
  %50 = vmatpush1.bf16.msra.mxu0 0
  %51 = vmatprep.subr.bf16.mxu0 0
  %52 = vmatpush1.bf16.msra.mxu0 0
  %53 = vmatprep.subr.bf16.mxu0 0
  %54 = vmatpush1.bf16.msra.mxu0 0
  %55 = vmatprep.subr.bf16.mxu0 0
  %56 = vmatpush1.bf16.msra.mxu0 0
  %57 = vmatprep.subr.bf16.mxu0 0
  %58 = vmatpush1.bf16.msra.mxu0 0
  %59 = vmatprep.subr.bf16.mxu0 0
  %60 = vmatpush1.bf16.msra.mxu0 0
  %61 = vmatprep.subr.bf16.mxu0 0
  %62 = vmatpush1.bf16.msra.mxu0 0
  %63 = vmatprep.subr.bf16.mxu0 0
  %64 = vmatpush1.bf16.msra.mxu0 0
  %65 = vmatprep.subr.bf16.mxu0 0
  %66 = vmatpush1.bf16.msra.mxu0 0
  %67 = vmatprep.subr.bf16.mxu0 0
  %68 = vmatpush1.bf16.msra.mxu0 0
  %69 = vmatprep.subr.bf16.mxu0 0
  %70 = vmatpush1.bf16.msra.mxu0 0
  %71 = vmatprep.subr.bf16.mxu0 0
  %72 = vmatpush1.bf16.msra.mxu0 0
  %73 = vmatprep.subr.bf16.mxu0 0
  %74 = vmatpush1.bf16.msra.mxu0 0
  %75 = vmatprep.subr.bf16.mxu0 0
  %76 = vmatpush1.bf16.msra.mxu0 0
  %77 = vmatprep.mubr.bf16.mxu0 0
  %78 = vmatmul.mubr.bf16.gmra.mrb[0].mxu0 %v43
  %v79 = vpop.f32.mrb[0].mxu0
  %v80 = vadd.f32 %v27, %v79
  %v81 = vpop.f32.mrb[0].mxu0
  %v82 = vpop.f32.mrb[0].mxu0
  %v83 = vadd.f32 %v27, %v82
  %v84 = vpop.f32.mrb[0].mxu0
  %85 = vdwg.mxu0
  %v86 = vpack.c.bf16 %v83, %v80
  %v88 = vunpack.c.l.b16 %v86
  %v89 = vunpack.c.h.b16 %v86
  %v90 = vpack.c.b16 %v88, %v88
  %v91 = vpack.c.b16 %v89, %v89
  %vm94 = vcmask 781312
  %95 = vst.msk [vmem:[%s3] sm:$0xf] %vm94, %v90
  %96 = vst.msk [vmem:[%s3 + $0x4] sm:$0xf] %vm94, %v91
  // Predicated region
  $region14: #{cltsbr_forward.27} parent=0 // pred_check
    _
  $region15: #{cltsbr_forward.27} parent=0 // pred_check_branch
    %98 = sbr.rel (0) target = $region17
  $region16: #{cltsbr_forward.27} parent=0 // pred_region
    _
  $region17: #{cltsbr_forward.27} parent=0 // pred_fallthru
    _
  // Predicated region
  $region18: #{cltsbr_forward.27} parent=0 // pred_check
    _
  $region19: #{cltsbr_forward.27} parent=0 // pred_check_branch
    %100 = sbr.rel (0) target = $region21
  $region20: #{cltsbr_forward.27} parent=0 // pred_region
    _
  $region21: #{cltsbr_forward.27} parent=0 // pred_fallthru
    _

// kernel: cltsbr_forward.26
$region0: #{cltsbr_forward.26}
  #allocation0 [shape = 'u32[]', space=smem, size = 0x4, offset = 0x4, fixed_abs, tag = 'smem constant byte address 0x4 - core index']
  #allocation1 [shape = 'u32[144,128]{1,0:T(1,128)}', space=vmem, size = 0x12000, scoped, tag = 'internal scratch']
  %s0 = inlined_call_operand.vmem [shape: f32[16,32], index: 0, kind: input, shape index: {}]
  %s1 = inlined_call_operand.vmem [shape: f32[1,32], index: 1, kind: input, shape index: {}]
  %s2 = inlined_call_operand.vmem [shape: f32[1,32], index: 2, kind: input, shape index: {}]
  %s3 = inlined_call_operand.vmem [shape: f32[16,32], index: 3, kind: output, shape index: {}]
  %s4 = sld [smem:[#allocation0]]
  $region22: #{cltsbr_forward.26} parent=0
    _
  %s6 = ssub.s32 1, %s4
  %s7 = scalar_select 0, %s6, %s4
  // Predicated region
  $region2: #{cltsbr_forward.26} parent=0 // pred_check
    _
  $region3: #{cltsbr_forward.26} parent=0 // pred_check_branch
    %9 = sbr.rel (0) target = $region5
  $region4: #{cltsbr_forward.26} parent=0 // pred_region
    _
  $region5: #{cltsbr_forward.26} parent=0 // pred_fallthru
    _
  // Predicated region
  $region6: #{cltsbr_forward.26} parent=0 // pred_check
    _
  $region7: #{cltsbr_forward.26} parent=0 // pred_check_branch
    %11 = sbr.rel (0) target = $region9
  $region8: #{cltsbr_forward.26} parent=0 // pred_region
    _
  $region9: #{cltsbr_forward.26} parent=0 // pred_fallthru
    _
  // Predicated region
  $region10: #{cltsbr_forward.26} parent=0 // pred_check
    _
  $region11: #{cltsbr_forward.26} parent=0 // pred_check_branch
    %13 = sbr.rel (0) target = $region13
  $region12: #{cltsbr_forward.26} parent=0 // pred_region
    _
  $region13: #{cltsbr_forward.26} parent=0 // pred_fallthru
    _
  %v14 = vld [vmem:[%s0] sm:$0xff]
  %v15 = vld [vmem:[%s0 + $0x8] sm:$0xff]
  %v16 = vld [vmem:[%s1] sm:$0x1]
  %v17 = vld [vmem:[%s2] sm:$0x1]
  %vm18 = vcmask 261120
  %v19 = vsel %vm18, %v14, 0.0
  %20 = vadd.xlane.f32.xlu0 %v19
  %v21 = vpop.xlane.xlu0 %20
  %v22 = vsel %vm18, %v15, 0.0
  %23 = vadd.xlane.f32.xlu0 %v22
  %v24 = vpop.xlane.xlu0 %23
  %v25 = vrcp.pop 32.0
  %v26 = vmul.f32 %v21, %v25
  %v27 = vmul.f32 %v24, %v25
  %v28 = vsub.f32 %v14, %v26
  %v29 = vsub.f32 %v15, %v27
  %v30 = vmul.f32 %v28, %v28
  %v31 = vmul.f32 %v29, %v29
  %v32 = vsel %vm18, %v30, 0.0
  %33 = vadd.xlane.f32.xlu0 %v32
  %v34 = vpop.xlane.xlu0 %33
  %v35 = vsel %vm18, %v31, 0.0
  %36 = vadd.xlane.f32.xlu0 %v35
  %v37 = vpop.xlane.xlu0 %36
  %v38 = vmul.f32 %v34, %v25
  %v39 = vmul.f32 %v37, %v25
  %v40 = vadd.f32 %v38, 1e-08
  %v41 = vadd.f32 %v39, 1e-08
  %v42 = vrsqrt.pop %v40
  %v43 = vrsqrt.pop %v41
  %v44 = vmul.f32 %v28, %v42
  %v45 = vmul.f32 %v29, %v43
  %v47 = vlaneseq
  %v48 = vshrl.u32 %v47, 7
  %v49 = vsub.s32 0, %v48
  %v50 = vrot.slane %v16, %v49
  %v52 = vmul.f32 %v44, %v50
  %v53 = vmul.f32 %v45, %v50
  %v55 = vlaneseq
  %v56 = vshrl.u32 %v55, 7
  %v57 = vsub.s32 0, %v56
  %v58 = vrot.slane %v17, %v57
  %v60 = vadd.f32 %v52, %v58
  %v61 = vadd.f32 %v53, %v58
  %62 = vst.msk [vmem:[%s3] sm:$0xff] %vm18, %v60
  %63 = vst.msk [vmem:[%s3 + $0x8] sm:$0xff] %vm18, %v61
  // Predicated region
  $region14: #{cltsbr_forward.26} parent=0 // pred_check
    _
  $region15: #{cltsbr_forward.26} parent=0 // pred_check_branch
    %65 = sbr.rel (0) target = $region17
  $region16: #{cltsbr_forward.26} parent=0 // pred_region
    _
  $region17: #{cltsbr_forward.26} parent=0 // pred_fallthru
    _
  // Predicated region
  $region18: #{cltsbr_forward.26} parent=0 // pred_check
    _
  $region19: #{cltsbr_forward.26} parent=0 // pred_check_branch
    %67 = sbr.rel (0) target = $region21
  $region20: #{cltsbr_forward.26} parent=0 // pred_region
    _
  $region21: #{cltsbr_forward.26} parent=0 // pred_fallthru
    _

// kernel: cltsbr_forward.29
$region0: #{cltsbr_forward.29}
  #allocation0 [shape = 'u32[]', space=smem, size = 0x4, offset = 0x4, fixed_abs, tag = 'smem constant byte address 0x4 - core index']
  #allocation1 [shape = 'u32[144,128]{1,0:T(1,128)}', space=vmem, size = 0x12000, scoped, tag = 'internal scratch']
  %s0 = inlined_call_operand.vmem [shape: bf16[16,32], index: 0, kind: input, shape index: {}]
  %s1 = inlined_call_operand.vmem [shape: bf16[32,32], index: 1, kind: input, shape index: {}]
  %s2 = inlined_call_operand.vmem [shape: f32[1,32], index: 2, kind: input, shape index: {}]
  %s3 = inlined_call_operand.vmem [shape: f32[16,32], index: 3, kind: input, shape index: {}]
  %s4 = inlined_call_operand.vmem [shape: f32[1,32], index: 4, kind: input, shape index: {}]
  %s5 = inlined_call_operand.vmem [shape: f32[1,32], index: 5, kind: input, shape index: {}]
  %s6 = inlined_call_operand.vmem [shape: f32[16,32], index: 6, kind: output, shape index: {}]
  %s7 = sld [smem:[#allocation0]]
  $region34: #{cltsbr_forward.29} parent=0
    _
  %s9 = ssub.s32 1, %s7
  %s10 = scalar_select 0, %s9, %s7
  // Predicated region
  $region2: #{cltsbr_forward.29} parent=0 // pred_check
    _
  $region3: #{cltsbr_forward.29} parent=0 // pred_check_branch
    %12 = sbr.rel (0) target = $region5
  $region4: #{cltsbr_forward.29} parent=0 // pred_region
    _
  $region5: #{cltsbr_forward.29} parent=0 // pred_fallthru
    _
  // Predicated region
  $region6: #{cltsbr_forward.29} parent=0 // pred_check
    _
  $region7: #{cltsbr_forward.29} parent=0 // pred_check_branch
    %14 = sbr.rel (0) target = $region9
  $region8: #{cltsbr_forward.29} parent=0 // pred_region
    _
  $region9: #{cltsbr_forward.29} parent=0 // pred_fallthru
    _
  // Predicated region
  $region10: #{cltsbr_forward.29} parent=0 // pred_check
    _
  $region11: #{cltsbr_forward.29} parent=0 // pred_check_branch
    %16 = sbr.rel (0) target = $region13
  $region12: #{cltsbr_forward.29} parent=0 // pred_region
    _
  $region13: #{cltsbr_forward.29} parent=0 // pred_fallthru
    _
  // Predicated region
  $region14: #{cltsbr_forward.29} parent=0 // pred_check
    _
  $region15: #{cltsbr_forward.29} parent=0 // pred_check_branch
    %18 = sbr.rel (0) target = $region17
  $region16: #{cltsbr_forward.29} parent=0 // pred_region
    _
  $region17: #{cltsbr_forward.29} parent=0 // pred_fallthru
    _
  // Predicated region
  $region18: #{cltsbr_forward.29} parent=0 // pred_check
    _
  $region19: #{cltsbr_forward.29} parent=0 // pred_check_branch
    %20 = sbr.rel (0) target = $region21
  $region20: #{cltsbr_forward.29} parent=0 // pred_region
    _
  $region21: #{cltsbr_forward.29} parent=0 // pred_fallthru
    _
  // Predicated region
  $region22: #{cltsbr_forward.29} parent=0 // pred_check
    _
  $region23: #{cltsbr_forward.29} parent=0 // pred_check_branch
    %22 = sbr.rel (0) target = $region25
  $region24: #{cltsbr_forward.29} parent=0 // pred_region
    _
  $region25: #{cltsbr_forward.29} parent=0 // pred_fallthru
    _
  %v24 = vld [vmem:[%s0] sm:$0xf]
  %v25 = vld [vmem:[%s0 + $0x4] sm:$0xf]
  %v26 = vld [vmem:[%s1] sm:$0xf]
  %v27 = vld [vmem:[%s1 + $0x4] sm:$0xf]
  %v28 = vld [vmem:[%s1 + $0x8] sm:$0xf]
  %v29 = vld [vmem:[%s1 + $0xc] sm:$0xf]
  %v30 = vld [vmem:[%s2] sm:$0x1]
  %v32 = vlaneseq
  %v33 = vshrl.u32 %v32, 7
  %v34 = vsub.s32 0, %v33
  %v35 = vrot.slane %v30, %v34
  %v39 = vunpack.c.l.b16 %v24
  %v40 = vunpack.c.l.b16 %v25
  %v41 = vpack.c.b16 %v40, %v39
  %v46 = vunpack.c.l.b16 %v26
  %v47 = vunpack.c.l.b16 %v27
  %v48 = vunpack.c.l.b16 %v28
  %v49 = vunpack.c.l.b16 %v29
  %v50 = vpack.c.b16 %v47, %v46
  %v51 = vpack.c.b16 %v49, %v48
  %vm54 = vcmask 261120
  %v56 = vsel %vm54, %v41, 0
  %58 = vmatprep.subr.bf16.mxu0 0
  %59 = vmatpush1.bf16.msra.mxu0 %v50
  %60 = vmatprep.subr.bf16.mxu0 0
  %61 = vmatpush1.bf16.msra.mxu0 %v51
  %62 = vmatprep.subr.bf16.mxu0 0
  %63 = vmatpush1.bf16.msra.mxu0 0
  %64 = vmatprep.subr.bf16.mxu0 0
  %65 = vmatpush1.bf16.msra.mxu0 0
  %66 = vmatprep.subr.bf16.mxu0 0
  %67 = vmatpush1.bf16.msra.mxu0 0
  %68 = vmatprep.subr.bf16.mxu0 0
  %69 = vmatpush1.bf16.msra.mxu0 0
  %70 = vmatprep.subr.bf16.mxu0 0
  %71 = vmatpush1.bf16.msra.mxu0 0
  %72 = vmatprep.subr.bf16.mxu0 0
  %73 = vmatpush1.bf16.msra.mxu0 0
  %74 = vmatprep.subr.bf16.mxu0 0
  %75 = vmatpush1.bf16.msra.mxu0 0
  %76 = vmatprep.subr.bf16.mxu0 0
  %77 = vmatpush1.bf16.msra.mxu0 0
  %78 = vmatprep.subr.bf16.mxu0 0
  %79 = vmatpush1.bf16.msra.mxu0 0
  %80 = vmatprep.subr.bf16.mxu0 0
  %81 = vmatpush1.bf16.msra.mxu0 0
  %82 = vmatprep.subr.bf16.mxu0 0
  %83 = vmatpush1.bf16.msra.mxu0 0
  %84 = vmatprep.subr.bf16.mxu0 0
  %85 = vmatpush1.bf16.msra.mxu0 0
  %86 = vmatprep.subr.bf16.mxu0 0
  %87 = vmatpush1.bf16.msra.mxu0 0
  %88 = vmatprep.subr.bf16.mxu0 0
  %89 = vmatpush1.bf16.msra.mxu0 0
  %90 = vmatprep.mubr.bf16.mxu0 0
  %91 = vmatmul.mubr.bf16.gmra.mrb[0].mxu0 %v56
  %v92 = vpop.f32.mrb[0].mxu0
  %v93 = vadd.f32 %v35, %v92
  %v94 = vpop.f32.mrb[0].mxu0
  %v95 = vpop.f32.mrb[0].mxu0
  %v96 = vadd.f32 %v35, %v95
  %v97 = vpop.f32.mrb[0].mxu0
  %98 = vdwg.mxu0
  %v99 = vld [vmem:[%s3] sm:$0xff]
  %v100 = vld [vmem:[%s3 + $0x8] sm:$0xff]
  %v101 = vadd.f32 %v93, %v99
  %v102 = vadd.f32 %v96, %v100
  %v103 = vld [vmem:[%s4] sm:$0x1]
  %v104 = vld [vmem:[%s5] sm:$0x1]
  %v105 = vsel %vm54, %v101, 0.0
  %106 = vadd.xlane.f32.xlu0 %v105
  %v107 = vpop.xlane.xlu0 %106
  %v108 = vsel %vm54, %v102, 0.0
  %109 = vadd.xlane.f32.xlu0 %v108
  %v110 = vpop.xlane.xlu0 %109
  %v111 = vrcp.pop 32.0
  %v112 = vmul.f32 %v107, %v111
  %v113 = vmul.f32 %v110, %v111
  %v114 = vsub.f32 %v101, %v112
  %v115 = vsub.f32 %v102, %v113
  %v116 = vmul.f32 %v114, %v114
  %v117 = vmul.f32 %v115, %v115
  %v118 = vsel %vm54, %v116, 0.0
  %119 = vadd.xlane.f32.xlu0 %v118
  %v120 = vpop.xlane.xlu0 %119
  %v121 = vsel %vm54, %v117, 0.0
  %122 = vadd.xlane.f32.xlu0 %v121
  %v123 = vpop.xlane.xlu0 %122
  %v124 = vmul.f32 %v120, %v111
  %v125 = vmul.f32 %v123, %v111
  %v126 = vadd.f32 %v124, 1e-05
  %v127 = vadd.f32 %v125, 1e-05
  %v128 = vrsqrt.pop %v126
  %v129 = vrsqrt.pop %v127
  %v130 = vmul.f32 %v114, %v128
  %v131 = vmul.f32 %v115, %v129
  %v133 = vlaneseq
  %v134 = vshrl.u32 %v133, 7
  %v135 = vsub.s32 0, %v134
  %v136 = vrot.slane %v103, %v135
  %v138 = vmul.f32 %v130, %v136
  %v139 = vmul.f32 %v131, %v136
  %v141 = vlaneseq
  %v142 = vshrl.u32 %v141, 7
  %v143 = vsub.s32 0, %v142
  %v144 = vrot.slane %v104, %v143
  %v146 = vadd.f32 %v138, %v144
  %v147 = vadd.f32 %v139, %v144
  %148 = vst.msk [vmem:[%s6] sm:$0xff] %vm54, %v146
  %149 = vst.msk [vmem:[%s6 + $0x8] sm:$0xff] %vm54, %v147
  // Predicated region
  $region26: #{cltsbr_forward.29} parent=0 // pred_check
    _
  $region27: #{cltsbr_forward.29} parent=0 // pred_check_branch
    %151 = sbr.rel (0) target = $region29
  $region28: #{cltsbr_forward.29} parent=0 // pred_region
    _
  $region29: #{cltsbr_forward.29} parent=0 // pred_fallthru
    _
  // Predicated region
  $region30: #{cltsbr_forward.29} parent=0 // pred_check
    _
  $region31: #{cltsbr_forward.29} parent=0 // pred_check_branch
    %153 = sbr.rel (0) target = $region33
  $region32: #{cltsbr_forward.29} parent=0 // pred_region
    _
  $region33: #{cltsbr_forward.29} parent=0 // pred_fallthru
    _

// kernel: cltsbr_forward.28
$region0: #{cltsbr_forward.28}
  #allocation0 [shape = 'u32[]', space=smem, size = 0x4, offset = 0x4, fixed_abs, tag = 'smem constant byte address 0x4 - core index']
  #allocation1 [shape = 'u32[144,128]{1,0:T(1,128)}', space=vmem, size = 0x12000, scoped, tag = 'internal scratch']
  %s0 = inlined_call_operand.vmem [shape: bf16[2,8,96], index: 0, kind: input, shape index: {}]
  %s1 = inlined_call_operand.vmem [shape: bf16[2,8,32], index: 1, kind: output, shape index: {}]
  %s2 = sld [smem:[#allocation0]]
  $region37: #{cltsbr_forward.28} parent=0
    _
  %s4 = ssub.s32 1, %s2
  %s5 = scalar_select 0, %s4, %s2
  loop: start=0, step=1, limit=4
  $region2: #{cltsbr_forward.28} parent=0 // loop_pre_header
    _
  $region3: #{cltsbr_forward.28} parent=0 // loop_header
    %s7 = sphi 0, %s11
    %p8 = scmp.ge.s32.totalorder %s7, 4
    %s17 = sphi 0, %s19
    %s20 = sphi 0, %s17
    %s21 = sphi 0, %s20
    %s37 = sphi 0, %s21
    %s43 = sphi 0, %s45
    %s46 = sphi 0, %s43
    %s47 = sphi 0, %s46
    %s63 = sphi 0, %s47
  $region4: #{cltsbr_forward.28} parent=0 // loop_header_branch
    %10 = sbr.rel (%p8) target = $region8
  $region5: #{cltsbr_forward.28} parent=0 // loop_body
    %s12 = ssub.s32 %s7, 1
    %s13 = ssub.s32 %s7, 2
    %s14 = sadd.s32 %s7, 1
    %s15 = ssub.s32 %s7, %s14
    %p16 = scmp.eq.s32.totalorder %s15, 0
    %s18 = sadd.s32 %s17, 1
    %s19 = scalar_select %p16, %s17, %s18
    %p22 = pneg %p16
    %p23 = scmp.eq.s32.totalorder %s7, 1
    %p24 = por %p22, %p23
    %p25 = scmp.ne.s32.totalorder %s17, %s20
    %p26 = scmp.eq.s32.totalorder %s7, 0
    %p27 = por %p25, %p26
    %p28 = scmp.ne.s32.totalorder %s17, %s20
    %p29 = scmp.eq.s32.totalorder %s12, 1
    %p30 = por %p28, %p29
    %p31 = scmp.ne.s32.totalorder %s20, %s21
    %p32 = scmp.eq.s32.totalorder %s12, 0
    %p33 = por %p31, %p32
    %p34 = scmp.ne.s32.totalorder %s20, %s21
    %p35 = scmp.eq.s32.totalorder %s13, 1
    %p36 = por %p34, %p35
    %p38 = scmp.ne.s32.totalorder %s21, %s37
    %p39 = scmp.eq.s32.totalorder %s13, 0
    %p40 = por %p38, %p39
    %s41 = ssub.s32 %s7, %s14
    %p42 = scmp.eq.s32.totalorder %s41, 0
    %s44 = sadd.s32 %s43, 1
    %s45 = scalar_select %p42, %s43, %s44
    %p48 = pneg %p42
    %p49 = scmp.eq.s32.totalorder %s7, 1
    %p50 = por %p48, %p49
    %p51 = scmp.ne.s32.totalorder %s43, %s46
    %p52 = scmp.eq.s32.totalorder %s7, 0
    %p53 = por %p51, %p52
    %p54 = scmp.ne.s32.totalorder %s43, %s46
    %p55 = scmp.eq.s32.totalorder %s12, 1
    %p56 = por %p54, %p55
    %p57 = scmp.ne.s32.totalorder %s46, %s47
    %p58 = scmp.eq.s32.totalorder %s12, 0
    %p59 = por %p57, %p58
    %p60 = scmp.ne.s32.totalorder %s46, %s47
    %p61 = scmp.eq.s32.totalorder %s13, 1
    %p62 = por %p60, %p61
    %p64 = scmp.ne.s32.totalorder %s47, %s63
    %p65 = scmp.eq.s32.totalorder %s13, 0
    %p66 = por %p64, %p65
    %p67 = scmp.le.s32.totalorder 1, %s7
    %p68 = scmp.lt.s32.totalorder %s7, 3
    %p69 = pnand %p67, %p68
    %p70 = pneg %p69
    // Predicated region
    $region9: #{cltsbr_forward.28} parent=5 // pred_check
      _
    $region10: #{cltsbr_forward.28} parent=5 // pred_check_branch
      %72 = sbr.rel (%p69) target = $region12
    $region11: #{cltsbr_forward.28} parent=5 // pred_region
      %s73 = ssub.s32 %s7, 1
    $region12: #{cltsbr_forward.28} parent=5 // pred_fallthru
      _
    %p74 = scmp.lt.s32.totalorder %s7, 2
    // Predicated region
    $region13: #{cltsbr_forward.28} parent=5 // pred_check
      %p75 = pneg %p74
    $region14: #{cltsbr_forward.28} parent=5 // pred_check_branch
      %77 = sbr.rel (%p75) target = $region16
    $region15: #{cltsbr_forward.28} parent=5 // pred_region
      // Predicated region
      $region17: #{cltsbr_forward.28} parent=15 // pred_check
        %p78 = pneg %p27
      $region18: #{cltsbr_forward.28} parent=15 // pred_check_branch
        %80 = sbr.rel (%p78) target = $region20
      $region19: #{cltsbr_forward.28} parent=15 // pred_region
        %p81 = scmp.lt.s32.totalorder %s7, 1
        %s82 = scalar_select %p81, %s7, 1
        %s83 = smul.addr %s82, 4
        %s84 = scalar_lea.vmem %s0, %s83
      $region20: #{cltsbr_forward.28} parent=15 // pred_fallthru
        _
    $region16: #{cltsbr_forward.28} parent=5 // pred_fallthru
      _
    %p85 = scmp.le.s32.totalorder 1, %s7
    %p86 = scmp.lt.s32.totalorder %s7, 3
    %p87 = pnand %p85, %p86
    %p88 = pneg %p87
    // Predicated region
    $region21: #{cltsbr_forward.28} parent=5 // pred_check
      _
    $region22: #{cltsbr_forward.28} parent=5 // pred_check_branch
      %90 = sbr.rel (%p87) target = $region24
    $region23: #{cltsbr_forward.28} parent=5 // pred_region
      %s91 = ssub.s32 %s7, 1
      %p92 = scmp.lt.s32.totalorder %s12, 1
      %s93 = scalar_select %p92, %s12, 1
      %s94 = smul.addr %s93, 4
      %s95 = scalar_lea.vmem %s0, %s94
      %p96 = pneg %p33
      %p97 = pneg %p30
      %p98 = pneg %p59
      %p99 = pneg %p56
      %p100 = scmp.lt.s32.totalorder %s12, 1
      %s101 = scalar_select %p100, %s12, 1
      %s102 = smul.addr %s101, 4
      %s103 = scalar_lea.vmem %s1, %s102
      %p104 = scmp.lt.s32.totalorder %s12, 1
      %s105 = scalar_select %p104, %s12, 1
      %s106 = smul.addr %s105, 4
      %s107 = scalar_lea.vmem %s0, %s106
      %p108 = scmp.lt.s32.totalorder %s12, 1
      %s109 = scalar_select %p108, %s12, 1
      %s110 = smul.addr %s109, 4
      %s111 = scalar_lea.vmem %s1, %s110
      %v113 = vld [vmem:[%s107] sm:$0xf]
      %v115 = vunpack.c.l.b16 %v113
      %v116 = vpack.c.b16 %v115, %v115
      %117 = vrot.lane.b32.xlu0 %v116, 96
      %v118 = vpop.permute.xlu0 %117
      %vm119 = vcmask 130048
      %v121 = vsel %vm119, %v113, 0
      %v124 = vsel %vm119, %v118, 0
      %126 = vmatprep.subr.bf16.mxu0 0
      %127 = vmatpush1.bf16.xpose.msra.mxu0 %v124
      %128 = vmatprep.subr.bf16.mxu0 0
      %129 = vmatpush1.bf16.xpose.msra.mxu0 0
      %130 = vmatprep.subr.bf16.mxu0 0
      %131 = vmatpush1.bf16.xpose.msra.mxu0 0
      %132 = vmatprep.subr.bf16.mxu0 0
      %133 = vmatpush1.bf16.xpose.msra.mxu0 0
      %134 = vmatprep.subr.bf16.mxu0 0
      %135 = vmatpush1.bf16.xpose.msra.mxu0 0
      %136 = vmatprep.subr.bf16.mxu0 0
      %137 = vmatpush1.bf16.xpose.msra.mxu0 0
      %138 = vmatprep.subr.bf16.mxu0 0
      %139 = vmatpush1.bf16.xpose.msra.mxu0 0
      %140 = vmatprep.subr.bf16.mxu0 0
      %141 = vmatpush1.bf16.xpose.msra.mxu0 0
      %142 = vmatprep.subr.bf16.mxu0 0
      %143 = vmatpush1.bf16.xpose.msra.mxu0 0
      %144 = vmatprep.subr.bf16.mxu0 0
      %145 = vmatpush1.bf16.xpose.msra.mxu0 0
      %146 = vmatprep.subr.bf16.mxu0 0
      %147 = vmatpush1.bf16.xpose.msra.mxu0 0
      %148 = vmatprep.subr.bf16.mxu0 0
      %149 = vmatpush1.bf16.xpose.msra.mxu0 0
      %150 = vmatprep.subr.bf16.mxu0 0
      %151 = vmatpush1.bf16.xpose.msra.mxu0 0
      %152 = vmatprep.subr.bf16.mxu0 0
      %153 = vmatpush1.bf16.xpose.msra.mxu0 0
      %154 = vmatprep.subr.bf16.mxu0 0
      %155 = vmatpush1.bf16.xpose.msra.mxu0 0
      %156 = vmatprep.subr.bf16.mxu0 0
      %157 = vmatpush1.bf16.xpose.msra.mxu0 0
      %158 = vmatprep.mubr.bf16.mxu0 0
      %159 = vmatmul.mubr.bf16.gmra.mrb[0].mxu0 %v121
      %v160 = vpop.f32.mrb[0].mxu0
      %v161 = vadd.f32 0.0, %v160
      %v162 = vpop.f32.mrb[0].mxu0
      %v163 = vpop.f32.mrb[0].mxu0
      %v164 = vpop.f32.mrb[0].mxu0
      %165 = vdwg.mxu0
      %v166 = vmul.f32 %v161, 0.25
      %vm167 = vcmask 64512
      %v168 = vsel %vm167, %v166, -inf
      %169 = vmax.xlane.f32.xlu0 %v168
      %v170 = vpop.xlane.xlu0 %169
      %v171 = vsub.f32 %v166, %v170
      %v172 = vmul.f32 %v171, 1.442695
      %v173 = vpow.pop %v172
      %v174 = vsel %vm167, %v173, 0.0
      %175 = vadd.xlane.f32.xlu0 %v174
      %v176 = vpop.xlane.xlu0 %175
      %v177 = vrcp.pop %v176
      %v178 = vmul.f32 %v173, %v177
      %v179 = vpack.c.bf16 %v178, %v178
      %180 = vrot.lane.b32.xlu0 %v116, 64
      %v181 = vpop.permute.xlu0 %180
      %v183 = vsel %vm167, %v179, 0
      %vm185 = vcmask 1043456
      %v187 = vsel %vm185, %v181, 0
      %189 = vmatprep.subr.bf16.mxu0 0
      %190 = vmatpush1.bf16.msra.mxu0 %v187
      %191 = vmatprep.subr.bf16.mxu0 0
      %192 = vmatpush1.bf16.msra.mxu0 0
      %193 = vmatprep.subr.bf16.mxu0 0
      %194 = vmatpush1.bf16.msra.mxu0 0
      %195 = vmatprep.subr.bf16.mxu0 0
      %196 = vmatpush1.bf16.msra.mxu0 0
      %197 = vmatprep.subr.bf16.mxu0 0
      %198 = vmatpush1.bf16.msra.mxu0 0
      %199 = vmatprep.subr.bf16.mxu0 0
      %200 = vmatpush1.bf16.msra.mxu0 0
      %201 = vmatprep.subr.bf16.mxu0 0
      %202 = vmatpush1.bf16.msra.mxu0 0
      %203 = vmatprep.subr.bf16.mxu0 0
      %204 = vmatpush1.bf16.msra.mxu0 0
      %205 = vmatprep.subr.bf16.mxu0 0
      %206 = vmatpush1.bf16.msra.mxu0 0
      %207 = vmatprep.subr.bf16.mxu0 0
      %208 = vmatpush1.bf16.msra.mxu0 0
      %209 = vmatprep.subr.bf16.mxu0 0
      %210 = vmatpush1.bf16.msra.mxu0 0
      %211 = vmatprep.subr.bf16.mxu0 0
      %212 = vmatpush1.bf16.msra.mxu0 0
      %213 = vmatprep.subr.bf16.mxu0 0
      %214 = vmatpush1.bf16.msra.mxu0 0
      %215 = vmatprep.subr.bf16.mxu0 0
      %216 = vmatpush1.bf16.msra.mxu0 0
      %217 = vmatprep.subr.bf16.mxu0 0
      %218 = vmatpush1.bf16.msra.mxu0 0
      %219 = vmatprep.subr.bf16.mxu0 0
      %220 = vmatpush1.bf16.msra.mxu0 0
      %221 = vmatprep.mubr.bf16.mxu0 0
      %222 = vmatmul.mubr.bf16.gmra.mrb[0].mxu0 %v183
      %v223 = vpop.f32.mrb[0].mxu0
      %v224 = vadd.f32 0.0, %v223
      %v225 = vpop.f32.mrb[0].mxu0
      %v226 = vpop.f32.mrb[0].mxu0
      %v227 = vpop.f32.mrb[0].mxu0
      %228 = vdwg.mxu0
      %229 = vrot.lane.b32.xlu0 %v116, 112
      %v230 = vpop.permute.xlu0 %229
      %231 = vrot.lane.b32.xlu0 %v116, 80
      %v232 = vpop.permute.xlu0 %231
      %v234 = vsel %vm119, %v230, 0
      %v237 = vsel %vm119, %v232, 0
      %239 = vmatprep.subr.bf16.mxu0 0
      %240 = vmatpush1.bf16.xpose.msra.mxu0 %v237
      %241 = vmatprep.subr.bf16.mxu0 0
      %242 = vmatpush1.bf16.xpose.msra.mxu0 0
      %243 = vmatprep.subr.bf16.mxu0 0
      %244 = vmatpush1.bf16.xpose.msra.mxu0 0
      %245 = vmatprep.subr.bf16.mxu0 0
      %246 = vmatpush1.bf16.xpose.msra.mxu0 0
      %247 = vmatprep.subr.bf16.mxu0 0
      %248 = vmatpush1.bf16.xpose.msra.mxu0 0
      %249 = vmatprep.subr.bf16.mxu0 0
      %250 = vmatpush1.bf16.xpose.msra.mxu0 0
      %251 = vmatprep.subr.bf16.mxu0 0
      %252 = vmatpush1.bf16.xpose.msra.mxu0 0
      %253 = vmatprep.subr.bf16.mxu0 0
      %254 = vmatpush1.bf16.xpose.msra.mxu0 0
      %255 = vmatprep.subr.bf16.mxu0 0
      %256 = vmatpush1.bf16.xpose.msra.mxu0 0
      %257 = vmatprep.subr.bf16.mxu0 0
      %258 = vmatpush1.bf16.xpose.msra.mxu0 0
      %259 = vmatprep.subr.bf16.mxu0 0
      %260 = vmatpush1.bf16.xpose.msra.mxu0 0
      %261 = vmatprep.subr.bf16.mxu0 0
      %262 = vmatpush1.bf16.xpose.msra.mxu0 0
      %263 = vmatprep.subr.bf16.mxu0 0
      %264 = vmatpush1.bf16.xpose.msra.mxu0 0
      %265 = vmatprep.subr.bf16.mxu0 0
      %266 = vmatpush1.bf16.xpose.msra.mxu0 0
      %267 = vmatprep.subr.bf16.mxu0 0
      %268 = vmatpush1.bf16.xpose.msra.mxu0 0
      %269 = vmatprep.subr.bf16.mxu0 0
      %270 = vmatpush1.bf16.xpose.msra.mxu0 0
      %271 = vmatprep.mubr.bf16.mxu0 0
      %272 = vmatmul.mubr.bf16.gmra.mrb[0].mxu0 %v234
      %v273 = vpop.f32.mrb[0].mxu0
      %v274 = vadd.f32 0.0, %v273
      %v275 = vpop.f32.mrb[0].mxu0
      %v276 = vpop.f32.mrb[0].mxu0
      %v277 = vpop.f32.mrb[0].mxu0
      %278 = vdwg.mxu0
      %v279 = vmul.f32 %v274, 0.25
      %v280 = vsel %vm167, %v279, -inf
      %281 = vmax.xlane.f32.xlu0 %v280
      %v282 = vpop.xlane.xlu0 %281
      %v283 = vsub.f32 %v279, %v282
      %v284 = vmul.f32 %v283, 1.442695
      %v285 = vpow.pop %v284
      %v286 = vsel %vm167, %v285, 0.0
      %287 = vadd.xlane.f32.xlu0 %v286
      %v288 = vpop.xlane.xlu0 %287
      %v289 = vrcp.pop %v288
      %v290 = vmul.f32 %v285, %v289
      %v291 = vpack.c.bf16 %v290, %v290
      %292 = vrot.lane.b32.xlu0 %v116, 48
      %v293 = vpop.permute.xlu0 %292
      %v295 = vsel %vm167, %v291, 0
      %v298 = vsel %vm185, %v293, 0
      %300 = vmatprep.subr.bf16.mxu0 0
      %301 = vmatpush1.bf16.msra.mxu0 %v298
      %302 = vmatprep.subr.bf16.mxu0 0
      %303 = vmatpush1.bf16.msra.mxu0 0
      %304 = vmatprep.subr.bf16.mxu0 0
      %305 = vmatpush1.bf16.msra.mxu0 0
      %306 = vmatprep.subr.bf16.mxu0 0
      %307 = vmatpush1.bf16.msra.mxu0 0
      %308 = vmatprep.subr.bf16.mxu0 0
      %309 = vmatpush1.bf16.msra.mxu0 0
      %310 = vmatprep.subr.bf16.mxu0 0
      %311 = vmatpush1.bf16.msra.mxu0 0
      %312 = vmatprep.subr.bf16.mxu0 0
      %313 = vmatpush1.bf16.msra.mxu0 0
      %314 = vmatprep.subr.bf16.mxu0 0
      %315 = vmatpush1.bf16.msra.mxu0 0
      %316 = vmatprep.subr.bf16.mxu0 0
      %317 = vmatpush1.bf16.msra.mxu0 0
      %318 = vmatprep.subr.bf16.mxu0 0
      %319 = vmatpush1.bf16.msra.mxu0 0
      %320 = vmatprep.subr.bf16.mxu0 0
      %321 = vmatpush1.bf16.msra.mxu0 0
      %322 = vmatprep.subr.bf16.mxu0 0
      %323 = vmatpush1.bf16.msra.mxu0 0
      %324 = vmatprep.subr.bf16.mxu0 0
      %325 = vmatpush1.bf16.msra.mxu0 0
      %326 = vmatprep.subr.bf16.mxu0 0
      %327 = vmatpush1.bf16.msra.mxu0 0
      %328 = vmatprep.subr.bf16.mxu0 0
      %329 = vmatpush1.bf16.msra.mxu0 0
      %330 = vmatprep.subr.bf16.mxu0 0
      %331 = vmatpush1.bf16.msra.mxu0 0
      %332 = vmatprep.mubr.bf16.mxu0 0
      %333 = vmatmul.mubr.bf16.gmra.mrb[0].mxu0 %v295
      %v334 = vpop.f32.mrb[0].mxu0
      %v335 = vadd.f32 0.0, %v334
      %v336 = vpop.f32.mrb[0].mxu0
      %v337 = vpop.f32.mrb[0].mxu0
      %v338 = vpop.f32.mrb[0].mxu0
      %339 = vdwg.mxu0
      %341 = vrot.lane.b32.xlu0 %v335, 16
      %v342 = vpop.permute.xlu0 %341
      %v344 = vsel %vm119, %v224, %v342
      %v345 = vpack.c.bf16 %v344, %v344
      %vm346 = vcmask 257024
      %347 = vst.msk [vmem:[%s111] sm:$0xf] %vm346, %v345
      %p348 = scmp.lt.s32.totalorder %s12, 1
      %s349 = scalar_select %p348, %s12, 1
      %s350 = smul.addr %s349, 4
      %s351 = scalar_lea.vmem %s1, %s350
      // Predicated region
      $region25: #{cltsbr_forward.28} parent=23 // pred_check
        %p352 = pneg %p56
      $region26: #{cltsbr_forward.28} parent=23 // pred_check_branch
        %354 = sbr.rel (%p352) target = $region28
      $region27: #{cltsbr_forward.28} parent=23 // pred_region
        _
      $region28: #{cltsbr_forward.28} parent=23 // pred_fallthru
        _
    $region24: #{cltsbr_forward.28} parent=5 // pred_fallthru
      _
    %p355 = scmp.le.s32.totalorder 2, %s7
    // Predicated region
    $region29: #{cltsbr_forward.28} parent=5 // pred_check
      %p356 = pneg %p355
    $region30: #{cltsbr_forward.28} parent=5 // pred_check_branch
      %358 = sbr.rel (%p356) target = $region32
    $region31: #{cltsbr_forward.28} parent=5 // pred_region
      %s359 = ssub.s32 %s7, 2
      // Predicated region
      $region33: #{cltsbr_forward.28} parent=31 // pred_check
        %p360 = pneg %p62
      $region34: #{cltsbr_forward.28} parent=31 // pred_check_branch
        %362 = sbr.rel (%p360) target = $region36
      $region35: #{cltsbr_forward.28} parent=31 // pred_region
        %p363 = scmp.lt.s32.totalorder %s13, 1
        %s364 = scalar_select %p363, %s13, 1
        %s365 = smul.addr %s364, 4
        %s366 = scalar_lea.vmem %s1, %s365
      $region36: #{cltsbr_forward.28} parent=31 // pred_fallthru
        _
    $region32: #{cltsbr_forward.28} parent=5 // pred_fallthru
      _
  $region6: #{cltsbr_forward.28} parent=0 // loop_footer
    %s11 = sadd.s32 1, %s7
  $region7: #{cltsbr_forward.28} parent=0 // loop_footer_branch
    %6 = sbr.rel target = $region3
  $region8: #{cltsbr_forward.28} parent=0 // loop_exit
    _

// kernel: cltsbr_forward.30
$region0: #{cltsbr_forward.30}
  #allocation0 [shape = 'u32[]', space=smem, size = 0x4, offset = 0x4, fixed_abs, tag = 'smem constant byte address 0x4 - core index']
  #allocation1 [shape = 'u32[144,128]{1,0:T(1,128)}', space=vmem, size = 0x12000, scoped, tag = 'internal scratch']
  %s0 = inlined_call_operand.vmem [shape: f32[16,32], index: 0, kind: input, shape index: {}]
  %s1 = inlined_call_operand.vmem [shape: bf16[32,32], index: 1, kind: input, shape index: {}]
  %s2 = inlined_call_operand.vmem [shape: f32[1,32], index: 2, kind: input, shape index: {}]
  %s3 = inlined_call_operand.vmem [shape: bf16[16,32], index: 3, kind: output, shape index: {}]
  %s4 = sld [smem:[#allocation0]]
  $region22: #{cltsbr_forward.30} parent=0
    _
  %s6 = ssub.s32 1, %s4
  %s7 = scalar_select 0, %s6, %s4
  // Predicated region
  $region2: #{cltsbr_forward.30} parent=0 // pred_check
    _
  $region3: #{cltsbr_forward.30} parent=0 // pred_check_branch
    %9 = sbr.rel (0) target = $region5
  $region4: #{cltsbr_forward.30} parent=0 // pred_region
    _
  $region5: #{cltsbr_forward.30} parent=0 // pred_fallthru
    _
  // Predicated region
  $region6: #{cltsbr_forward.30} parent=0 // pred_check
    _
  $region7: #{cltsbr_forward.30} parent=0 // pred_check_branch
    %11 = sbr.rel (0) target = $region9
  $region8: #{cltsbr_forward.30} parent=0 // pred_region
    _
  $region9: #{cltsbr_forward.30} parent=0 // pred_fallthru
    _
  // Predicated region
  $region10: #{cltsbr_forward.30} parent=0 // pred_check
    _
  $region11: #{cltsbr_forward.30} parent=0 // pred_check_branch
    %13 = sbr.rel (0) target = $region13
  $region12: #{cltsbr_forward.30} parent=0 // pred_region
    _
  $region13: #{cltsbr_forward.30} parent=0 // pred_fallthru
    _
  %v15 = vld [vmem:[%s0] sm:$0xff]
  %v16 = vld [vmem:[%s0 + $0x8] sm:$0xff]
  %v17 = vpack.c.bf16 %v16, %v15
  %v18 = vld [vmem:[%s1] sm:$0xf]
  %v19 = vld [vmem:[%s1 + $0x4] sm:$0xf]
  %v20 = vld [vmem:[%s1 + $0x8] sm:$0xf]
  %v21 = vld [vmem:[%s1 + $0xc] sm:$0xf]
  %v22 = vld [vmem:[%s2] sm:$0x1]
  %v24 = vlaneseq
  %v25 = vshrl.u32 %v24, 7
  %v26 = vsub.s32 0, %v25
  %v27 = vrot.slane %v22, %v26
  %v33 = vunpack.c.l.b16 %v18
  %v34 = vunpack.c.l.b16 %v19
  %v35 = vunpack.c.l.b16 %v20
  %v36 = vunpack.c.l.b16 %v21
  %v37 = vpack.c.b16 %v34, %v33
  %v38 = vpack.c.b16 %v36, %v35
  %vm41 = vcmask 261120
  %v43 = vsel %vm41, %v17, 0
  %45 = vmatprep.subr.bf16.mxu0 0
  %46 = vmatpush1.bf16.msra.mxu0 %v37
  %47 = vmatprep.subr.bf16.mxu0 0
  %48 = vmatpush1.bf16.msra.mxu0 %v38
  %49 = vmatprep.subr.bf16.mxu0 0
  %50 = vmatpush1.bf16.msra.mxu0 0
  %51 = vmatprep.subr.bf16.mxu0 0
  %52 = vmatpush1.bf16.msra.mxu0 0
  %53 = vmatprep.subr.bf16.mxu0 0
  %54 = vmatpush1.bf16.msra.mxu0 0
  %55 = vmatprep.subr.bf16.mxu0 0
  %56 = vmatpush1.bf16.msra.mxu0 0
  %57 = vmatprep.subr.bf16.mxu0 0
  %58 = vmatpush1.bf16.msra.mxu0 0
  %59 = vmatprep.subr.bf16.mxu0 0
  %60 = vmatpush1.bf16.msra.mxu0 0
  %61 = vmatprep.subr.bf16.mxu0 0
  %62 = vmatpush1.bf16.msra.mxu0 0
  %63 = vmatprep.subr.bf16.mxu0 0
  %64 = vmatpush1.bf16.msra.mxu0 0
  %65 = vmatprep.subr.bf16.mxu0 0
  %66 = vmatpush1.bf16.msra.mxu0 0
  %67 = vmatprep.subr.bf16.mxu0 0
  %68 = vmatpush1.bf16.msra.mxu0 0
  %69 = vmatprep.subr.bf16.mxu0 0
  %70 = vmatpush1.bf16.msra.mxu0 0
  %71 = vmatprep.subr.bf16.mxu0 0
  %72 = vmatpush1.bf16.msra.mxu0 0
  %73 = vmatprep.subr.bf16.mxu0 0
  %74 = vmatpush1.bf16.msra.mxu0 0
  %75 = vmatprep.subr.bf16.mxu0 0
  %76 = vmatpush1.bf16.msra.mxu0 0
  %77 = vmatprep.mubr.bf16.mxu0 0
  %78 = vmatmul.mubr.bf16.gmra.mrb[0].mxu0 %v43
  %v79 = vpop.f32.mrb[0].mxu0
  %v80 = vadd.f32 %v27, %v79
  %v81 = vpop.f32.mrb[0].mxu0
  %v82 = vpop.f32.mrb[0].mxu0
  %v83 = vadd.f32 %v27, %v82
  %v84 = vpop.f32.mrb[0].mxu0
  %85 = vdwg.mxu0
  %v86 = vpack.c.bf16 %v83, %v80
  %v88 = vunpack.c.l.b16 %v86
  %v89 = vunpack.c.h.b16 %v86
  %v90 = vpack.c.b16 %v88, %v88
  %v91 = vpack.c.b16 %v89, %v89
  %vm94 = vcmask 257024
  %95 = vst.msk [vmem:[%s3] sm:$0xf] %vm94, %v90
  %96 = vst.msk [vmem:[%s3 + $0x4] sm:$0xf] %vm94, %v91
  // Predicated region
  $region14: #{cltsbr_forward.30} parent=0 // pred_check
    _
  $region15: #{cltsbr_forward.30} parent=0 // pred_check_branch
    %98 = sbr.rel (0) target = $region17
  $region16: #{cltsbr_forward.30} parent=0 // pred_region
    _
  $region17: #{cltsbr_forward.30} parent=0 // pred_fallthru
    _
  // Predicated region
  $region18: #{cltsbr_forward.30} parent=0 // pred_check
    _
  $region19: #{cltsbr_forward.30} parent=0 // pred_check_branch
    %100 = sbr.rel (0) target = $region21
  $region20: #{cltsbr_forward.30} parent=0 // pred_region
    _
  $region21: #{cltsbr_forward.30} parent=0 // pred_fallthru
    _

// kernel: cltsbr_forward.31
$region0: #{cltsbr_forward.31}
  #allocation0 [shape = 'u32[]', space=smem, size = 0x4, offset = 0x4, fixed_abs, tag = 'smem constant byte address 0x4 - core index']
  #allocation1 [shape = 'u32[144,128]{1,0:T(1,128)}', space=vmem, size = 0x12000, scoped, tag = 'internal scratch']
  %s0 = inlined_call_operand.vmem [shape: f32[8,32], index: 0, kind: input, shape index: {}]
  %s1 = inlined_call_operand.vmem [shape: bf16[32,64], index: 1, kind: input, shape index: {}]
  %s2 = inlined_call_operand.vmem [shape: f32[1,64], index: 2, kind: input, shape index: {}]
  %s3 = inlined_call_operand.vmem [shape: bf16[8,64], index: 3, kind: output, shape index: {}]
  %s4 = sld [smem:[#allocation0]]
  $region22: #{cltsbr_forward.31} parent=0
    _
  %s6 = ssub.s32 1, %s4
  %s7 = scalar_select 0, %s6, %s4
  // Predicated region
  $region2: #{cltsbr_forward.31} parent=0 // pred_check
    _
  $region3: #{cltsbr_forward.31} parent=0 // pred_check_branch
    %9 = sbr.rel (0) target = $region5
  $region4: #{cltsbr_forward.31} parent=0 // pred_region
    _
  $region5: #{cltsbr_forward.31} parent=0 // pred_fallthru
    _
  // Predicated region
  $region6: #{cltsbr_forward.31} parent=0 // pred_check
    _
  $region7: #{cltsbr_forward.31} parent=0 // pred_check_branch
    %11 = sbr.rel (0) target = $region9
  $region8: #{cltsbr_forward.31} parent=0 // pred_region
    _
  $region9: #{cltsbr_forward.31} parent=0 // pred_fallthru
    _
  // Predicated region
  $region10: #{cltsbr_forward.31} parent=0 // pred_check
    _
  $region11: #{cltsbr_forward.31} parent=0 // pred_check_branch
    %13 = sbr.rel (0) target = $region13
  $region12: #{cltsbr_forward.31} parent=0 // pred_region
    _
  $region13: #{cltsbr_forward.31} parent=0 // pred_fallthru
    _
  %v15 = vld [vmem:[%s0] sm:$0xff]
  %v16 = vpack.c.bf16 %v15, %v15
  %v17 = vld [vmem:[%s1] sm:$0xf]
  %v18 = vld [vmem:[%s1 + $0x4] sm:$0xf]
  %v19 = vld [vmem:[%s1 + $0x8] sm:$0xf]
  %v20 = vld [vmem:[%s1 + $0xc] sm:$0xf]
  %v21 = vld [vmem:[%s2] sm:$0x1]
  %v23 = vlaneseq
  %v24 = vshrl.u32 %v23, 7
  %v25 = vsub.s32 0, %v24
  %v26 = vrot.slane %v21, %v25
  %v32 = vunpack.c.l.b16 %v17
  %v33 = vunpack.c.l.b16 %v18
  %v34 = vunpack.c.l.b16 %v19
  %v35 = vunpack.c.l.b16 %v20
  %v36 = vpack.c.b16 %v33, %v32
  %v37 = vpack.c.b16 %v35, %v34
  %vm40 = vcmask 261120
  %v42 = vsel %vm40, %v16, 0
  %44 = vmatprep.subr.bf16.mxu0 0
  %45 = vmatpush1.bf16.msra.mxu0 %v36
  %46 = vmatprep.subr.bf16.mxu0 0
  %47 = vmatpush1.bf16.msra.mxu0 %v37
  %48 = vmatprep.subr.bf16.mxu0 0
  %49 = vmatpush1.bf16.msra.mxu0 0
  %50 = vmatprep.subr.bf16.mxu0 0
  %51 = vmatpush1.bf16.msra.mxu0 0
  %52 = vmatprep.subr.bf16.mxu0 0
  %53 = vmatpush1.bf16.msra.mxu0 0
  %54 = vmatprep.subr.bf16.mxu0 0
  %55 = vmatpush1.bf16.msra.mxu0 0
  %56 = vmatprep.subr.bf16.mxu0 0
  %57 = vmatpush1.bf16.msra.mxu0 0
  %58 = vmatprep.subr.bf16.mxu0 0
  %59 = vmatpush1.bf16.msra.mxu0 0
  %60 = vmatprep.subr.bf16.mxu0 0
  %61 = vmatpush1.bf16.msra.mxu0 0
  %62 = vmatprep.subr.bf16.mxu0 0
  %63 = vmatpush1.bf16.msra.mxu0 0
  %64 = vmatprep.subr.bf16.mxu0 0
  %65 = vmatpush1.bf16.msra.mxu0 0
  %66 = vmatprep.subr.bf16.mxu0 0
  %67 = vmatpush1.bf16.msra.mxu0 0
  %68 = vmatprep.subr.bf16.mxu0 0
  %69 = vmatpush1.bf16.msra.mxu0 0
  %70 = vmatprep.subr.bf16.mxu0 0
  %71 = vmatpush1.bf16.msra.mxu0 0
  %72 = vmatprep.subr.bf16.mxu0 0
  %73 = vmatpush1.bf16.msra.mxu0 0
  %74 = vmatprep.subr.bf16.mxu0 0
  %75 = vmatpush1.bf16.msra.mxu0 0
  %76 = vmatprep.mubr.bf16.mxu0 0
  %77 = vmatmul.mubr.bf16.gmra.mrb[0].mxu0 %v42
  %v78 = vpop.f32.mrb[0].mxu0
  %v79 = vadd.f32 %v26, %v78
  %v80 = vpop.f32.mrb[0].mxu0
  %v81 = vpop.f32.mrb[0].mxu0
  %v82 = vpop.f32.mrb[0].mxu0
  %83 = vdwg.mxu0
  %v84 = vpack.c.bf16 %v79, %v79
  %vm85 = vcmask 519168
  %86 = vst.msk [vmem:[%s3] sm:$0xf] %vm85, %v84
  // Predicated region
  $region14: #{cltsbr_forward.31} parent=0 // pred_check
    _
  $region15: #{cltsbr_forward.31} parent=0 // pred_check_branch
    %88 = sbr.rel (0) target = $region17
  $region16: #{cltsbr_forward.31} parent=0 // pred_region
    _
  $region17: #{cltsbr_forward.31} parent=0 // pred_fallthru
    _
  // Predicated region
  $region18: #{cltsbr_forward.31} parent=0 // pred_check
    _
  $region19: #{cltsbr_forward.31} parent=0 // pred_check_branch
    %90 = sbr.rel (0) target = $region21
  $region20: #{cltsbr_forward.31} parent=0 // pred_region
    _
  $region21: #{cltsbr_forward.31} parent=0 // pred_fallthru
    _

// kernel: cltsbr_forward.32
$region0: #{cltsbr_forward.32}
  #allocation0 [shape = 'u32[]', space=smem, size = 0x4, offset = 0x4, fixed_abs, tag = 'smem constant byte address 0x4 - core index']
  #allocation1 [shape = 'u32[144,128]{1,0:T(1,128)}', space=vmem, size = 0x12000, scoped, tag = 'internal scratch']
  %s0 = inlined_call_operand.vmem [shape: bf16[2,8,32], index: 0, kind: input, shape index: {}]
  %s1 = inlined_call_operand.vmem [shape: bf16[2,4,64], index: 1, kind: input, shape index: {}]
  %s2 = inlined_call_operand.vmem [shape: bf16[2,8,32], index: 2, kind: output, shape index: {}]
  %s3 = sld [smem:[#allocation0]]
  $region41: #{cltsbr_forward.32} parent=0
    _
  %s5 = ssub.s32 1, %s3
  %s6 = scalar_select 0, %s5, %s3
  loop: start=0, step=1, limit=4
  $region2: #{cltsbr_forward.32} parent=0 // loop_pre_header
    _
  $region3: #{cltsbr_forward.32} parent=0 // loop_header
    %s8 = sphi 0, %s12
    %p9 = scmp.ge.s32.totalorder %s8, 4
    %s18 = sphi 0, %s20
    %s21 = sphi 0, %s18
    %s22 = sphi 0, %s21
    %s38 = sphi 0, %s22
    %s44 = sphi 0, %s46
    %s47 = sphi 0, %s44
    %s48 = sphi 0, %s47
    %s64 = sphi 0, %s48
    %s70 = sphi 0, %s72
    %s73 = sphi 0, %s70
    %s74 = sphi 0, %s73
    %s90 = sphi 0, %s74
  $region4: #{cltsbr_forward.32} parent=0 // loop_header_branch
    %11 = sbr.rel (%p9) target = $region8
  $region5: #{cltsbr_forward.32} parent=0 // loop_body
    %s13 = ssub.s32 %s8, 1
    %s14 = ssub.s32 %s8, 2
    %s15 = sadd.s32 %s8, 1
    %s16 = ssub.s32 %s8, %s15
    %p17 = scmp.eq.s32.totalorder %s16, 0
    %s19 = sadd.s32 %s18, 1
    %s20 = scalar_select %p17, %s18, %s19
    %p23 = pneg %p17
    %p24 = scmp.eq.s32.totalorder %s8, 1
    %p25 = por %p23, %p24
    %p26 = scmp.ne.s32.totalorder %s18, %s21
    %p27 = scmp.eq.s32.totalorder %s8, 0
    %p28 = por %p26, %p27
    %p29 = scmp.ne.s32.totalorder %s18, %s21
    %p30 = scmp.eq.s32.totalorder %s13, 1
    %p31 = por %p29, %p30
    %p32 = scmp.ne.s32.totalorder %s21, %s22
    %p33 = scmp.eq.s32.totalorder %s13, 0
    %p34 = por %p32, %p33
    %p35 = scmp.ne.s32.totalorder %s21, %s22
    %p36 = scmp.eq.s32.totalorder %s14, 1
    %p37 = por %p35, %p36
    %p39 = scmp.ne.s32.totalorder %s22, %s38
    %p40 = scmp.eq.s32.totalorder %s14, 0
    %p41 = por %p39, %p40
    %s42 = ssub.s32 %s8, %s15
    %p43 = scmp.eq.s32.totalorder %s42, 0
    %s45 = sadd.s32 %s44, 1
    %s46 = scalar_select %p43, %s44, %s45
    %p49 = pneg %p43
    %p50 = scmp.eq.s32.totalorder %s8, 1
    %p51 = por %p49, %p50
    %p52 = scmp.ne.s32.totalorder %s44, %s47
    %p53 = scmp.eq.s32.totalorder %s8, 0
    %p54 = por %p52, %p53
    %p55 = scmp.ne.s32.totalorder %s44, %s47
    %p56 = scmp.eq.s32.totalorder %s13, 1
    %p57 = por %p55, %p56
    %p58 = scmp.ne.s32.totalorder %s47, %s48
    %p59 = scmp.eq.s32.totalorder %s13, 0
    %p60 = por %p58, %p59
    %p61 = scmp.ne.s32.totalorder %s47, %s48
    %p62 = scmp.eq.s32.totalorder %s14, 1
    %p63 = por %p61, %p62
    %p65 = scmp.ne.s32.totalorder %s48, %s64
    %p66 = scmp.eq.s32.totalorder %s14, 0
    %p67 = por %p65, %p66
    %s68 = ssub.s32 %s8, %s15
    %p69 = scmp.eq.s32.totalorder %s68, 0
    %s71 = sadd.s32 %s70, 1
    %s72 = scalar_select %p69, %s70, %s71
    %p75 = pneg %p69
    %p76 = scmp.eq.s32.totalorder %s8, 1
    %p77 = por %p75, %p76
    %p78 = scmp.ne.s32.totalorder %s70, %s73
    %p79 = scmp.eq.s32.totalorder %s8, 0
    %p80 = por %p78, %p79
    %p81 = scmp.ne.s32.totalorder %s70, %s73
    %p82 = scmp.eq.s32.totalorder %s13, 1
    %p83 = por %p81, %p82
    %p84 = scmp.ne.s32.totalorder %s73, %s74
    %p85 = scmp.eq.s32.totalorder %s13, 0
    %p86 = por %p84, %p85
    %p87 = scmp.ne.s32.totalorder %s73, %s74
    %p88 = scmp.eq.s32.totalorder %s14, 1
    %p89 = por %p87, %p88
    %p91 = scmp.ne.s32.totalorder %s74, %s90
    %p92 = scmp.eq.s32.totalorder %s14, 0
    %p93 = por %p91, %p92
    %p94 = scmp.le.s32.totalorder 1, %s8
    %p95 = scmp.lt.s32.totalorder %s8, 3
    %p96 = pnand %p94, %p95
    %p97 = pneg %p96
    // Predicated region
    $region9: #{cltsbr_forward.32} parent=5 // pred_check
      _
    $region10: #{cltsbr_forward.32} parent=5 // pred_check_branch
      %99 = sbr.rel (%p96) target = $region12
    $region11: #{cltsbr_forward.32} parent=5 // pred_region
      %s100 = ssub.s32 %s8, 1
    $region12: #{cltsbr_forward.32} parent=5 // pred_fallthru
      _
    %p101 = scmp.lt.s32.totalorder %s8, 2
    // Predicated region
    $region13: #{cltsbr_forward.32} parent=5 // pred_check
      %p102 = pneg %p101
    $region14: #{cltsbr_forward.32} parent=5 // pred_check_branch
      %104 = sbr.rel (%p102) target = $region16
    $region15: #{cltsbr_forward.32} parent=5 // pred_region
      // Predicated region
      $region17: #{cltsbr_forward.32} parent=15 // pred_check
        %p105 = pneg %p28
      $region18: #{cltsbr_forward.32} parent=15 // pred_check_branch
        %107 = sbr.rel (%p105) target = $region20
      $region19: #{cltsbr_forward.32} parent=15 // pred_region
        %p108 = scmp.lt.s32.totalorder %s8, 1
        %s109 = scalar_select %p108, %s8, 1
        %s110 = smul.addr %s109, 4
        %s111 = scalar_lea.vmem %s0, %s110
      $region20: #{cltsbr_forward.32} parent=15 // pred_fallthru
        _
      // Predicated region
      $region21: #{cltsbr_forward.32} parent=15 // pred_check
        %p112 = pneg %p54
      $region22: #{cltsbr_forward.32} parent=15 // pred_check_branch
        %114 = sbr.rel (%p112) target = $region24
      $region23: #{cltsbr_forward.32} parent=15 // pred_region
        %p115 = scmp.lt.s32.totalorder %s8, 1
        %s116 = scalar_select %p115, %s8, 1
        %s117 = smul.addr %s116, 2
        %s118 = scalar_lea.vmem %s1, %s117
      $region24: #{cltsbr_forward.32} parent=15 // pred_fallthru
        _
    $region16: #{cltsbr_forward.32} parent=5 // pred_fallthru
      _
    %p119 = scmp.le.s32.totalorder 1, %s8
    %p120 = scmp.lt.s32.totalorder %s8, 3
    %p121 = pnand %p119, %p120
    %p122 = pneg %p121
    // Predicated region
    $region25: #{cltsbr_forward.32} parent=5 // pred_check
      _
    $region26: #{cltsbr_forward.32} parent=5 // pred_check_branch
      %124 = sbr.rel (%p121) target = $region28
    $region27: #{cltsbr_forward.32} parent=5 // pred_region
      %s125 = ssub.s32 %s8, 1
      %p126 = scmp.lt.s32.totalorder %s13, 1
      %s127 = scalar_select %p126, %s13, 1
      %s128 = smul.addr %s127, 4
      %s129 = scalar_lea.vmem %s0, %s128
      %p130 = pneg %p34
      %p131 = pneg %p31
      %p132 = scmp.lt.s32.totalorder %s13, 1
      %s133 = scalar_select %p132, %s13, 1
      %s134 = smul.addr %s133, 2
      %s135 = scalar_lea.vmem %s1, %s134
      %p136 = pneg %p60
      %p137 = pneg %p57
      %p138 = pneg %p86
      %p139 = pneg %p83
      %p140 = scmp.lt.s32.totalorder %s13, 1
      %s141 = scalar_select %p140, %s13, 1
      %s142 = smul.addr %s141, 4
      %s143 = scalar_lea.vmem %s2, %s142
      %p144 = scmp.lt.s32.totalorder %s13, 1
      %s145 = scalar_select %p144, %s13, 1
      %s146 = smul.addr %s145, 4
      %s147 = scalar_lea.vmem %s0, %s146
      %p148 = scmp.lt.s32.totalorder %s13, 1
      %s149 = scalar_select %p148, %s13, 1
      %s150 = smul.addr %s149, 2
      %s151 = scalar_lea.vmem %s1, %s150
      %p152 = scmp.lt.s32.totalorder %s13, 1
      %s153 = scalar_select %p152, %s13, 1
      %s154 = smul.addr %s153, 4
      %s155 = scalar_lea.vmem %s2, %s154
      %v157 = vld [vmem:[%s147] sm:$0xf]
      %v158 = vld [vmem:[%s151] sm:$0x3]
      %vm159 = vcmask 130048
      %v161 = vsel %vm159, %v157, 0
      %v164 = vsel %vm159, %v158, 0
      %166 = vmatprep.subr.bf16.mxu0 0
      %167 = vmatpush1.bf16.xpose.msra.mxu0 %v164
      %168 = vmatprep.subr.bf16.mxu0 0
      %169 = vmatpush1.bf16.xpose.msra.mxu0 0
      %170 = vmatprep.subr.bf16.mxu0 0
      %171 = vmatpush1.bf16.xpose.msra.mxu0 0
      %172 = vmatprep.subr.bf16.mxu0 0
      %173 = vmatpush1.bf16.xpose.msra.mxu0 0
      %174 = vmatprep.subr.bf16.mxu0 0
      %175 = vmatpush1.bf16.xpose.msra.mxu0 0
      %176 = vmatprep.subr.bf16.mxu0 0
      %177 = vmatpush1.bf16.xpose.msra.mxu0 0
      %178 = vmatprep.subr.bf16.mxu0 0
      %179 = vmatpush1.bf16.xpose.msra.mxu0 0
      %180 = vmatprep.subr.bf16.mxu0 0
      %181 = vmatpush1.bf16.xpose.msra.mxu0 0
      %182 = vmatprep.subr.bf16.mxu0 0
      %183 = vmatpush1.bf16.xpose.msra.mxu0 0
      %184 = vmatprep.subr.bf16.mxu0 0
      %185 = vmatpush1.bf16.xpose.msra.mxu0 0
      %186 = vmatprep.subr.bf16.mxu0 0
      %187 = vmatpush1.bf16.xpose.msra.mxu0 0
      %188 = vmatprep.subr.bf16.mxu0 0
      %189 = vmatpush1.bf16.xpose.msra.mxu0 0
      %190 = vmatprep.subr.bf16.mxu0 0
      %191 = vmatpush1.bf16.xpose.msra.mxu0 0
      %192 = vmatprep.subr.bf16.mxu0 0
      %193 = vmatpush1.bf16.xpose.msra.mxu0 0
      %194 = vmatprep.subr.bf16.mxu0 0
      %195 = vmatpush1.bf16.xpose.msra.mxu0 0
      %196 = vmatprep.subr.bf16.mxu0 0
      %197 = vmatpush1.bf16.xpose.msra.mxu0 0
      %198 = vmatprep.mubr.bf16.mxu0 0
      %199 = vmatmul.mubr.bf16.gmra.mrb[0].mxu0 %v161
      %v200 = vpop.f32.mrb[0].mxu0
      %v201 = vadd.f32 0.0, %v200
      %v202 = vpop.f32.mrb[0].mxu0
      %v203 = vpop.f32.mrb[0].mxu0
      %v204 = vpop.f32.mrb[0].mxu0
      %205 = vdwg.mxu0
      %v206 = vmul.f32 %v201, 0.25
      %vm207 = vcmask 31744
      %v208 = vsel %vm207, %v206, -inf
      %209 = vmax.xlane.f32.xlu0 %v208
      %v210 = vpop.xlane.xlu0 %209
      %v211 = vsub.f32 %v206, %v210
      %v212 = vmul.f32 %v211, 1.442695
      %v213 = vpow.pop %v212
      %v214 = vsel %vm207, %v213, 0.0
      %215 = vadd.xlane.f32.xlu0 %v214
      %v216 = vpop.xlane.xlu0 %215
      %v217 = vrcp.pop %v216
      %v218 = vmul.f32 %v213, %v217
      %v219 = vpack.c.bf16 %v218, %v218
      %v222 = vunpack.c.l.s4 1983009808
      %v223 = vunpack.c.0.s8 %v222
      %v224 = vlaneseq
      %v225 = vshrl.u32 %v224, 7
      %v226 = vsub.s32 %v223, %v225
      %v227 = vrot.slane %v158, %v226
      %228 = vrot.lane.b32.xlu0 %v227, 96
      %v229 = vpop.permute.xlu0 %228
      %v231 = vsel %vm207, %v219, 0
      %vm233 = vcmask 1041408
      %v235 = vsel %vm233, %v229, 0
      %237 = vmatprep.subr.bf16.mxu0 0
      %238 = vmatpush1.bf16.msra.mxu0 %v235
      %239 = vmatprep.subr.bf16.mxu0 0
      %240 = vmatpush1.bf16.msra.mxu0 0
      %241 = vmatprep.subr.bf16.mxu0 0
      %242 = vmatpush1.bf16.msra.mxu0 0
      %243 = vmatprep.subr.bf16.mxu0 0
      %244 = vmatpush1.bf16.msra.mxu0 0
      %245 = vmatprep.subr.bf16.mxu0 0
      %246 = vmatpush1.bf16.msra.mxu0 0
      %247 = vmatprep.subr.bf16.mxu0 0
      %248 = vmatpush1.bf16.msra.mxu0 0
      %249 = vmatprep.subr.bf16.mxu0 0
      %250 = vmatpush1.bf16.msra.mxu0 0
      %251 = vmatprep.subr.bf16.mxu0 0
      %252 = vmatpush1.bf16.msra.mxu0 0
      %253 = vmatprep.subr.bf16.mxu0 0
      %254 = vmatpush1.bf16.msra.mxu0 0
      %255 = vmatprep.subr.bf16.mxu0 0
      %256 = vmatpush1.bf16.msra.mxu0 0
      %257 = vmatprep.subr.bf16.mxu0 0
      %258 = vmatpush1.bf16.msra.mxu0 0
      %259 = vmatprep.subr.bf16.mxu0 0
      %260 = vmatpush1.bf16.msra.mxu0 0
      %261 = vmatprep.subr.bf16.mxu0 0
      %262 = vmatpush1.bf16.msra.mxu0 0
      %263 = vmatprep.subr.bf16.mxu0 0
      %264 = vmatpush1.bf16.msra.mxu0 0
      %265 = vmatprep.subr.bf16.mxu0 0
      %266 = vmatpush1.bf16.msra.mxu0 0
      %267 = vmatprep.subr.bf16.mxu0 0
      %268 = vmatpush1.bf16.msra.mxu0 0
      %269 = vmatprep.mubr.bf16.mxu0 0
      %270 = vmatmul.mubr.bf16.gmra.mrb[0].mxu0 %v231
      %v271 = vpop.f32.mrb[0].mxu0
      %v272 = vadd.f32 0.0, %v271
      %v273 = vpop.f32.mrb[0].mxu0
      %v274 = vpop.f32.mrb[0].mxu0
      %v275 = vpop.f32.mrb[0].mxu0
      %276 = vdwg.mxu0
      %v278 = vunpack.c.l.b16 %v157
      %v279 = vpack.c.b16 %v278, %v278
      %280 = vrot.lane.b32.xlu0 %v279, 112
      %v281 = vpop.permute.xlu0 %280
      %282 = vrot.lane.b32.xlu0 %v227, 112
      %v283 = vpop.permute.xlu0 %282
      %v285 = vsel %vm159, %v281, 0
      %v288 = vsel %vm159, %v283, 0
      %290 = vmatprep.subr.bf16.mxu0 0
      %291 = vmatpush1.bf16.xpose.msra.mxu0 %v288
      %292 = vmatprep.subr.bf16.mxu0 0
      %293 = vmatpush1.bf16.xpose.msra.mxu0 0
      %294 = vmatprep.subr.bf16.mxu0 0
      %295 = vmatpush1.bf16.xpose.msra.mxu0 0
      %296 = vmatprep.subr.bf16.mxu0 0
      %297 = vmatpush1.bf16.xpose.msra.mxu0 0
      %298 = vmatprep.subr.bf16.mxu0 0
      %299 = vmatpush1.bf16.xpose.msra.mxu0 0
      %300 = vmatprep.subr.bf16.mxu0 0
      %301 = vmatpush1.bf16.xpose.msra.mxu0 0
      %302 = vmatprep.subr.bf16.mxu0 0
      %303 = vmatpush1.bf16.xpose.msra.mxu0 0
      %304 = vmatprep.subr.bf16.mxu0 0
      %305 = vmatpush1.bf16.xpose.msra.mxu0 0
      %306 = vmatprep.subr.bf16.mxu0 0
      %307 = vmatpush1.bf16.xpose.msra.mxu0 0
      %308 = vmatprep.subr.bf16.mxu0 0
      %309 = vmatpush1.bf16.xpose.msra.mxu0 0
      %310 = vmatprep.subr.bf16.mxu0 0
      %311 = vmatpush1.bf16.xpose.msra.mxu0 0
      %312 = vmatprep.subr.bf16.mxu0 0
      %313 = vmatpush1.bf16.xpose.msra.mxu0 0
      %314 = vmatprep.subr.bf16.mxu0 0
      %315 = vmatpush1.bf16.xpose.msra.mxu0 0
      %316 = vmatprep.subr.bf16.mxu0 0
      %317 = vmatpush1.bf16.xpose.msra.mxu0 0
      %318 = vmatprep.subr.bf16.mxu0 0
      %319 = vmatpush1.bf16.xpose.msra.mxu0 0
      %320 = vmatprep.subr.bf16.mxu0 0
      %321 = vmatpush1.bf16.xpose.msra.mxu0 0
      %322 = vmatprep.mubr.bf16.mxu0 0
      %323 = vmatmul.mubr.bf16.gmra.mrb[0].mxu0 %v285
      %v324 = vpop.f32.mrb[0].mxu0
      %v325 = vadd.f32 0.0, %v324
      %v326 = vpop.f32.mrb[0].mxu0
      %v327 = vpop.f32.mrb[0].mxu0
      %v328 = vpop.f32.mrb[0].mxu0
      %329 = vdwg.mxu0
      %v330 = vmul.f32 %v325, 0.25
      %v331 = vsel %vm207, %v330, -inf
      %332 = vmax.xlane.f32.xlu0 %v331
      %v333 = vpop.xlane.xlu0 %332
      %v334 = vsub.f32 %v330, %v333
      %v335 = vmul.f32 %v334, 1.442695
      %v336 = vpow.pop %v335
      %v337 = vsel %vm207, %v336, 0.0
      %338 = vadd.xlane.f32.xlu0 %v337
      %v339 = vpop.xlane.xlu0 %338
      %v340 = vrcp.pop %v339
      %v341 = vmul.f32 %v336, %v340
      %v342 = vpack.c.bf16 %v341, %v341
      %343 = vrot.lane.b32.xlu0 %v227, 80
      %v344 = vpop.permute.xlu0 %343
      %v346 = vsel %vm207, %v342, 0
      %v349 = vsel %vm233, %v344, 0
      %351 = vmatprep.subr.bf16.mxu0 0
      %352 = vmatpush1.bf16.msra.mxu0 %v349
      %353 = vmatprep.subr.bf16.mxu0 0
      %354 = vmatpush1.bf16.msra.mxu0 0
      %355 = vmatprep.subr.bf16.mxu0 0
      %356 = vmatpush1.bf16.msra.mxu0 0
      %357 = vmatprep.subr.bf16.mxu0 0
      %358 = vmatpush1.bf16.msra.mxu0 0
      %359 = vmatprep.subr.bf16.mxu0 0
      %360 = vmatpush1.bf16.msra.mxu0 0
      %361 = vmatprep.subr.bf16.mxu0 0
      %362 = vmatpush1.bf16.msra.mxu0 0
      %363 = vmatprep.subr.bf16.mxu0 0
      %364 = vmatpush1.bf16.msra.mxu0 0
      %365 = vmatprep.subr.bf16.mxu0 0
      %366 = vmatpush1.bf16.msra.mxu0 0
      %367 = vmatprep.subr.bf16.mxu0 0
      %368 = vmatpush1.bf16.msra.mxu0 0
      %369 = vmatprep.subr.bf16.mxu0 0
      %370 = vmatpush1.bf16.msra.mxu0 0
      %371 = vmatprep.subr.bf16.mxu0 0
      %372 = vmatpush1.bf16.msra.mxu0 0
      %373 = vmatprep.subr.bf16.mxu0 0
      %374 = vmatpush1.bf16.msra.mxu0 0
      %375 = vmatprep.subr.bf16.mxu0 0
      %376 = vmatpush1.bf16.msra.mxu0 0
      %377 = vmatprep.subr.bf16.mxu0 0
      %378 = vmatpush1.bf16.msra.mxu0 0
      %379 = vmatprep.subr.bf16.mxu0 0
      %380 = vmatpush1.bf16.msra.mxu0 0
      %381 = vmatprep.subr.bf16.mxu0 0
      %382 = vmatpush1.bf16.msra.mxu0 0
      %383 = vmatprep.mubr.bf16.mxu0 0
      %384 = vmatmul.mubr.bf16.gmra.mrb[0].mxu0 %v346
      %v385 = vpop.f32.mrb[0].mxu0
      %v386 = vadd.f32 0.0, %v385
      %v387 = vpop.f32.mrb[0].mxu0
      %v388 = vpop.f32.mrb[0].mxu0
      %v389 = vpop.f32.mrb[0].mxu0
      %390 = vdwg.mxu0
      %392 = vrot.lane.b32.xlu0 %v386, 16
      %v393 = vpop.permute.xlu0 %392
      %v395 = vsel %vm159, %v272, %v393
      %v396 = vpack.c.bf16 %v395, %v395
      %vm397 = vcmask 257024
      %398 = vst.msk [vmem:[%s155] sm:$0xf] %vm397, %v396
      %p399 = scmp.lt.s32.totalorder %s13, 1
      %s400 = scalar_select %p399, %s13, 1
      %s401 = smul.addr %s400, 4
      %s402 = scalar_lea.vmem %s2, %s401
      // Predicated region
      $region29: #{cltsbr_forward.32} parent=27 // pred_check
        %p403 = pneg %p83
      $region30: #{cltsbr_forward.32} parent=27 // pred_check_branch
        %405 = sbr.rel (%p403) target = $region32
      $region31: #{cltsbr_forward.32} parent=27 // pred_region
        _
      $region32: #{cltsbr_forward.32} parent=27 // pred_fallthru
        _
    $region28: #{cltsbr_forward.32} parent=5 // pred_fallthru
      _
    %p406 = scmp.le.s32.totalorder 2, %s8
    // Predicated region
    $region33: #{cltsbr_forward.32} parent=5 // pred_check
      %p407 = pneg %p406
    $region34: #{cltsbr_forward.32} parent=5 // pred_check_branch
      %409 = sbr.rel (%p407) target = $region36
    $region35: #{cltsbr_forward.32} parent=5 // pred_region
      %s410 = ssub.s32 %s8, 2
      // Predicated region
      $region37: #{cltsbr_forward.32} parent=35 // pred_check
        %p411 = pneg %p89
      $region38: #{cltsbr_forward.32} parent=35 // pred_check_branch
        %413 = sbr.rel (%p411) target = $region40
      $region39: #{cltsbr_forward.32} parent=35 // pred_region
        %p414 = scmp.lt.s32.totalorder %s14, 1
        %s415 = scalar_select %p414, %s14, 1
        %s416 = smul.addr %s415, 4
        %s417 = scalar_lea.vmem %s2, %s416
      $region40: #{cltsbr_forward.32} parent=35 // pred_fallthru
        _
    $region36: #{cltsbr_forward.32} parent=5 // pred_fallthru
      _
  $region6: #{cltsbr_forward.32} parent=0 // loop_footer
    %s12 = sadd.s32 1, %s8
  $region7: #{cltsbr_forward.32} parent=0 // loop_footer_branch
    %7 = sbr.rel target = $region3
  $region8: #{cltsbr_forward.32} parent=0 // loop_exit
    _

// kernel: squeeze.2
$region0: #{squeeze.2}
  %s0 = inlined_call_operand.vmem [shape: f32[16], index: 0, kind: input, shape index: {}]
  %s1 = inlined_call_operand.hbm [shape: f32[2,8], index: 1, kind: output, shape index: {}]
  $region1: #{squeeze.2} parent=0
    #allocation0 [shape = 'u8[1024]{0}', space=vmem, size = 0x400, scoped, tag = 'operand span for operand 1']
    #allocation1 [shape = 's32[1]{0}', space=sflag, size = 0x4, scoped, tag = 'scoped memory for squeeze.2']
    #allocation2 [shape = 'u8[4096]{0}', space=vmem, size = 0x1000, scoped, tag = 'scoped mem for output reshape']
    #allocation3 [shape = 'u8[4096]{0}', space=vmem, size = 0x1000, scoped, tag = 'scoped mem for input reshape']
    %2 = vsyncpa [#allocation1], 0
    %s4 = sshllo.u32 0, 1
    %v5 = vld [vmem:[%s0] sm:%s4]
    %6 = vst [vmem:[#allocation3] sm:%s4] %v5
    %v7 = vld [vmem:[#allocation3] sm:$0x1]
    %vm8 = vcmask 64512
    %9 = vst.msk [vmem:[#allocation2] sm:$0x1] %vm8, %v7
    %v10 = vld [vmem:[#allocation3] sm:$0x1]
    %11 = vrot.lane.b32.xlu0 %v10, 120
    %v12 = vpop.permute.xlu0 %11
    %vm13 = vcmask 64512
    %s14 = scalar_lea.vmem [#allocation2], 1
    %15 = vst.msk [vmem:[%s14] sm:$0x1] %vm13, %v12
    %s17 = sshllo.u32 0, 2
    %v19 = vld [vmem:[#allocation2] sm:%s17]
    %s20 = sshllo.u32 0, 2
    %21 = vst [vmem:[#allocation0] sm:%s20] %v19
    %s23 = ssub.s32 32, 32
    %24 = vsyncadd [#allocation1], %s23
    %s26 = sshll.u32 [#allocation0], 4
    %s27 = int_to_ptr.vmem [resolvable:$true] %s26
    %29 = dma.vmem_to_hbm [thread:$0]  %s27, 32, %s1, [#allocation1]
    %30 = dma.done [#allocation1], 32
    %31 = vsyncpa [#allocation1], 1

// kernel: cltsbr_forward.35
$region0: #{cltsbr_forward.35}
  #allocation0 [shape = 'u32[]', space=smem, size = 0x4, offset = 0x4, fixed_abs, tag = 'smem constant byte address 0x4 - core index']
  #allocation1 [shape = 'u32[144,128]{1,0:T(1,128)}', space=vmem, size = 0x12000, scoped, tag = 'internal scratch']
  %s0 = inlined_call_operand.vmem [shape: f32[16,32], index: 0, kind: input, shape index: {}]
  %s1 = inlined_call_operand.vmem [shape: f32[16,32], index: 1, kind: input, shape index: {}]
  %s2 = inlined_call_operand.vmem [shape: f32[16,32], index: 2, kind: input, shape index: {}]
  %s3 = inlined_call_operand.vmem [shape: f32[16,32], index: 3, kind: input, shape index: {}]
  %s4 = inlined_call_operand.vmem [shape: bf16[32,32], index: 4, kind: input, shape index: {}]
  %s5 = inlined_call_operand.vmem [shape: bf16[32,32], index: 5, kind: input, shape index: {}]
  %s6 = inlined_call_operand.vmem [shape: f32[1,32], index: 6, kind: input, shape index: {}]
  %s7 = inlined_call_operand.vmem [shape: f32[16,2], index: 7, kind: output, shape index: {}]
  %s8 = sld [smem:[#allocation0]]
  $region38: #{cltsbr_forward.35} parent=0
    _
  %s10 = ssub.s32 1, %s8
  %s11 = scalar_select 0, %s10, %s8
  // Predicated region
  $region2: #{cltsbr_forward.35} parent=0 // pred_check
    _
  $region3: #{cltsbr_forward.35} parent=0 // pred_check_branch
    %13 = sbr.rel (0) target = $region5
  $region4: #{cltsbr_forward.35} parent=0 // pred_region
    _
  $region5: #{cltsbr_forward.35} parent=0 // pred_fallthru
    _
  // Predicated region
  $region6: #{cltsbr_forward.35} parent=0 // pred_check
    _
  $region7: #{cltsbr_forward.35} parent=0 // pred_check_branch
    %15 = sbr.rel (0) target = $region9
  $region8: #{cltsbr_forward.35} parent=0 // pred_region
    _
  $region9: #{cltsbr_forward.35} parent=0 // pred_fallthru
    _
  // Predicated region
  $region10: #{cltsbr_forward.35} parent=0 // pred_check
    _
  $region11: #{cltsbr_forward.35} parent=0 // pred_check_branch
    %17 = sbr.rel (0) target = $region13
  $region12: #{cltsbr_forward.35} parent=0 // pred_region
    _
  $region13: #{cltsbr_forward.35} parent=0 // pred_fallthru
    _
  // Predicated region
  $region14: #{cltsbr_forward.35} parent=0 // pred_check
    _
  $region15: #{cltsbr_forward.35} parent=0 // pred_check_branch
    %19 = sbr.rel (0) target = $region17
  $region16: #{cltsbr_forward.35} parent=0 // pred_region
    _
  $region17: #{cltsbr_forward.35} parent=0 // pred_fallthru
    _
  // Predicated region
  $region18: #{cltsbr_forward.35} parent=0 // pred_check
    _
  $region19: #{cltsbr_forward.35} parent=0 // pred_check_branch
    %21 = sbr.rel (0) target = $region21
  $region20: #{cltsbr_forward.35} parent=0 // pred_region
    _
  $region21: #{cltsbr_forward.35} parent=0 // pred_fallthru
    _
  // Predicated region
  $region22: #{cltsbr_forward.35} parent=0 // pred_check
    _
  $region23: #{cltsbr_forward.35} parent=0 // pred_check_branch
    %23 = sbr.rel (0) target = $region25
  $region24: #{cltsbr_forward.35} parent=0 // pred_region
    _
  $region25: #{cltsbr_forward.35} parent=0 // pred_fallthru
    _
  // Predicated region
  $region26: #{cltsbr_forward.35} parent=0 // pred_check
    _
  $region27: #{cltsbr_forward.35} parent=0 // pred_check_branch
    %25 = sbr.rel (0) target = $region29
  $region28: #{cltsbr_forward.35} parent=0 // pred_region
    _
  $region29: #{cltsbr_forward.35} parent=0 // pred_fallthru
    _
  %v27 = vld [vmem:[%s0] sm:$0xff]
  %v28 = vld [vmem:[%s0 + $0x8] sm:$0xff]
  %v29 = vld [vmem:[%s1] sm:$0xff]
  %v30 = vld [vmem:[%s1 + $0x8] sm:$0xff]
  %v31 = vpack.c.bf16 %v28, %v27
  %v32 = vld [vmem:[%s4] sm:$0xf]
  %v33 = vld [vmem:[%s4 + $0x4] sm:$0xf]
  %v34 = vld [vmem:[%s4 + $0x8] sm:$0xf]
  %v35 = vld [vmem:[%s4 + $0xc] sm:$0xf]
  %v36 = vpack.c.bf16 %v30, %v29
  %v37 = vld [vmem:[%s5] sm:$0xf]
  %v38 = vld [vmem:[%s5 + $0x4] sm:$0xf]
  %v39 = vld [vmem:[%s5 + $0x8] sm:$0xf]
  %v40 = vld [vmem:[%s5 + $0xc] sm:$0xf]
  %v45 = vunpack.c.l.b16 %v37
  %v46 = vunpack.c.l.b16 %v38
  %v47 = vunpack.c.l.b16 %v39
  %v48 = vunpack.c.l.b16 %v40
  %v49 = vpack.c.b16 %v46, %v45
  %v50 = vpack.c.b16 %v48, %v47
  %vm53 = vcmask 261120
  %v55 = vsel %vm53, %v36, 0
  %57 = vmatprep.subr.bf16.mxu0 0
  %58 = vmatpush1.bf16.msra.mxu0 %v49
  %59 = vmatprep.subr.bf16.mxu0 0
  %60 = vmatpush1.bf16.msra.mxu0 %v50
  %61 = vmatprep.subr.bf16.mxu0 0
  %62 = vmatpush1.bf16.msra.mxu0 0
  %63 = vmatprep.subr.bf16.mxu0 0
  %64 = vmatpush1.bf16.msra.mxu0 0
  %65 = vmatprep.subr.bf16.mxu0 0
  %66 = vmatpush1.bf16.msra.mxu0 0
  %67 = vmatprep.subr.bf16.mxu0 0
  %68 = vmatpush1.bf16.msra.mxu0 0
  %69 = vmatprep.subr.bf16.mxu0 0
  %70 = vmatpush1.bf16.msra.mxu0 0
  %71 = vmatprep.subr.bf16.mxu0 0
  %72 = vmatpush1.bf16.msra.mxu0 0
  %73 = vmatprep.subr.bf16.mxu0 0
  %74 = vmatpush1.bf16.msra.mxu0 0
  %75 = vmatprep.subr.bf16.mxu0 0
  %76 = vmatpush1.bf16.msra.mxu0 0
  %77 = vmatprep.subr.bf16.mxu0 0
  %78 = vmatpush1.bf16.msra.mxu0 0
  %79 = vmatprep.subr.bf16.mxu0 0
  %80 = vmatpush1.bf16.msra.mxu0 0
  %81 = vmatprep.subr.bf16.mxu0 0
  %82 = vmatpush1.bf16.msra.mxu0 0
  %83 = vmatprep.subr.bf16.mxu0 0
  %84 = vmatpush1.bf16.msra.mxu0 0
  %85 = vmatprep.subr.bf16.mxu0 0
  %86 = vmatpush1.bf16.msra.mxu0 0
  %87 = vmatprep.subr.bf16.mxu0 0
  %88 = vmatpush1.bf16.msra.mxu0 0
  %89 = vmatprep.mubr.bf16.mxu0 0
  %90 = vmatmul.mubr.bf16.gmra.mrb[0].mxu0 %v55
  %v91 = vpop.f32.mrb[0].mxu0
  %v92 = vadd.f32 0.0, %v91
  %v93 = vpop.f32.mrb[0].mxu0
  %v94 = vpop.f32.mrb[0].mxu0
  %v95 = vadd.f32 0.0, %v94
  %v96 = vpop.f32.mrb[0].mxu0
  %97 = vdwg.mxu0
  %v102 = vunpack.c.l.b16 %v32
  %v103 = vunpack.c.l.b16 %v33
  %v104 = vunpack.c.l.b16 %v34
  %v105 = vunpack.c.l.b16 %v35
  %v106 = vpack.c.b16 %v103, %v102
  %v107 = vpack.c.b16 %v105, %v104
  %v111 = vsel %vm53, %v31, 0
  %113 = vmatprep.subr.bf16.mxu0 0
  %114 = vmatpush1.bf16.msra.mxu0 %v106
  %115 = vmatprep.subr.bf16.mxu0 0
  %116 = vmatpush1.bf16.msra.mxu0 %v107
  %117 = vmatprep.subr.bf16.mxu0 0
  %118 = vmatpush1.bf16.msra.mxu0 0
  %119 = vmatprep.subr.bf16.mxu0 0
  %120 = vmatpush1.bf16.msra.mxu0 0
  %121 = vmatprep.subr.bf16.mxu0 0
  %122 = vmatpush1.bf16.msra.mxu0 0
  %123 = vmatprep.subr.bf16.mxu0 0
  %124 = vmatpush1.bf16.msra.mxu0 0
  %125 = vmatprep.subr.bf16.mxu0 0
  %126 = vmatpush1.bf16.msra.mxu0 0
  %127 = vmatprep.subr.bf16.mxu0 0
  %128 = vmatpush1.bf16.msra.mxu0 0
  %129 = vmatprep.subr.bf16.mxu0 0
  %130 = vmatpush1.bf16.msra.mxu0 0
  %131 = vmatprep.subr.bf16.mxu0 0
  %132 = vmatpush1.bf16.msra.mxu0 0
  %133 = vmatprep.subr.bf16.mxu0 0
  %134 = vmatpush1.bf16.msra.mxu0 0
  %135 = vmatprep.subr.bf16.mxu0 0
  %136 = vmatpush1.bf16.msra.mxu0 0
  %137 = vmatprep.subr.bf16.mxu0 0
  %138 = vmatpush1.bf16.msra.mxu0 0
  %139 = vmatprep.subr.bf16.mxu0 0
  %140 = vmatpush1.bf16.msra.mxu0 0
  %141 = vmatprep.subr.bf16.mxu0 0
  %142 = vmatpush1.bf16.msra.mxu0 0
  %143 = vmatprep.subr.bf16.mxu0 0
  %144 = vmatpush1.bf16.msra.mxu0 0
  %145 = vmatprep.mubr.bf16.mxu0 0
  %146 = vmatmul.mubr.bf16.gmra.mrb[0].mxu0 %v111
  %v147 = vpop.f32.mrb[0].mxu0
  %v148 = vadd.f32 %v92, %v147
  %v149 = vpop.f32.mrb[0].mxu0
  %v150 = vpop.f32.mrb[0].mxu0
  %v151 = vadd.f32 %v95, %v150
  %v152 = vpop.f32.mrb[0].mxu0
  %153 = vdwg.mxu0
  %v154 = vld [vmem:[%s6] sm:$0x1]
  %v156 = vlaneseq
  %v157 = vshrl.u32 %v156, 7
  %v158 = vsub.s32 0, %v157
  %v159 = vrot.slane %v154, %v158
  %v161 = vadd.f32 %v148, %v159
  %v162 = vadd.f32 %v151, %v159
  %v163 = vxor.u32 %v161, 2147483648
  %v164 = vxor.u32 %v162, 2147483648
  %v165 = vmul.f32 %v163, 1.442695
  %v166 = vpow.pop %v165
  %v167 = vmul.f32 %v164, 1.442695
  %v168 = vpow.pop %v167
  %v169 = vadd.f32 %v166, 1.0
  %v170 = vadd.f32 %v168, 1.0
  %v171 = vrcp.pop %v169
  %v172 = vmul.f32 1.0, %v171
  %v173 = vrcp.pop %v170
  %v174 = vmul.f32 1.0, %v173
  %v175 = vmul.f32 %v172, %v27
  %v176 = vmul.f32 %v174, %v28
  %v177 = vsub.f32 1.0, %v172
  %v178 = vsub.f32 1.0, %v174
  %v179 = vmul.f32 %v177, %v29
  %v180 = vmul.f32 %v178, %v30
  %v181 = vadd.f32 %v175, %v179
  %v182 = vadd.f32 %v176, %v180
  %v183 = vld [vmem:[%s2] sm:$0xff]
  %v184 = vld [vmem:[%s2 + $0x8] sm:$0xff]
  %v185 = vmul.f32 %v181, %v183
  %v186 = vmul.f32 %v182, %v184
  %v187 = vsel %vm53, %v185, 0.0
  %188 = vadd.xlane.f32.xlu0 %v187
  %v189 = vpop.xlane.xlu0 %188
  %v190 = vsel %vm53, %v186, 0.0
  %191 = vadd.xlane.f32.xlu0 %v190
  %v192 = vpop.xlane.xlu0 %191
  %v193 = vld [vmem:[%s3] sm:$0xff]
  %v194 = vld [vmem:[%s3 + $0x8] sm:$0xff]
  %v195 = vmul.f32 %v181, %v193
  %v196 = vmul.f32 %v182, %v194
  %v197 = vsel %vm53, %v195, 0.0
  %198 = vadd.xlane.f32.xlu0 %v197
  %v199 = vpop.xlane.xlu0 %198
  %v200 = vsel %vm53, %v196, 0.0
  %201 = vadd.xlane.f32.xlu0 %v200
  %v202 = vpop.xlane.xlu0 %201
  %vm203 = vcmask 7168
  %v204 = vsel %vm203, %v189, %v199
  %v205 = vsel %vm203, %v192, %v202
  %vm206 = vcmask 15360
  %207 = vst.msk [vmem:[%s7] sm:$0xff] %vm206, %v204
  %208 = vst.msk [vmem:[%s7 + $0x8] sm:$0xff] %vm206, %v205
  // Predicated region
  $region30: #{cltsbr_forward.35} parent=0 // pred_check
    _
  $region31: #{cltsbr_forward.35} parent=0 // pred_check_branch
    %210 = sbr.rel (0) target = $region33
  $region32: #{cltsbr_forward.35} parent=0 // pred_region
    _
  $region33: #{cltsbr_forward.35} parent=0 // pred_fallthru
    _
  // Predicated region
  $region34: #{cltsbr_forward.35} parent=0 // pred_check
    _
  $region35: #{cltsbr_forward.35} parent=0 // pred_check_branch
    %212 = sbr.rel (0) target = $region37
  $region36: #{cltsbr_forward.35} parent=0 // pred_region
    _
  $region37: #{cltsbr_forward.35} parent=0 // pred_fallthru
    _

// kernel: cltsbr_forward.34
$region0: #{cltsbr_forward.34}
  #allocation0 [shape = 'u32[]', space=smem, size = 0x4, offset = 0x4, fixed_abs, tag = 'smem constant byte address 0x4 - core index']
  #allocation1 [shape = 'u32[144,128]{1,0:T(1,128)}', space=vmem, size = 0x12000, scoped, tag = 'internal scratch']
  %s0 = inlined_call_operand.vmem [shape: f32[16,32], index: 0, kind: input, shape index: {}]
  %s1 = inlined_call_operand.vmem [shape: bf16[32,2048], index: 1, kind: input, shape index: {}]
  %s2 = inlined_call_operand.vmem [shape: f32[1,2048], index: 2, kind: input, shape index: {}]
  %s3 = inlined_call_operand.vmem [shape: bf16[2048,32], index: 3, kind: input, shape index: {}]
  %s4 = inlined_call_operand.vmem [shape: f32[1,32], index: 4, kind: input, shape index: {}]
  %s5 = inlined_call_operand.vmem [shape: f32[1,32], index: 5, kind: input, shape index: {}]
  %s6 = inlined_call_operand.vmem [shape: f32[1,32], index: 6, kind: input, shape index: {}]
  %s7 = inlined_call_operand.vmem [shape: f32[16,32], index: 7, kind: output, shape index: {}]
  %s8 = sld [smem:[#allocation0]]
  $region38: #{cltsbr_forward.34} parent=0
    _
  %s10 = ssub.s32 1, %s8
  %s11 = scalar_select 0, %s10, %s8
  // Predicated region
  $region2: #{cltsbr_forward.34} parent=0 // pred_check
    _
  $region3: #{cltsbr_forward.34} parent=0 // pred_check_branch
    %13 = sbr.rel (0) target = $region5
  $region4: #{cltsbr_forward.34} parent=0 // pred_region
    _
  $region5: #{cltsbr_forward.34} parent=0 // pred_fallthru
    _
  // Predicated region
  $region6: #{cltsbr_forward.34} parent=0 // pred_check
    _
  $region7: #{cltsbr_forward.34} parent=0 // pred_check_branch
    %15 = sbr.rel (0) target = $region9
  $region8: #{cltsbr_forward.34} parent=0 // pred_region
    _
  $region9: #{cltsbr_forward.34} parent=0 // pred_fallthru
    _
  // Predicated region
  $region10: #{cltsbr_forward.34} parent=0 // pred_check
    _
  $region11: #{cltsbr_forward.34} parent=0 // pred_check_branch
    %17 = sbr.rel (0) target = $region13
  $region12: #{cltsbr_forward.34} parent=0 // pred_region
    _
  $region13: #{cltsbr_forward.34} parent=0 // pred_fallthru
    _
  // Predicated region
  $region14: #{cltsbr_forward.34} parent=0 // pred_check
    _
  $region15: #{cltsbr_forward.34} parent=0 // pred_check_branch
    %19 = sbr.rel (0) target = $region17
  $region16: #{cltsbr_forward.34} parent=0 // pred_region
    _
  $region17: #{cltsbr_forward.34} parent=0 // pred_fallthru
    _
  // Predicated region
  $region18: #{cltsbr_forward.34} parent=0 // pred_check
    _
  $region19: #{cltsbr_forward.34} parent=0 // pred_check_branch
    %21 = sbr.rel (0) target = $region21
  $region20: #{cltsbr_forward.34} parent=0 // pred_region
    _
  $region21: #{cltsbr_forward.34} parent=0 // pred_fallthru
    _
  // Predicated region
  $region22: #{cltsbr_forward.34} parent=0 // pred_check
    _
  $region23: #{cltsbr_forward.34} parent=0 // pred_check_branch
    %23 = sbr.rel (0) target = $region25
  $region24: #{cltsbr_forward.34} parent=0 // pred_region
    _
  $region25: #{cltsbr_forward.34} parent=0 // pred_fallthru
    _
  // Predicated region
  $region26: #{cltsbr_forward.34} parent=0 // pred_check
    _
  $region27: #{cltsbr_forward.34} parent=0 // pred_check_branch
    %25 = sbr.rel (0) target = $region29
  $region28: #{cltsbr_forward.34} parent=0 // pred_region
    _
  $region29: #{cltsbr_forward.34} parent=0 // pred_fallthru
    _
  %v27 = vld [vmem:[%s0] sm:$0xff]
  %v28 = vld [vmem:[%s0 + $0x8] sm:$0xff]
  %v29 = vpack.c.bf16 %v28, %v27
  %v30 = vld [vmem:[%s1] sm:$0xff]
  %v31 = vld [vmem:[%s1 + $0x8] sm:$0xff]
  %v32 = vld [vmem:[%s1 + $0x10] sm:$0xff]
  %v33 = vld [vmem:[%s1 + $0x18] sm:$0xff]
  %v34 = vld [vmem:[%s1 + $0x20] sm:$0xff]
  %v35 = vld [vmem:[%s1 + $0x28] sm:$0xff]
  %v36 = vld [vmem:[%s1 + $0x30] sm:$0xff]
  %v37 = vld [vmem:[%s1 + $0x38] sm:$0xff]
  %v38 = vld [vmem:[%s1 + $0x40] sm:$0xff]
  %v39 = vld [vmem:[%s1 + $0x48] sm:$0xff]
  %v40 = vld [vmem:[%s1 + $0x50] sm:$0xff]
  %v41 = vld [vmem:[%s1 + $0x58] sm:$0xff]
  %v42 = vld [vmem:[%s1 + $0x60] sm:$0xff]
  %v43 = vld [vmem:[%s1 + $0x68] sm:$0xff]
  %v44 = vld [vmem:[%s1 + $0x70] sm:$0xff]
  %v45 = vld [vmem:[%s1 + $0x78] sm:$0xff]
  %v46 = vld [vmem:[%s1 + $0x80] sm:$0xff]
  %v47 = vld [vmem:[%s1 + $0x88] sm:$0xff]
  %v48 = vld [vmem:[%s1 + $0x90] sm:$0xff]
  %v49 = vld [vmem:[%s1 + $0x98] sm:$0xff]
  %v50 = vld [vmem:[%s1 + $0xa0] sm:$0xff]
  %v51 = vld [vmem:[%s1 + $0xa8] sm:$0xff]
  %v52 = vld [vmem:[%s1 + $0xb0] sm:$0xff]
  %v53 = vld [vmem:[%s1 + $0xb8] sm:$0xff]
  %v54 = vld [vmem:[%s1 + $0xc0] sm:$0xff]
  %v55 = vld [vmem:[%s1 + $0xc8] sm:$0xff]
  %v56 = vld [vmem:[%s1 + $0xd0] sm:$0xff]
  %v57 = vld [vmem:[%s1 + $0xd8] sm:$0xff]
  %v58 = vld [vmem:[%s1 + $0xe0] sm:$0xff]
  %v59 = vld [vmem:[%s1 + $0xe8] sm:$0xff]
  %v60 = vld [vmem:[%s1 + $0xf0] sm:$0xff]
  %v61 = vld [vmem:[%s1 + $0xf8] sm:$0xff]
  %v62 = vld [vmem:[%s2] sm:$0xff]
  %v63 = vld [vmem:[%s2 + $0x8] sm:$0xff]
  %v66 = vlaneseq
  %v67 = vshrl.u32 %v66, 7
  %v68 = vsub.s32 0, %v67
  %v69 = vrot.slane %v62, %v68
  %v70 = vlaneseq
  %v71 = vshrl.u32 %v70, 7
  %v72 = vsub.s32 1, %v71
  %v73 = vrot.slane %v62, %v72
  %v74 = vlaneseq
  %v75 = vshrl.u32 %v74, 7
  %v76 = vsub.s32 2, %v75
  %v77 = vrot.slane %v62, %v76
  %v78 = vlaneseq
  %v79 = vshrl.u32 %v78, 7
  %v80 = vsub.s32 3, %v79
  %v81 = vrot.slane %v62, %v80
  %v82 = vlaneseq
  %v83 = vshrl.u32 %v82, 7
  %v84 = vsub.s32 4, %v83
  %v85 = vrot.slane %v62, %v84
  %v86 = vlaneseq
  %v87 = vshrl.u32 %v86, 7
  %v88 = vsub.s32 5, %v87
  %v89 = vrot.slane %v62, %v88
  %v90 = vlaneseq
  %v91 = vshrl.u32 %v90, 7
  %v92 = vsub.s32 6, %v91
  %v93 = vrot.slane %v62, %v92
  %v94 = vlaneseq
  %v95 = vshrl.u32 %v94, 7
  %v96 = vsub.s32 7, %v95
  %v97 = vrot.slane %v62, %v96
  %v98 = vlaneseq
  %v99 = vshrl.u32 %v98, 7
  %v100 = vsub.s32 0, %v99
  %v101 = vrot.slane %v63, %v100
  %v102 = vlaneseq
  %v103 = vshrl.u32 %v102, 7
  %v104 = vsub.s32 1, %v103
  %v105 = vrot.slane %v63, %v104
  %v106 = vlaneseq
  %v107 = vshrl.u32 %v106, 7
  %v108 = vsub.s32 2, %v107
  %v109 = vrot.slane %v63, %v108
  %v110 = vlaneseq
  %v111 = vshrl.u32 %v110, 7
  %v112 = vsub.s32 3, %v111
  %v113 = vrot.slane %v63, %v112
  %v114 = vlaneseq
  %v115 = vshrl.u32 %v114, 7
  %v116 = vsub.s32 4, %v115
  %v117 = vrot.slane %v63, %v116
  %v118 = vlaneseq
  %v119 = vshrl.u32 %v118, 7
  %v120 = vsub.s32 5, %v119
  %v121 = vrot.slane %v63, %v120
  %v122 = vlaneseq
  %v123 = vshrl.u32 %v122, 7
  %v124 = vsub.s32 6, %v123
  %v125 = vrot.slane %v63, %v124
  %v126 = vlaneseq
  %v127 = vshrl.u32 %v126, 7
  %v128 = vsub.s32 7, %v127
  %v129 = vrot.slane %v63, %v128
  %v178 = vunpack.c.l.b16 %v30
  %v179 = vunpack.c.h.b16 %v30
  %v180 = vunpack.c.l.b16 %v31
  %v181 = vunpack.c.h.b16 %v31
  %v182 = vunpack.c.l.b16 %v32
  %v183 = vunpack.c.h.b16 %v32
  %v184 = vunpack.c.l.b16 %v33
  %v185 = vunpack.c.h.b16 %v33
  %v186 = vunpack.c.l.b16 %v34
  %v187 = vunpack.c.h.b16 %v34
  %v188 = vunpack.c.l.b16 %v35
  %v189 = vunpack.c.h.b16 %v35
  %v190 = vunpack.c.l.b16 %v36
  %v191 = vunpack.c.h.b16 %v36
  %v192 = vunpack.c.l.b16 %v37
  %v193 = vunpack.c.h.b16 %v37
  %v194 = vunpack.c.l.b16 %v38
  %v195 = vunpack.c.h.b16 %v38
  %v196 = vunpack.c.l.b16 %v39
  %v197 = vunpack.c.h.b16 %v39
  %v198 = vunpack.c.l.b16 %v40
  %v199 = vunpack.c.h.b16 %v40
  %v200 = vunpack.c.l.b16 %v41
  %v201 = vunpack.c.h.b16 %v41
  %v202 = vunpack.c.l.b16 %v42
  %v203 = vunpack.c.h.b16 %v42
  %v204 = vunpack.c.l.b16 %v43
  %v205 = vunpack.c.h.b16 %v43
  %v206 = vunpack.c.l.b16 %v44
  %v207 = vunpack.c.h.b16 %v44
  %v208 = vunpack.c.l.b16 %v45
  %v209 = vunpack.c.h.b16 %v45
  %v210 = vunpack.c.l.b16 %v46
  %v211 = vunpack.c.h.b16 %v46
  %v212 = vunpack.c.l.b16 %v47
  %v213 = vunpack.c.h.b16 %v47
  %v214 = vunpack.c.l.b16 %v48
  %v215 = vunpack.c.h.b16 %v48
  %v216 = vunpack.c.l.b16 %v49
  %v217 = vunpack.c.h.b16 %v49
  %v218 = vunpack.c.l.b16 %v50
  %v219 = vunpack.c.h.b16 %v50
  %v220 = vunpack.c.l.b16 %v51
  %v221 = vunpack.c.h.b16 %v51
  %v222 = vunpack.c.l.b16 %v52
  %v223 = vunpack.c.h.b16 %v52
  %v224 = vunpack.c.l.b16 %v53
  %v225 = vunpack.c.h.b16 %v53
  %v226 = vunpack.c.l.b16 %v54
  %v227 = vunpack.c.h.b16 %v54
  %v228 = vunpack.c.l.b16 %v55
  %v229 = vunpack.c.h.b16 %v55
  %v230 = vunpack.c.l.b16 %v56
  %v231 = vunpack.c.h.b16 %v56
  %v232 = vunpack.c.l.b16 %v57
  %v233 = vunpack.c.h.b16 %v57
  %v234 = vunpack.c.l.b16 %v58
  %v235 = vunpack.c.h.b16 %v58
  %v236 = vunpack.c.l.b16 %v59
  %v237 = vunpack.c.h.b16 %v59
  %v238 = vunpack.c.l.b16 %v60
  %v239 = vunpack.c.h.b16 %v60
  %v240 = vunpack.c.l.b16 %v61
  %v241 = vunpack.c.h.b16 %v61
  %v242 = vpack.c.b16 %v194, %v178
  %v243 = vpack.c.b16 %v195, %v179
  %v244 = vpack.c.b16 %v196, %v180
  %v245 = vpack.c.b16 %v197, %v181
  %v246 = vpack.c.b16 %v198, %v182
  %v247 = vpack.c.b16 %v199, %v183
  %v248 = vpack.c.b16 %v200, %v184
  %v249 = vpack.c.b16 %v201, %v185
  %v250 = vpack.c.b16 %v202, %v186
  %v251 = vpack.c.b16 %v203, %v187
  %v252 = vpack.c.b16 %v204, %v188
  %v253 = vpack.c.b16 %v205, %v189
  %v254 = vpack.c.b16 %v206, %v190
  %v255 = vpack.c.b16 %v207, %v191
  %v256 = vpack.c.b16 %v208, %v192
  %v257 = vpack.c.b16 %v209, %v193
  %v258 = vpack.c.b16 %v226, %v210
  %v259 = vpack.c.b16 %v227, %v211
  %v260 = vpack.c.b16 %v228, %v212
  %v261 = vpack.c.b16 %v229, %v213
  %v262 = vpack.c.b16 %v230, %v214
  %v263 = vpack.c.b16 %v231, %v215
  %v264 = vpack.c.b16 %v232, %v216
  %v265 = vpack.c.b16 %v233, %v217
  %v266 = vpack.c.b16 %v234, %v218
  %v267 = vpack.c.b16 %v235, %v219
  %v268 = vpack.c.b16 %v236, %v220
  %v269 = vpack.c.b16 %v237, %v221
  %v270 = vpack.c.b16 %v238, %v222
  %v271 = vpack.c.b16 %v239, %v223
  %v272 = vpack.c.b16 %v240, %v224
  %v273 = vpack.c.b16 %v241, %v225
  %vm306 = vcmask 261120
  %v308 = vsel %vm306, %v29, 0
  %310 = vmatprep.subr.bf16.mxu0 %v243
  %311 = vmatpush1.bf16.msra.mxu0 %v242
  %312 = vmatprep.subr.bf16.mxu0 %v259
  %313 = vmatpush1.bf16.msra.mxu0 %v258
  %314 = vmatprep.subr.bf16.mxu0 0
  %315 = vmatpush1.bf16.msra.mxu0 0
  %316 = vmatprep.subr.bf16.mxu0 0
  %317 = vmatpush1.bf16.msra.mxu0 0
  %318 = vmatprep.subr.bf16.mxu0 0
  %319 = vmatpush1.bf16.msra.mxu0 0
  %320 = vmatprep.subr.bf16.mxu0 0
  %321 = vmatpush1.bf16.msra.mxu0 0
  %322 = vmatprep.subr.bf16.mxu0 0
  %323 = vmatpush1.bf16.msra.mxu0 0
  %324 = vmatprep.subr.bf16.mxu0 0
  %325 = vmatpush1.bf16.msra.mxu0 0
  %326 = vmatprep.subr.bf16.mxu0 0
  %327 = vmatpush1.bf16.msra.mxu0 0
  %328 = vmatprep.subr.bf16.mxu0 0
  %329 = vmatpush1.bf16.msra.mxu0 0
  %330 = vmatprep.subr.bf16.mxu0 0
  %331 = vmatpush1.bf16.msra.mxu0 0
  %332 = vmatprep.subr.bf16.mxu0 0
  %333 = vmatpush1.bf16.msra.mxu0 0
  %334 = vmatprep.subr.bf16.mxu0 0
  %335 = vmatpush1.bf16.msra.mxu0 0
  %336 = vmatprep.subr.bf16.mxu0 0
  %337 = vmatpush1.bf16.msra.mxu0 0
  %338 = vmatprep.subr.bf16.mxu0 0
  %339 = vmatpush1.bf16.msra.mxu0 0
  %340 = vmatprep.subr.bf16.mxu0 0
  %341 = vmatpush1.bf16.msra.mxu0 0
  %342 = vmatprep.mubr.bf16.mxu0 0
  %343 = vmatmul.mubr.bf16.gmra.mrb[0].mxu0 %v308
  %v344 = vpop.f32.mrb[0].mxu0
  %v345 = vadd.f32 %v69, %v344
  %v346 = vpop.f32.mrb[0].mxu0
  %v347 = vadd.f32 %v73, %v346
  %v348 = vpop.f32.mrb[0].mxu0
  %v349 = vadd.f32 %v69, %v348
  %v350 = vpop.f32.mrb[0].mxu0
  %v351 = vadd.f32 %v73, %v350
  %352 = vdwg.mxu0
  %353 = vmatprep.subr.bf16.mxu0 %v245
  %354 = vmatpush1.bf16.msra.mxu0 %v244
  %355 = vmatprep.subr.bf16.mxu0 %v261
  %356 = vmatpush1.bf16.msra.mxu0 %v260
  %357 = vmatprep.subr.bf16.mxu0 0
  %358 = vmatpush1.bf16.msra.mxu0 0
  %359 = vmatprep.subr.bf16.mxu0 0
  %360 = vmatpush1.bf16.msra.mxu0 0
  %361 = vmatprep.subr.bf16.mxu0 0
  %362 = vmatpush1.bf16.msra.mxu0 0
  %363 = vmatprep.subr.bf16.mxu0 0
  %364 = vmatpush1.bf16.msra.mxu0 0
  %365 = vmatprep.subr.bf16.mxu0 0
  %366 = vmatpush1.bf16.msra.mxu0 0
  %367 = vmatprep.subr.bf16.mxu0 0
  %368 = vmatpush1.bf16.msra.mxu0 0
  %369 = vmatprep.subr.bf16.mxu0 0
  %370 = vmatpush1.bf16.msra.mxu0 0
  %371 = vmatprep.subr.bf16.mxu0 0
  %372 = vmatpush1.bf16.msra.mxu0 0
  %373 = vmatprep.subr.bf16.mxu0 0
  %374 = vmatpush1.bf16.msra.mxu0 0
  %375 = vmatprep.subr.bf16.mxu0 0
  %376 = vmatpush1.bf16.msra.mxu0 0
  %377 = vmatprep.subr.bf16.mxu0 0
  %378 = vmatpush1.bf16.msra.mxu0 0
  %379 = vmatprep.subr.bf16.mxu0 0
  %380 = vmatpush1.bf16.msra.mxu0 0
  %381 = vmatprep.subr.bf16.mxu0 0
  %382 = vmatpush1.bf16.msra.mxu0 0
  %383 = vmatprep.subr.bf16.mxu0 0
  %384 = vmatpush1.bf16.msra.mxu0 0
  %385 = vmatprep.mubr.bf16.mxu0 0
  %386 = vmatmul.mubr.bf16.gmra.mrb[0].mxu0 %v308
  %v387 = vpop.f32.mrb[0].mxu0
  %v388 = vadd.f32 %v77, %v387
  %v389 = vpop.f32.mrb[0].mxu0
  %v390 = vadd.f32 %v81, %v389
  %v391 = vpop.f32.mrb[0].mxu0
  %v392 = vadd.f32 %v77, %v391
  %v393 = vpop.f32.mrb[0].mxu0
  %v394 = vadd.f32 %v81, %v393
  %395 = vdwg.mxu0
  %396 = vmatprep.subr.bf16.mxu0 %v247
  %397 = vmatpush1.bf16.msra.mxu0 %v246
  %398 = vmatprep.subr.bf16.mxu0 %v263
  %399 = vmatpush1.bf16.msra.mxu0 %v262
  %400 = vmatprep.subr.bf16.mxu0 0
  %401 = vmatpush1.bf16.msra.mxu0 0
  %402 = vmatprep.subr.bf16.mxu0 0
  %403 = vmatpush1.bf16.msra.mxu0 0
  %404 = vmatprep.subr.bf16.mxu0 0
  %405 = vmatpush1.bf16.msra.mxu0 0
  %406 = vmatprep.subr.bf16.mxu0 0
  %407 = vmatpush1.bf16.msra.mxu0 0
  %408 = vmatprep.subr.bf16.mxu0 0
  %409 = vmatpush1.bf16.msra.mxu0 0
  %410 = vmatprep.subr.bf16.mxu0 0
  %411 = vmatpush1.bf16.msra.mxu0 0
  %412 = vmatprep.subr.bf16.mxu0 0
  %413 = vmatpush1.bf16.msra.mxu0 0
  %414 = vmatprep.subr.bf16.mxu0 0
  %415 = vmatpush1.bf16.msra.mxu0 0
  %416 = vmatprep.subr.bf16.mxu0 0
  %417 = vmatpush1.bf16.msra.mxu0 0
  %418 = vmatprep.subr.bf16.mxu0 0
  %419 = vmatpush1.bf16.msra.mxu0 0
  %420 = vmatprep.subr.bf16.mxu0 0
  %421 = vmatpush1.bf16.msra.mxu0 0
  %422 = vmatprep.subr.bf16.mxu0 0
  %423 = vmatpush1.bf16.msra.mxu0 0
  %424 = vmatprep.subr.bf16.mxu0 0
  %425 = vmatpush1.bf16.msra.mxu0 0
  %426 = vmatprep.subr.bf16.mxu0 0
  %427 = vmatpush1.bf16.msra.mxu0 0
  %428 = vmatprep.mubr.bf16.mxu0 0
  %429 = vmatmul.mubr.bf16.gmra.mrb[0].mxu0 %v308
  %v430 = vpop.f32.mrb[0].mxu0
  %v431 = vadd.f32 %v85, %v430
  %v432 = vpop.f32.mrb[0].mxu0
  %v433 = vadd.f32 %v89, %v432
  %v434 = vpop.f32.mrb[0].mxu0
  %v435 = vadd.f32 %v85, %v434
  %v436 = vpop.f32.mrb[0].mxu0
  %v437 = vadd.f32 %v89, %v436
  %438 = vdwg.mxu0
  %439 = vmatprep.subr.bf16.mxu0 %v249
  %440 = vmatpush1.bf16.msra.mxu0 %v248
  %441 = vmatprep.subr.bf16.mxu0 %v265
  %442 = vmatpush1.bf16.msra.mxu0 %v264
  %443 = vmatprep.subr.bf16.mxu0 0
  %444 = vmatpush1.bf16.msra.mxu0 0
  %445 = vmatprep.subr.bf16.mxu0 0
  %446 = vmatpush1.bf16.msra.mxu0 0
  %447 = vmatprep.subr.bf16.mxu0 0
  %448 = vmatpush1.bf16.msra.mxu0 0
  %449 = vmatprep.subr.bf16.mxu0 0
  %450 = vmatpush1.bf16.msra.mxu0 0
  %451 = vmatprep.subr.bf16.mxu0 0
  %452 = vmatpush1.bf16.msra.mxu0 0
  %453 = vmatprep.subr.bf16.mxu0 0
  %454 = vmatpush1.bf16.msra.mxu0 0
  %455 = vmatprep.subr.bf16.mxu0 0
  %456 = vmatpush1.bf16.msra.mxu0 0
  %457 = vmatprep.subr.bf16.mxu0 0
  %458 = vmatpush1.bf16.msra.mxu0 0
  %459 = vmatprep.subr.bf16.mxu0 0
  %460 = vmatpush1.bf16.msra.mxu0 0
  %461 = vmatprep.subr.bf16.mxu0 0
  %462 = vmatpush1.bf16.msra.mxu0 0
  %463 = vmatprep.subr.bf16.mxu0 0
  %464 = vmatpush1.bf16.msra.mxu0 0
  %465 = vmatprep.subr.bf16.mxu0 0
  %466 = vmatpush1.bf16.msra.mxu0 0
  %467 = vmatprep.subr.bf16.mxu0 0
  %468 = vmatpush1.bf16.msra.mxu0 0
  %469 = vmatprep.subr.bf16.mxu0 0
  %470 = vmatpush1.bf16.msra.mxu0 0
  %471 = vmatprep.mubr.bf16.mxu0 0
  %472 = vmatmul.mubr.bf16.gmra.mrb[0].mxu0 %v308
  %v473 = vpop.f32.mrb[0].mxu0
  %v474 = vadd.f32 %v93, %v473
  %v475 = vpop.f32.mrb[0].mxu0
  %v476 = vadd.f32 %v97, %v475
  %v477 = vpop.f32.mrb[0].mxu0
  %v478 = vadd.f32 %v93, %v477
  %v479 = vpop.f32.mrb[0].mxu0
  %v480 = vadd.f32 %v97, %v479
  %481 = vdwg.mxu0
  %482 = vmatprep.subr.bf16.mxu0 %v251
  %483 = vmatpush1.bf16.msra.mxu0 %v250
  %484 = vmatprep.subr.bf16.mxu0 %v267
  %485 = vmatpush1.bf16.msra.mxu0 %v266
  %486 = vmatprep.subr.bf16.mxu0 0
  %487 = vmatpush1.bf16.msra.mxu0 0
  %488 = vmatprep.subr.bf16.mxu0 0
  %489 = vmatpush1.bf16.msra.mxu0 0
  %490 = vmatprep.subr.bf16.mxu0 0
  %491 = vmatpush1.bf16.msra.mxu0 0
  %492 = vmatprep.subr.bf16.mxu0 0
  %493 = vmatpush1.bf16.msra.mxu0 0
  %494 = vmatprep.subr.bf16.mxu0 0
  %495 = vmatpush1.bf16.msra.mxu0 0
  %496 = vmatprep.subr.bf16.mxu0 0
  %497 = vmatpush1.bf16.msra.mxu0 0
  %498 = vmatprep.subr.bf16.mxu0 0
  %499 = vmatpush1.bf16.msra.mxu0 0
  %500 = vmatprep.subr.bf16.mxu0 0
  %501 = vmatpush1.bf16.msra.mxu0 0
  %502 = vmatprep.subr.bf16.mxu0 0
  %503 = vmatpush1.bf16.msra.mxu0 0
  %504 = vmatprep.subr.bf16.mxu0 0
  %505 = vmatpush1.bf16.msra.mxu0 0
  %506 = vmatprep.subr.bf16.mxu0 0
  %507 = vmatpush1.bf16.msra.mxu0 0
  %508 = vmatprep.subr.bf16.mxu0 0
  %509 = vmatpush1.bf16.msra.mxu0 0
  %510 = vmatprep.subr.bf16.mxu0 0
  %511 = vmatpush1.bf16.msra.mxu0 0
  %512 = vmatprep.subr.bf16.mxu0 0
  %513 = vmatpush1.bf16.msra.mxu0 0
  %514 = vmatprep.mubr.bf16.mxu0 0
  %515 = vmatmul.mubr.bf16.gmra.mrb[0].mxu0 %v308
  %v516 = vpop.f32.mrb[0].mxu0
  %v517 = vadd.f32 %v101, %v516
  %v518 = vpop.f32.mrb[0].mxu0
  %v519 = vadd.f32 %v105, %v518
  %v520 = vpop.f32.mrb[0].mxu0
  %v521 = vadd.f32 %v101, %v520
  %v522 = vpop.f32.mrb[0].mxu0
  %v523 = vadd.f32 %v105, %v522
  %524 = vdwg.mxu0
  %525 = vmatprep.subr.bf16.mxu0 %v253
  %526 = vmatpush1.bf16.msra.mxu0 %v252
  %527 = vmatprep.subr.bf16.mxu0 %v269
  %528 = vmatpush1.bf16.msra.mxu0 %v268
  %529 = vmatprep.subr.bf16.mxu0 0
  %530 = vmatpush1.bf16.msra.mxu0 0
  %531 = vmatprep.subr.bf16.mxu0 0
  %532 = vmatpush1.bf16.msra.mxu0 0
  %533 = vmatprep.subr.bf16.mxu0 0
  %534 = vmatpush1.bf16.msra.mxu0 0
  %535 = vmatprep.subr.bf16.mxu0 0
  %536 = vmatpush1.bf16.msra.mxu0 0
  %537 = vmatprep.subr.bf16.mxu0 0
  %538 = vmatpush1.bf16.msra.mxu0 0
  %539 = vmatprep.subr.bf16.mxu0 0
  %540 = vmatpush1.bf16.msra.mxu0 0
  %541 = vmatprep.subr.bf16.mxu0 0
  %542 = vmatpush1.bf16.msra.mxu0 0
  %543 = vmatprep.subr.bf16.mxu0 0
  %544 = vmatpush1.bf16.msra.mxu0 0
  %545 = vmatprep.subr.bf16.mxu0 0
  %546 = vmatpush1.bf16.msra.mxu0 0
  %547 = vmatprep.subr.bf16.mxu0 0
  %548 = vmatpush1.bf16.msra.mxu0 0
  %549 = vmatprep.subr.bf16.mxu0 0
  %550 = vmatpush1.bf16.msra.mxu0 0
  %551 = vmatprep.subr.bf16.mxu0 0
  %552 = vmatpush1.bf16.msra.mxu0 0
  %553 = vmatprep.subr.bf16.mxu0 0
  %554 = vmatpush1.bf16.msra.mxu0 0
  %555 = vmatprep.subr.bf16.mxu0 0
  %556 = vmatpush1.bf16.msra.mxu0 0
  %557 = vmatprep.mubr.bf16.mxu0 0
  %558 = vmatmul.mubr.bf16.gmra.mrb[0].mxu0 %v308
  %v559 = vpop.f32.mrb[0].mxu0
  %v560 = vadd.f32 %v109, %v559
  %v561 = vpop.f32.mrb[0].mxu0
  %v562 = vadd.f32 %v113, %v561
  %v563 = vpop.f32.mrb[0].mxu0
  %v564 = vadd.f32 %v109, %v563
  %v565 = vpop.f32.mrb[0].mxu0
  %v566 = vadd.f32 %v113, %v565
  %567 = vdwg.mxu0
  %568 = vmatprep.subr.bf16.mxu0 %v255
  %569 = vmatpush1.bf16.msra.mxu0 %v254
  %570 = vmatprep.subr.bf16.mxu0 %v271
  %571 = vmatpush1.bf16.msra.mxu0 %v270
  %572 = vmatprep.subr.bf16.mxu0 0
  %573 = vmatpush1.bf16.msra.mxu0 0
  %574 = vmatprep.subr.bf16.mxu0 0
  %575 = vmatpush1.bf16.msra.mxu0 0
  %576 = vmatprep.subr.bf16.mxu0 0
  %577 = vmatpush1.bf16.msra.mxu0 0
  %578 = vmatprep.subr.bf16.mxu0 0
  %579 = vmatpush1.bf16.msra.mxu0 0
  %580 = vmatprep.subr.bf16.mxu0 0
  %581 = vmatpush1.bf16.msra.mxu0 0
  %582 = vmatprep.subr.bf16.mxu0 0
  %583 = vmatpush1.bf16.msra.mxu0 0
  %584 = vmatprep.subr.bf16.mxu0 0
  %585 = vmatpush1.bf16.msra.mxu0 0
  %586 = vmatprep.subr.bf16.mxu0 0
  %587 = vmatpush1.bf16.msra.mxu0 0
  %588 = vmatprep.subr.bf16.mxu0 0
  %589 = vmatpush1.bf16.msra.mxu0 0
  %590 = vmatprep.subr.bf16.mxu0 0
  %591 = vmatpush1.bf16.msra.mxu0 0
  %592 = vmatprep.subr.bf16.mxu0 0
  %593 = vmatpush1.bf16.msra.mxu0 0
  %594 = vmatprep.subr.bf16.mxu0 0
  %595 = vmatpush1.bf16.msra.mxu0 0
  %596 = vmatprep.subr.bf16.mxu0 0
  %597 = vmatpush1.bf16.msra.mxu0 0
  %598 = vmatprep.subr.bf16.mxu0 0
  %599 = vmatpush1.bf16.msra.mxu0 0
  %600 = vmatprep.mubr.bf16.mxu0 0
  %601 = vmatmul.mubr.bf16.gmra.mrb[0].mxu0 %v308
  %v602 = vpop.f32.mrb[0].mxu0
  %v603 = vadd.f32 %v117, %v602
  %v604 = vpop.f32.mrb[0].mxu0
  %v605 = vadd.f32 %v121, %v604
  %v606 = vpop.f32.mrb[0].mxu0
  %v607 = vadd.f32 %v117, %v606
  %v608 = vpop.f32.mrb[0].mxu0
  %v609 = vadd.f32 %v121, %v608
  %610 = vdwg.mxu0
  %611 = vmatprep.subr.bf16.mxu0 %v257
  %612 = vmatpush1.bf16.msra.mxu0 %v256
  %613 = vmatprep.subr.bf16.mxu0 %v273
  %614 = vmatpush1.bf16.msra.mxu0 %v272
  %615 = vmatprep.subr.bf16.mxu0 0
  %616 = vmatpush1.bf16.msra.mxu0 0
  %617 = vmatprep.subr.bf16.mxu0 0
  %618 = vmatpush1.bf16.msra.mxu0 0
  %619 = vmatprep.subr.bf16.mxu0 0
  %620 = vmatpush1.bf16.msra.mxu0 0
  %621 = vmatprep.subr.bf16.mxu0 0
  %622 = vmatpush1.bf16.msra.mxu0 0
  %623 = vmatprep.subr.bf16.mxu0 0
  %624 = vmatpush1.bf16.msra.mxu0 0
  %625 = vmatprep.subr.bf16.mxu0 0
  %626 = vmatpush1.bf16.msra.mxu0 0
  %627 = vmatprep.subr.bf16.mxu0 0
  %628 = vmatpush1.bf16.msra.mxu0 0
  %629 = vmatprep.subr.bf16.mxu0 0
  %630 = vmatpush1.bf16.msra.mxu0 0
  %631 = vmatprep.subr.bf16.mxu0 0
  %632 = vmatpush1.bf16.msra.mxu0 0
  %633 = vmatprep.subr.bf16.mxu0 0
  %634 = vmatpush1.bf16.msra.mxu0 0
  %635 = vmatprep.subr.bf16.mxu0 0
  %636 = vmatpush1.bf16.msra.mxu0 0
  %637 = vmatprep.subr.bf16.mxu0 0
  %638 = vmatpush1.bf16.msra.mxu0 0
  %639 = vmatprep.subr.bf16.mxu0 0
  %640 = vmatpush1.bf16.msra.mxu0 0
  %641 = vmatprep.subr.bf16.mxu0 0
  %642 = vmatpush1.bf16.msra.mxu0 0
  %643 = vmatprep.mubr.bf16.mxu0 0
  %644 = vmatmul.mubr.bf16.gmra.mrb[0].mxu0 %v308
  %v645 = vpop.f32.mrb[0].mxu0
  %v646 = vadd.f32 %v125, %v645
  %v647 = vpop.f32.mrb[0].mxu0
  %v648 = vadd.f32 %v129, %v647
  %v649 = vpop.f32.mrb[0].mxu0
  %v650 = vadd.f32 %v125, %v649
  %v651 = vpop.f32.mrb[0].mxu0
  %v652 = vadd.f32 %v129, %v651
  %653 = vdwg.mxu0
  %v654 = vmax.f32 %v345, 0.0
  %v655 = vmax.f32 %v347, 0.0
  %v656 = vmax.f32 %v388, 0.0
  %v657 = vmax.f32 %v390, 0.0
  %v658 = vmax.f32 %v431, 0.0
  %v659 = vmax.f32 %v433, 0.0
  %v660 = vmax.f32 %v474, 0.0
  %v661 = vmax.f32 %v476, 0.0
  %v662 = vmax.f32 %v517, 0.0
  %v663 = vmax.f32 %v519, 0.0
  %v664 = vmax.f32 %v560, 0.0
  %v665 = vmax.f32 %v562, 0.0
  %v666 = vmax.f32 %v603, 0.0
  %v667 = vmax.f32 %v605, 0.0
  %v668 = vmax.f32 %v646, 0.0
  %v669 = vmax.f32 %v648, 0.0
  %v670 = vmax.f32 %v349, 0.0
  %v671 = vmax.f32 %v351, 0.0
  %v672 = vmax.f32 %v392, 0.0
  %v673 = vmax.f32 %v394, 0.0
  %v674 = vmax.f32 %v435, 0.0
  %v675 = vmax.f32 %v437, 0.0
  %v676 = vmax.f32 %v478, 0.0
  %v677 = vmax.f32 %v480, 0.0
  %v678 = vmax.f32 %v521, 0.0
  %v679 = vmax.f32 %v523, 0.0
  %v680 = vmax.f32 %v564, 0.0
  %v681 = vmax.f32 %v566, 0.0
  %v682 = vmax.f32 %v607, 0.0
  %v683 = vmax.f32 %v609, 0.0
  %v684 = vmax.f32 %v650, 0.0
  %v685 = vmax.f32 %v652, 0.0
  %v686 = vpack.c.bf16 %v670, %v654
  %v687 = vpack.c.bf16 %v671, %v655
  %v688 = vpack.c.bf16 %v672, %v656
  %v689 = vpack.c.bf16 %v673, %v657
  %v690 = vpack.c.bf16 %v674, %v658
  %v691 = vpack.c.bf16 %v675, %v659
  %v692 = vpack.c.bf16 %v676, %v660
  %v693 = vpack.c.bf16 %v677, %v661
  %v694 = vpack.c.bf16 %v678, %v662
  %v695 = vpack.c.bf16 %v679, %v663
  %v696 = vpack.c.bf16 %v680, %v664
  %v697 = vpack.c.bf16 %v681, %v665
  %v698 = vpack.c.bf16 %v682, %v666
  %v699 = vpack.c.bf16 %v683, %v667
  %v700 = vpack.c.bf16 %v684, %v668
  %v701 = vpack.c.bf16 %v685, %v669
  %v702 = vld [vmem:[%s3] sm:$0xf]
  %v703 = vld [vmem:[%s3 + $0x4] sm:$0xf]
  %v704 = vld [vmem:[%s3 + $0x8] sm:$0xf]
  %v705 = vld [vmem:[%s3 + $0xc] sm:$0xf]
  %v706 = vld [vmem:[%s3 + $0x10] sm:$0xf]
  %v707 = vld [vmem:[%s3 + $0x14] sm:$0xf]
  %v708 = vld [vmem:[%s3 + $0x18] sm:$0xf]
  %v709 = vld [vmem:[%s3 + $0x1c] sm:$0xf]
  %v710 = vld [vmem:[%s3 + $0x20] sm:$0xf]
  %v711 = vld [vmem:[%s3 + $0x24] sm:$0xf]
  %v712 = vld [vmem:[%s3 + $0x28] sm:$0xf]
  %v713 = vld [vmem:[%s3 + $0x2c] sm:$0xf]
  %v714 = vld [vmem:[%s3 + $0x30] sm:$0xf]
  %v715 = vld [vmem:[%s3 + $0x34] sm:$0xf]
  %v716 = vld [vmem:[%s3 + $0x38] sm:$0xf]
  %v717 = vld [vmem:[%s3 + $0x3c] sm:$0xf]
  %v718 = vld [vmem:[%s3 + $0x40] sm:$0xf]
  %v719 = vld [vmem:[%s3 + $0x44] sm:$0xf]
  %v720 = vld [vmem:[%s3 + $0x48] sm:$0xf]
  %v721 = vld [vmem:[%s3 + $0x4c] sm:$0xf]
  %v722 = vld [vmem:[%s3 + $0x50] sm:$0xf]
  %v723 = vld [vmem:[%s3 + $0x54] sm:$0xf]
  %v724 = vld [vmem:[%s3 + $0x58] sm:$0xf]
  %v725 = vld [vmem:[%s3 + $0x5c] sm:$0xf]
  %v726 = vld [vmem:[%s3 + $0x60] sm:$0xf]
  %v727 = vld [vmem:[%s3 + $0x64] sm:$0xf]
  %v728 = vld [vmem:[%s3 + $0x68] sm:$0xf]
  %v729 = vld [vmem:[%s3 + $0x6c] sm:$0xf]
  %v730 = vld [vmem:[%s3 + $0x70] sm:$0xf]
  %v731 = vld [vmem:[%s3 + $0x74] sm:$0xf]
  %v732 = vld [vmem:[%s3 + $0x78] sm:$0xf]
  %v733 = vld [vmem:[%s3 + $0x7c] sm:$0xf]
  %v734 = vld [vmem:[%s3 + $0x80] sm:$0xf]
  %v735 = vld [vmem:[%s3 + $0x84] sm:$0xf]
  %v736 = vld [vmem:[%s3 + $0x88] sm:$0xf]
  %v737 = vld [vmem:[%s3 + $0x8c] sm:$0xf]
  %v738 = vld [vmem:[%s3 + $0x90] sm:$0xf]
  %v739 = vld [vmem:[%s3 + $0x94] sm:$0xf]
  %v740 = vld [vmem:[%s3 + $0x98] sm:$0xf]
  %v741 = vld [vmem:[%s3 + $0x9c] sm:$0xf]
  %v742 = vld [vmem:[%s3 + $0xa0] sm:$0xf]
  %v743 = vld [vmem:[%s3 + $0xa4] sm:$0xf]
  %v744 = vld [vmem:[%s3 + $0xa8] sm:$0xf]
  %v745 = vld [vmem:[%s3 + $0xac] sm:$0xf]
  %v746 = vld [vmem:[%s3 + $0xb0] sm:$0xf]
  %v747 = vld [vmem:[%s3 + $0xb4] sm:$0xf]
  %v748 = vld [vmem:[%s3 + $0xb8] sm:$0xf]
  %v749 = vld [vmem:[%s3 + $0xbc] sm:$0xf]
  %v750 = vld [vmem:[%s3 + $0xc0] sm:$0xf]
  %v751 = vld [vmem:[%s3 + $0xc4] sm:$0xf]
  %v752 = vld [vmem:[%s3 + $0xc8] sm:$0xf]
  %v753 = vld [vmem:[%s3 + $0xcc] sm:$0xf]
  %v754 = vld [vmem:[%s3 + $0xd0] sm:$0xf]
  %v755 = vld [vmem:[%s3 + $0xd4] sm:$0xf]
  %v756 = vld [vmem:[%s3 + $0xd8] sm:$0xf]
  %v757 = vld [vmem:[%s3 + $0xdc] sm:$0xf]
  %v758 = vld [vmem:[%s3 + $0xe0] sm:$0xf]
  %v759 = vld [vmem:[%s3 + $0xe4] sm:$0xf]
  %v760 = vld [vmem:[%s3 + $0xe8] sm:$0xf]
  %v761 = vld [vmem:[%s3 + $0xec] sm:$0xf]
  %v762 = vld [vmem:[%s3 + $0xf0] sm:$0xf]
  %v763 = vld [vmem:[%s3 + $0xf4] sm:$0xf]
  %v764 = vld [vmem:[%s3 + $0xf8] sm:$0xf]
  %v765 = vld [vmem:[%s3 + $0xfc] sm:$0xf]
  %v766 = vld [vmem:[%s3 + $0x100] sm:$0xf]
  %v767 = vld [vmem:[%s3 + $0x104] sm:$0xf]
  %v768 = vld [vmem:[%s3 + $0x108] sm:$0xf]
  %v769 = vld [vmem:[%s3 + $0x10c] sm:$0xf]
  %v770 = vld [vmem:[%s3 + $0x110] sm:$0xf]
  %v771 = vld [vmem:[%s3 + $0x114] sm:$0xf]
  %v772 = vld [vmem:[%s3 + $0x118] sm:$0xf]
  %v773 = vld [vmem:[%s3 + $0x11c] sm:$0xf]
  %v774 = vld [vmem:[%s3 + $0x120] sm:$0xf]
  %v775 = vld [vmem:[%s3 + $0x124] sm:$0xf]
  %v776 = vld [vmem:[%s3 + $0x128] sm:$0xf]
  %v777 = vld [vmem:[%s3 + $0x12c] sm:$0xf]
  %v778 = vld [vmem:[%s3 + $0x130] sm:$0xf]
  %v779 = vld [vmem:[%s3 + $0x134] sm:$0xf]
  %v780 = vld [vmem:[%s3 + $0x138] sm:$0xf]
  %v781 = vld [vmem:[%s3 + $0x13c] sm:$0xf]
  %v782 = vld [vmem:[%s3 + $0x140] sm:$0xf]
  %v783 = vld [vmem:[%s3 + $0x144] sm:$0xf]
  %v784 = vld [vmem:[%s3 + $0x148] sm:$0xf]
  %v785 = vld [vmem:[%s3 + $0x14c] sm:$0xf]
  %v786 = vld [vmem:[%s3 + $0x150] sm:$0xf]
  %v787 = vld [vmem:[%s3 + $0x154] sm:$0xf]
  %v788 = vld [vmem:[%s3 + $0x158] sm:$0xf]
  %v789 = vld [vmem:[%s3 + $0x15c] sm:$0xf]
  %v790 = vld [vmem:[%s3 + $0x160] sm:$0xf]
  %v791 = vld [vmem:[%s3 + $0x164] sm:$0xf]
  %v792 = vld [vmem:[%s3 + $0x168] sm:$0xf]
  %v793 = vld [vmem:[%s3 + $0x16c] sm:$0xf]
  %v794 = vld [vmem:[%s3 + $0x170] sm:$0xf]
  %v795 = vld [vmem:[%s3 + $0x174] sm:$0xf]
  %v796 = vld [vmem:[%s3 + $0x178] sm:$0xf]
  %v797 = vld [vmem:[%s3 + $0x17c] sm:$0xf]
  %v798 = vld [vmem:[%s3 + $0x180] sm:$0xf]
  %v799 = vld [vmem:[%s3 + $0x184] sm:$0xf]
  %v800 = vld [vmem:[%s3 + $0x188] sm:$0xf]
  %v801 = vld [vmem:[%s3 + $0x18c] sm:$0xf]
  %v802 = vld [vmem:[%s3 + $0x190] sm:$0xf]
  %v803 = vld [vmem:[%s3 + $0x194] sm:$0xf]
  %v804 = vld [vmem:[%s3 + $0x198] sm:$0xf]
  %v805 = vld [vmem:[%s3 + $0x19c] sm:$0xf]
  %v806 = vld [vmem:[%s3 + $0x1a0] sm:$0xf]
  %v807 = vld [vmem:[%s3 + $0x1a4] sm:$0xf]
  %v808 = vld [vmem:[%s3 + $0x1a8] sm:$0xf]
  %v809 = vld [vmem:[%s3 + $0x1ac] sm:$0xf]
  %v810 = vld [vmem:[%s3 + $0x1b0] sm:$0xf]
  %v811 = vld [vmem:[%s3 + $0x1b4] sm:$0xf]
  %v812 = vld [vmem:[%s3 + $0x1b8] sm:$0xf]
  %v813 = vld [vmem:[%s3 + $0x1bc] sm:$0xf]
  %v814 = vld [vmem:[%s3 + $0x1c0] sm:$0xf]
  %v815 = vld [vmem:[%s3 + $0x1c4] sm:$0xf]
  %v816 = vld [vmem:[%s3 + $0x1c8] sm:$0xf]
  %v817 = vld [vmem:[%s3 + $0x1cc] sm:$0xf]
  %v818 = vld [vmem:[%s3 + $0x1d0] sm:$0xf]
  %v819 = vld [vmem:[%s3 + $0x1d4] sm:$0xf]
  %v820 = vld [vmem:[%s3 + $0x1d8] sm:$0xf]
  %v821 = vld [vmem:[%s3 + $0x1dc] sm:$0xf]
  %v822 = vld [vmem:[%s3 + $0x1e0] sm:$0xf]
  %v823 = vld [vmem:[%s3 + $0x1e4] sm:$0xf]
  %v824 = vld [vmem:[%s3 + $0x1e8] sm:$0xf]
  %v825 = vld [vmem:[%s3 + $0x1ec] sm:$0xf]
  %v826 = vld [vmem:[%s3 + $0x1f0] sm:$0xf]
  %v827 = vld [vmem:[%s3 + $0x1f4] sm:$0xf]
  %v828 = vld [vmem:[%s3 + $0x1f8] sm:$0xf]
  %v829 = vld [vmem:[%s3 + $0x1fc] sm:$0xf]
  %v830 = vld [vmem:[%s3 + $0x200] sm:$0xf]
  %v831 = vld [vmem:[%s3 + $0x204] sm:$0xf]
  %v832 = vld [vmem:[%s3 + $0x208] sm:$0xf]
  %v833 = vld [vmem:[%s3 + $0x20c] sm:$0xf]
  %v834 = vld [vmem:[%s3 + $0x210] sm:$0xf]
  %v835 = vld [vmem:[%s3 + $0x214] sm:$0xf]
  %v836 = vld [vmem:[%s3 + $0x218] sm:$0xf]
  %v837 = vld [vmem:[%s3 + $0x21c] sm:$0xf]
  %v838 = vld [vmem:[%s3 + $0x220] sm:$0xf]
  %v839 = vld [vmem:[%s3 + $0x224] sm:$0xf]
  %v840 = vld [vmem:[%s3 + $0x228] sm:$0xf]
  %v841 = vld [vmem:[%s3 + $0x22c] sm:$0xf]
  %v842 = vld [vmem:[%s3 + $0x230] sm:$0xf]
  %v843 = vld [vmem:[%s3 + $0x234] sm:$0xf]
  %v844 = vld [vmem:[%s3 + $0x238] sm:$0xf]
  %v845 = vld [vmem:[%s3 + $0x23c] sm:$0xf]
  %v846 = vld [vmem:[%s3 + $0x240] sm:$0xf]
  %v847 = vld [vmem:[%s3 + $0x244] sm:$0xf]
  %v848 = vld [vmem:[%s3 + $0x248] sm:$0xf]
  %v849 = vld [vmem:[%s3 + $0x24c] sm:$0xf]
  %v850 = vld [vmem:[%s3 + $0x250] sm:$0xf]
  %v851 = vld [vmem:[%s3 + $0x254] sm:$0xf]
  %v852 = vld [vmem:[%s3 + $0x258] sm:$0xf]
  %v853 = vld [vmem:[%s3 + $0x25c] sm:$0xf]
  %v854 = vld [vmem:[%s3 + $0x260] sm:$0xf]
  %v855 = vld [vmem:[%s3 + $0x264] sm:$0xf]
  %v856 = vld [vmem:[%s3 + $0x268] sm:$0xf]
  %v857 = vld [vmem:[%s3 + $0x26c] sm:$0xf]
  %v858 = vld [vmem:[%s3 + $0x270] sm:$0xf]
  %v859 = vld [vmem:[%s3 + $0x274] sm:$0xf]
  %v860 = vld [vmem:[%s3 + $0x278] sm:$0xf]
  %v861 = vld [vmem:[%s3 + $0x27c] sm:$0xf]
  %v862 = vld [vmem:[%s3 + $0x280] sm:$0xf]
  %v863 = vld [vmem:[%s3 + $0x284] sm:$0xf]
  %v864 = vld [vmem:[%s3 + $0x288] sm:$0xf]
  %v865 = vld [vmem:[%s3 + $0x28c] sm:$0xf]
  %v866 = vld [vmem:[%s3 + $0x290] sm:$0xf]
  %v867 = vld [vmem:[%s3 + $0x294] sm:$0xf]
  %v868 = vld [vmem:[%s3 + $0x298] sm:$0xf]
  %v869 = vld [vmem:[%s3 + $0x29c] sm:$0xf]
  %v870 = vld [vmem:[%s3 + $0x2a0] sm:$0xf]
  %v871 = vld [vmem:[%s3 + $0x2a4] sm:$0xf]
  %v872 = vld [vmem:[%s3 + $0x2a8] sm:$0xf]
  %v873 = vld [vmem:[%s3 + $0x2ac] sm:$0xf]
  %v874 = vld [vmem:[%s3 + $0x2b0] sm:$0xf]
  %v875 = vld [vmem:[%s3 + $0x2b4] sm:$0xf]
  %v876 = vld [vmem:[%s3 + $0x2b8] sm:$0xf]
  %v877 = vld [vmem:[%s3 + $0x2bc] sm:$0xf]
  %v878 = vld [vmem:[%s3 + $0x2c0] sm:$0xf]
  %v879 = vld [vmem:[%s3 + $0x2c4] sm:$0xf]
  %v880 = vld [vmem:[%s3 + $0x2c8] sm:$0xf]
  %v881 = vld [vmem:[%s3 + $0x2cc] sm:$0xf]
  %v882 = vld [vmem:[%s3 + $0x2d0] sm:$0xf]
  %v883 = vld [vmem:[%s3 + $0x2d4] sm:$0xf]
  %v884 = vld [vmem:[%s3 + $0x2d8] sm:$0xf]
  %v885 = vld [vmem:[%s3 + $0x2dc] sm:$0xf]
  %v886 = vld [vmem:[%s3 + $0x2e0] sm:$0xf]
  %v887 = vld [vmem:[%s3 + $0x2e4] sm:$0xf]
  %v888 = vld [vmem:[%s3 + $0x2e8] sm:$0xf]
  %v889 = vld [vmem:[%s3 + $0x2ec] sm:$0xf]
  %v890 = vld [vmem:[%s3 + $0x2f0] sm:$0xf]
  %v891 = vld [vmem:[%s3 + $0x2f4] sm:$0xf]
  %v892 = vld [vmem:[%s3 + $0x2f8] sm:$0xf]
  %v893 = vld [vmem:[%s3 + $0x2fc] sm:$0xf]
  %v894 = vld [vmem:[%s3 + $0x300] sm:$0xf]
  %v895 = vld [vmem:[%s3 + $0x304] sm:$0xf]
  %v896 = vld [vmem:[%s3 + $0x308] sm:$0xf]
  %v897 = vld [vmem:[%s3 + $0x30c] sm:$0xf]
  %v898 = vld [vmem:[%s3 + $0x310] sm:$0xf]
  %v899 = vld [vmem:[%s3 + $0x314] sm:$0xf]
  %v900 = vld [vmem:[%s3 + $0x318] sm:$0xf]
  %v901 = vld [vmem:[%s3 + $0x31c] sm:$0xf]
  %v902 = vld [vmem:[%s3 + $0x320] sm:$0xf]
  %v903 = vld [vmem:[%s3 + $0x324] sm:$0xf]
  %v904 = vld [vmem:[%s3 + $0x328] sm:$0xf]
  %v905 = vld [vmem:[%s3 + $0x32c] sm:$0xf]
  %v906 = vld [vmem:[%s3 + $0x330] sm:$0xf]
  %v907 = vld [vmem:[%s3 + $0x334] sm:$0xf]
  %v908 = vld [vmem:[%s3 + $0x338] sm:$0xf]
  %v909 = vld [vmem:[%s3 + $0x33c] sm:$0xf]
  %v910 = vld [vmem:[%s3 + $0x340] sm:$0xf]
  %v911 = vld [vmem:[%s3 + $0x344] sm:$0xf]
  %v912 = vld [vmem:[%s3 + $0x348] sm:$0xf]
  %v913 = vld [vmem:[%s3 + $0x34c] sm:$0xf]
  %v914 = vld [vmem:[%s3 + $0x350] sm:$0xf]
  %v915 = vld [vmem:[%s3 + $0x354] sm:$0xf]
  %v916 = vld [vmem:[%s3 + $0x358] sm:$0xf]
  %v917 = vld [vmem:[%s3 + $0x35c] sm:$0xf]
  %v918 = vld [vmem:[%s3 + $0x360] sm:$0xf]
  %v919 = vld [vmem:[%s3 + $0x364] sm:$0xf]
  %v920 = vld [vmem:[%s3 + $0x368] sm:$0xf]
  %v921 = vld [vmem:[%s3 + $0x36c] sm:$0xf]
  %v922 = vld [vmem:[%s3 + $0x370] sm:$0xf]
  %v923 = vld [vmem:[%s3 + $0x374] sm:$0xf]
  %v924 = vld [vmem:[%s3 + $0x378] sm:$0xf]
  %v925 = vld [vmem:[%s3 + $0x37c] sm:$0xf]
  %v926 = vld [vmem:[%s3 + $0x380] sm:$0xf]
  %v927 = vld [vmem:[%s3 + $0x384] sm:$0xf]
  %v928 = vld [vmem:[%s3 + $0x388] sm:$0xf]
  %v929 = vld [vmem:[%s3 + $0x38c] sm:$0xf]
  %v930 = vld [vmem:[%s3 + $0x390] sm:$0xf]
  %v931 = vld [vmem:[%s3 + $0x394] sm:$0xf]
  %v932 = vld [vmem:[%s3 + $0x398] sm:$0xf]
  %v933 = vld [vmem:[%s3 + $0x39c] sm:$0xf]
  %v934 = vld [vmem:[%s3 + $0x3a0] sm:$0xf]
  %v935 = vld [vmem:[%s3 + $0x3a4] sm:$0xf]
  %v936 = vld [vmem:[%s3 + $0x3a8] sm:$0xf]
  %v937 = vld [vmem:[%s3 + $0x3ac] sm:$0xf]
  %v938 = vld [vmem:[%s3 + $0x3b0] sm:$0xf]
  %v939 = vld [vmem:[%s3 + $0x3b4] sm:$0xf]
  %v940 = vld [vmem:[%s3 + $0x3b8] sm:$0xf]
  %v941 = vld [vmem:[%s3 + $0x3bc] sm:$0xf]
  %v942 = vld [vmem:[%s3 + $0x3c0] sm:$0xf]
  %v943 = vld [vmem:[%s3 + $0x3c4] sm:$0xf]
  %v944 = vld [vmem:[%s3 + $0x3c8] sm:$0xf]
  %v945 = vld [vmem:[%s3 + $0x3cc] sm:$0xf]
  %v946 = vld [vmem:[%s3 + $0x3d0] sm:$0xf]
  %v947 = vld [vmem:[%s3 + $0x3d4] sm:$0xf]
  %v948 = vld [vmem:[%s3 + $0x3d8] sm:$0xf]
  %v949 = vld [vmem:[%s3 + $0x3dc] sm:$0xf]
  %v950 = vld [vmem:[%s3 + $0x3e0] sm:$0xf]
  %v951 = vld [vmem:[%s3 + $0x3e4] sm:$0xf]
  %v952 = vld [vmem:[%s3 + $0x3e8] sm:$0xf]
  %v953 = vld [vmem:[%s3 + $0x3ec] sm:$0xf]
  %v954 = vld [vmem:[%s3 + $0x3f0] sm:$0xf]
  %v955 = vld [vmem:[%s3 + $0x3f4] sm:$0xf]
  %v956 = vld [vmem:[%s3 + $0x3f8] sm:$0xf]
  %v957 = vld [vmem:[%s3 + $0x3fc] sm:$0xf]
  %v958 = vld [vmem:[%s4] sm:$0x1]
  %v960 = vlaneseq
  %v961 = vshrl.u32 %v960, 7
  %v962 = vsub.s32 0, %v961
  %v963 = vrot.slane %v958, %v962
  %v1221 = vunpack.c.l.b16 %v702
  %v1222 = vunpack.c.l.b16 %v703
  %v1223 = vunpack.c.l.b16 %v704
  %v1224 = vunpack.c.l.b16 %v705
  %v1225 = vunpack.c.l.b16 %v706
  %v1226 = vunpack.c.l.b16 %v707
  %v1227 = vunpack.c.l.b16 %v708
  %v1228 = vunpack.c.l.b16 %v709
  %v1229 = vunpack.c.l.b16 %v710
  %v1230 = vunpack.c.l.b16 %v711
  %v1231 = vunpack.c.l.b16 %v712
  %v1232 = vunpack.c.l.b16 %v713
  %v1233 = vunpack.c.l.b16 %v714
  %v1234 = vunpack.c.l.b16 %v715
  %v1235 = vunpack.c.l.b16 %v716
  %v1236 = vunpack.c.l.b16 %v717
  %v1237 = vunpack.c.l.b16 %v718
  %v1238 = vunpack.c.l.b16 %v719
  %v1239 = vunpack.c.l.b16 %v720
  %v1240 = vunpack.c.l.b16 %v721
  %v1241 = vunpack.c.l.b16 %v722
  %v1242 = vunpack.c.l.b16 %v723
  %v1243 = vunpack.c.l.b16 %v724
  %v1244 = vunpack.c.l.b16 %v725
  %v1245 = vunpack.c.l.b16 %v726
  %v1246 = vunpack.c.l.b16 %v727
  %v1247 = vunpack.c.l.b16 %v728
  %v1248 = vunpack.c.l.b16 %v729
  %v1249 = vunpack.c.l.b16 %v730
  %v1250 = vunpack.c.l.b16 %v731
  %v1251 = vunpack.c.l.b16 %v732
  %v1252 = vunpack.c.l.b16 %v733
  %v1253 = vunpack.c.l.b16 %v734
  %v1254 = vunpack.c.l.b16 %v735
  %v1255 = vunpack.c.l.b16 %v736
  %v1256 = vunpack.c.l.b16 %v737
  %v1257 = vunpack.c.l.b16 %v738
  %v1258 = vunpack.c.l.b16 %v739
  %v1259 = vunpack.c.l.b16 %v740
  %v1260 = vunpack.c.l.b16 %v741
  %v1261 = vunpack.c.l.b16 %v742
  %v1262 = vunpack.c.l.b16 %v743
  %v1263 = vunpack.c.l.b16 %v744
  %v1264 = vunpack.c.l.b16 %v745
  %v1265 = vunpack.c.l.b16 %v746
  %v1266 = vunpack.c.l.b16 %v747
  %v1267 = vunpack.c.l.b16 %v748
  %v1268 = vunpack.c.l.b16 %v749
  %v1269 = vunpack.c.l.b16 %v750
  %v1270 = vunpack.c.l.b16 %v751
  %v1271 = vunpack.c.l.b16 %v752
  %v1272 = vunpack.c.l.b16 %v753
  %v1273 = vunpack.c.l.b16 %v754
  %v1274 = vunpack.c.l.b16 %v755
  %v1275 = vunpack.c.l.b16 %v756
  %v1276 = vunpack.c.l.b16 %v757
  %v1277 = vunpack.c.l.b16 %v758
  %v1278 = vunpack.c.l.b16 %v759
  %v1279 = vunpack.c.l.b16 %v760
  %v1280 = vunpack.c.l.b16 %v761
  %v1281 = vunpack.c.l.b16 %v762
  %v1282 = vunpack.c.l.b16 %v763
  %v1283 = vunpack.c.l.b16 %v764
  %v1284 = vunpack.c.l.b16 %v765
  %v1285 = vunpack.c.l.b16 %v766
  %v1286 = vunpack.c.l.b16 %v767
  %v1287 = vunpack.c.l.b16 %v768
  %v1288 = vunpack.c.l.b16 %v769
  %v1289 = vunpack.c.l.b16 %v770
  %v1290 = vunpack.c.l.b16 %v771
  %v1291 = vunpack.c.l.b16 %v772
  %v1292 = vunpack.c.l.b16 %v773
  %v1293 = vunpack.c.l.b16 %v774
  %v1294 = vunpack.c.l.b16 %v775
  %v1295 = vunpack.c.l.b16 %v776
  %v1296 = vunpack.c.l.b16 %v777
  %v1297 = vunpack.c.l.b16 %v778
  %v1298 = vunpack.c.l.b16 %v779
  %v1299 = vunpack.c.l.b16 %v780
  %v1300 = vunpack.c.l.b16 %v781
  %v1301 = vunpack.c.l.b16 %v782
  %v1302 = vunpack.c.l.b16 %v783
  %v1303 = vunpack.c.l.b16 %v784
  %v1304 = vunpack.c.l.b16 %v785
  %v1305 = vunpack.c.l.b16 %v786
  %v1306 = vunpack.c.l.b16 %v787
  %v1307 = vunpack.c.l.b16 %v788
  %v1308 = vunpack.c.l.b16 %v789
  %v1309 = vunpack.c.l.b16 %v790
  %v1310 = vunpack.c.l.b16 %v791
  %v1311 = vunpack.c.l.b16 %v792
  %v1312 = vunpack.c.l.b16 %v793
  %v1313 = vunpack.c.l.b16 %v794
  %v1314 = vunpack.c.l.b16 %v795
  %v1315 = vunpack.c.l.b16 %v796
  %v1316 = vunpack.c.l.b16 %v797
  %v1317 = vunpack.c.l.b16 %v798
  %v1318 = vunpack.c.l.b16 %v799
  %v1319 = vunpack.c.l.b16 %v800
  %v1320 = vunpack.c.l.b16 %v801
  %v1321 = vunpack.c.l.b16 %v802
  %v1322 = vunpack.c.l.b16 %v803
  %v1323 = vunpack.c.l.b16 %v804
  %v1324 = vunpack.c.l.b16 %v805
  %v1325 = vunpack.c.l.b16 %v806
  %v1326 = vunpack.c.l.b16 %v807
  %v1327 = vunpack.c.l.b16 %v808
  %v1328 = vunpack.c.l.b16 %v809
  %v1329 = vunpack.c.l.b16 %v810
  %v1330 = vunpack.c.l.b16 %v811
  %v1331 = vunpack.c.l.b16 %v812
  %v1332 = vunpack.c.l.b16 %v813
  %v1333 = vunpack.c.l.b16 %v814
  %v1334 = vunpack.c.l.b16 %v815
  %v1335 = vunpack.c.l.b16 %v816
  %v1336 = vunpack.c.l.b16 %v817
  %v1337 = vunpack.c.l.b16 %v818
  %v1338 = vunpack.c.l.b16 %v819
  %v1339 = vunpack.c.l.b16 %v820
  %v1340 = vunpack.c.l.b16 %v821
  %v1341 = vunpack.c.l.b16 %v822
  %v1342 = vunpack.c.l.b16 %v823
  %v1343 = vunpack.c.l.b16 %v824
  %v1344 = vunpack.c.l.b16 %v825
  %v1345 = vunpack.c.l.b16 %v826
  %v1346 = vunpack.c.l.b16 %v827
  %v1347 = vunpack.c.l.b16 %v828
  %v1348 = vunpack.c.l.b16 %v829
  %v1349 = vunpack.c.l.b16 %v830
  %v1350 = vunpack.c.l.b16 %v831
  %v1351 = vunpack.c.l.b16 %v832
  %v1352 = vunpack.c.l.b16 %v833
  %v1353 = vunpack.c.l.b16 %v834
  %v1354 = vunpack.c.l.b16 %v835
  %v1355 = vunpack.c.l.b16 %v836
  %v1356 = vunpack.c.l.b16 %v837
  %v1357 = vunpack.c.l.b16 %v838
  %v1358 = vunpack.c.l.b16 %v839
  %v1359 = vunpack.c.l.b16 %v840
  %v1360 = vunpack.c.l.b16 %v841
  %v1361 = vunpack.c.l.b16 %v842
  %v1362 = vunpack.c.l.b16 %v843
  %v1363 = vunpack.c.l.b16 %v844
  %v1364 = vunpack.c.l.b16 %v845
  %v1365 = vunpack.c.l.b16 %v846
  %v1366 = vunpack.c.l.b16 %v847
  %v1367 = vunpack.c.l.b16 %v848
  %v1368 = vunpack.c.l.b16 %v849
  %v1369 = vunpack.c.l.b16 %v850
  %v1370 = vunpack.c.l.b16 %v851
  %v1371 = vunpack.c.l.b16 %v852
  %v1372 = vunpack.c.l.b16 %v853
  %v1373 = vunpack.c.l.b16 %v854
  %v1374 = vunpack.c.l.b16 %v855
  %v1375 = vunpack.c.l.b16 %v856
  %v1376 = vunpack.c.l.b16 %v857
  %v1377 = vunpack.c.l.b16 %v858
  %v1378 = vunpack.c.l.b16 %v859
  %v1379 = vunpack.c.l.b16 %v860
  %v1380 = vunpack.c.l.b16 %v861
  %v1381 = vunpack.c.l.b16 %v862
  %v1382 = vunpack.c.l.b16 %v863
  %v1383 = vunpack.c.l.b16 %v864
  %v1384 = vunpack.c.l.b16 %v865
  %v1385 = vunpack.c.l.b16 %v866
  %v1386 = vunpack.c.l.b16 %v867
  %v1387 = vunpack.c.l.b16 %v868
  %v1388 = vunpack.c.l.b16 %v869
  %v1389 = vunpack.c.l.b16 %v870
  %v1390 = vunpack.c.l.b16 %v871
  %v1391 = vunpack.c.l.b16 %v872
  %v1392 = vunpack.c.l.b16 %v873
  %v1393 = vunpack.c.l.b16 %v874
  %v1394 = vunpack.c.l.b16 %v875
  %v1395 = vunpack.c.l.b16 %v876
  %v1396 = vunpack.c.l.b16 %v877
  %v1397 = vunpack.c.l.b16 %v878
  %v1398 = vunpack.c.l.b16 %v879
  %v1399 = vunpack.c.l.b16 %v880
  %v1400 = vunpack.c.l.b16 %v881
  %v1401 = vunpack.c.l.b16 %v882
  %v1402 = vunpack.c.l.b16 %v883
  %v1403 = vunpack.c.l.b16 %v884
  %v1404 = vunpack.c.l.b16 %v885
  %v1405 = vunpack.c.l.b16 %v886
  %v1406 = vunpack.c.l.b16 %v887
  %v1407 = vunpack.c.l.b16 %v888
  %v1408 = vunpack.c.l.b16 %v889
  %v1409 = vunpack.c.l.b16 %v890
  %v1410 = vunpack.c.l.b16 %v891
  %v1411 = vunpack.c.l.b16 %v892
  %v1412 = vunpack.c.l.b16 %v893
  %v1413 = vunpack.c.l.b16 %v894
  %v1414 = vunpack.c.l.b16 %v895
  %v1415 = vunpack.c.l.b16 %v896
  %v1416 = vunpack.c.l.b16 %v897
  %v1417 = vunpack.c.l.b16 %v898
  %v1418 = vunpack.c.l.b16 %v899
  %v1419 = vunpack.c.l.b16 %v900
  %v1420 = vunpack.c.l.b16 %v901
  %v1421 = vunpack.c.l.b16 %v902
  %v1422 = vunpack.c.l.b16 %v903
  %v1423 = vunpack.c.l.b16 %v904
  %v1424 = vunpack.c.l.b16 %v905
  %v1425 = vunpack.c.l.b16 %v906
  %v1426 = vunpack.c.l.b16 %v907
  %v1427 = vunpack.c.l.b16 %v908
  %v1428 = vunpack.c.l.b16 %v909
  %v1429 = vunpack.c.l.b16 %v910
  %v1430 = vunpack.c.l.b16 %v911
  %v1431 = vunpack.c.l.b16 %v912
  %v1432 = vunpack.c.l.b16 %v913
  %v1433 = vunpack.c.l.b16 %v914
  %v1434 = vunpack.c.l.b16 %v915
  %v1435 = vunpack.c.l.b16 %v916
  %v1436 = vunpack.c.l.b16 %v917
  %v1437 = vunpack.c.l.b16 %v918
  %v1438 = vunpack.c.l.b16 %v919
  %v1439 = vunpack.c.l.b16 %v920
  %v1440 = vunpack.c.l.b16 %v921
  %v1441 = vunpack.c.l.b16 %v922
  %v1442 = vunpack.c.l.b16 %v923
  %v1443 = vunpack.c.l.b16 %v924
  %v1444 = vunpack.c.l.b16 %v925
  %v1445 = vunpack.c.l.b16 %v926
  %v1446 = vunpack.c.l.b16 %v927
  %v1447 = vunpack.c.l.b16 %v928
  %v1448 = vunpack.c.l.b16 %v929
  %v1449 = vunpack.c.l.b16 %v930
  %v1450 = vunpack.c.l.b16 %v931
  %v1451 = vunpack.c.l.b16 %v932
  %v1452 = vunpack.c.l.b16 %v933
  %v1453 = vunpack.c.l.b16 %v934
  %v1454 = vunpack.c.l.b16 %v935
  %v1455 = vunpack.c.l.b16 %v936
  %v1456 = vunpack.c.l.b16 %v937
  %v1457 = vunpack.c.l.b16 %v938
  %v1458 = vunpack.c.l.b16 %v939
  %v1459 = vunpack.c.l.b16 %v940
  %v1460 = vunpack.c.l.b16 %v941
  %v1461 = vunpack.c.l.b16 %v942
  %v1462 = vunpack.c.l.b16 %v943
  %v1463 = vunpack.c.l.b16 %v944
  %v1464 = vunpack.c.l.b16 %v945
  %v1465 = vunpack.c.l.b16 %v946
  %v1466 = vunpack.c.l.b16 %v947
  %v1467 = vunpack.c.l.b16 %v948
  %v1468 = vunpack.c.l.b16 %v949
  %v1469 = vunpack.c.l.b16 %v950
  %v1470 = vunpack.c.l.b16 %v951
  %v1471 = vunpack.c.l.b16 %v952
  %v1472 = vunpack.c.l.b16 %v953
  %v1473 = vunpack.c.l.b16 %v954
  %v1474 = vunpack.c.l.b16 %v955
  %v1475 = vunpack.c.l.b16 %v956
  %v1476 = vunpack.c.l.b16 %v957
  %v1477 = vpack.c.b16 %v1222, %v1221
  %v1478 = vpack.c.b16 %v1224, %v1223
  %v1479 = vpack.c.b16 %v1226, %v1225
  %v1480 = vpack.c.b16 %v1228, %v1227
  %v1481 = vpack.c.b16 %v1230, %v1229
  %v1482 = vpack.c.b16 %v1232, %v1231
  %v1483 = vpack.c.b16 %v1234, %v1233
  %v1484 = vpack.c.b16 %v1236, %v1235
  %v1485 = vpack.c.b16 %v1238, %v1237
  %v1486 = vpack.c.b16 %v1240, %v1239
  %v1487 = vpack.c.b16 %v1242, %v1241
  %v1488 = vpack.c.b16 %v1244, %v1243
  %v1489 = vpack.c.b16 %v1246, %v1245
  %v1490 = vpack.c.b16 %v1248, %v1247
  %v1491 = vpack.c.b16 %v1250, %v1249
  %v1492 = vpack.c.b16 %v1252, %v1251
  %v1493 = vpack.c.b16 %v1254, %v1253
  %v1494 = vpack.c.b16 %v1256, %v1255
  %v1495 = vpack.c.b16 %v1258, %v1257
  %v1496 = vpack.c.b16 %v1260, %v1259
  %v1497 = vpack.c.b16 %v1262, %v1261
  %v1498 = vpack.c.b16 %v1264, %v1263
  %v1499 = vpack.c.b16 %v1266, %v1265
  %v1500 = vpack.c.b16 %v1268, %v1267
  %v1501 = vpack.c.b16 %v1270, %v1269
  %v1502 = vpack.c.b16 %v1272, %v1271
  %v1503 = vpack.c.b16 %v1274, %v1273
  %v1504 = vpack.c.b16 %v1276, %v1275
  %v1505 = vpack.c.b16 %v1278, %v1277
  %v1506 = vpack.c.b16 %v1280, %v1279
  %v1507 = vpack.c.b16 %v1282, %v1281
  %v1508 = vpack.c.b16 %v1284, %v1283
  %v1509 = vpack.c.b16 %v1286, %v1285
  %v1510 = vpack.c.b16 %v1288, %v1287
  %v1511 = vpack.c.b16 %v1290, %v1289
  %v1512 = vpack.c.b16 %v1292, %v1291
  %v1513 = vpack.c.b16 %v1294, %v1293
  %v1514 = vpack.c.b16 %v1296, %v1295
  %v1515 = vpack.c.b16 %v1298, %v1297
  %v1516 = vpack.c.b16 %v1300, %v1299
  %v1517 = vpack.c.b16 %v1302, %v1301
  %v1518 = vpack.c.b16 %v1304, %v1303
  %v1519 = vpack.c.b16 %v1306, %v1305
  %v1520 = vpack.c.b16 %v1308, %v1307
  %v1521 = vpack.c.b16 %v1310, %v1309
  %v1522 = vpack.c.b16 %v1312, %v1311
  %v1523 = vpack.c.b16 %v1314, %v1313
  %v1524 = vpack.c.b16 %v1316, %v1315
  %v1525 = vpack.c.b16 %v1318, %v1317
  %v1526 = vpack.c.b16 %v1320, %v1319
  %v1527 = vpack.c.b16 %v1322, %v1321
  %v1528 = vpack.c.b16 %v1324, %v1323
  %v1529 = vpack.c.b16 %v1326, %v1325
  %v1530 = vpack.c.b16 %v1328, %v1327
  %v1531 = vpack.c.b16 %v1330, %v1329
  %v1532 = vpack.c.b16 %v1332, %v1331
  %v1533 = vpack.c.b16 %v1334, %v1333
  %v1534 = vpack.c.b16 %v1336, %v1335
  %v1535 = vpack.c.b16 %v1338, %v1337
  %v1536 = vpack.c.b16 %v1340, %v1339
  %v1537 = vpack.c.b16 %v1342, %v1341
  %v1538 = vpack.c.b16 %v1344, %v1343
  %v1539 = vpack.c.b16 %v1346, %v1345
  %v1540 = vpack.c.b16 %v1348, %v1347
  %v1541 = vpack.c.b16 %v1350, %v1349
  %v1542 = vpack.c.b16 %v1352, %v1351
  %v1543 = vpack.c.b16 %v1354, %v1353
  %v1544 = vpack.c.b16 %v1356, %v1355
  %v1545 = vpack.c.b16 %v1358, %v1357
  %v1546 = vpack.c.b16 %v1360, %v1359
  %v1547 = vpack.c.b16 %v1362, %v1361
  %v1548 = vpack.c.b16 %v1364, %v1363
  %v1549 = vpack.c.b16 %v1366, %v1365
  %v1550 = vpack.c.b16 %v1368, %v1367
  %v1551 = vpack.c.b16 %v1370, %v1369
  %v1552 = vpack.c.b16 %v1372, %v1371
  %v1553 = vpack.c.b16 %v1374, %v1373
  %v1554 = vpack.c.b16 %v1376, %v1375
  %v1555 = vpack.c.b16 %v1378, %v1377
  %v1556 = vpack.c.b16 %v1380, %v1379
  %v1557 = vpack.c.b16 %v1382, %v1381
  %v1558 = vpack.c.b16 %v1384, %v1383
  %v1559 = vpack.c.b16 %v1386, %v1385
  %v1560 = vpack.c.b16 %v1388, %v1387
  %v1561 = vpack.c.b16 %v1390, %v1389
  %v1562 = vpack.c.b16 %v1392, %v1391
  %v1563 = vpack.c.b16 %v1394, %v1393
  %v1564 = vpack.c.b16 %v1396, %v1395
  %v1565 = vpack.c.b16 %v1398, %v1397
  %v1566 = vpack.c.b16 %v1400, %v1399
  %v1567 = vpack.c.b16 %v1402, %v1401
  %v1568 = vpack.c.b16 %v1404, %v1403
  %v1569 = vpack.c.b16 %v1406, %v1405
  %v1570 = vpack.c.b16 %v1408, %v1407
  %v1571 = vpack.c.b16 %v1410, %v1409
  %v1572 = vpack.c.b16 %v1412, %v1411
  %v1573 = vpack.c.b16 %v1414, %v1413
  %v1574 = vpack.c.b16 %v1416, %v1415
  %v1575 = vpack.c.b16 %v1418, %v1417
  %v1576 = vpack.c.b16 %v1420, %v1419
  %v1577 = vpack.c.b16 %v1422, %v1421
  %v1578 = vpack.c.b16 %v1424, %v1423
  %v1579 = vpack.c.b16 %v1426, %v1425
  %v1580 = vpack.c.b16 %v1428, %v1427
  %v1581 = vpack.c.b16 %v1430, %v1429
  %v1582 = vpack.c.b16 %v1432, %v1431
  %v1583 = vpack.c.b16 %v1434, %v1433
  %v1584 = vpack.c.b16 %v1436, %v1435
  %v1585 = vpack.c.b16 %v1438, %v1437
  %v1586 = vpack.c.b16 %v1440, %v1439
  %v1587 = vpack.c.b16 %v1442, %v1441
  %v1588 = vpack.c.b16 %v1444, %v1443
  %v1589 = vpack.c.b16 %v1446, %v1445
  %v1590 = vpack.c.b16 %v1448, %v1447
  %v1591 = vpack.c.b16 %v1450, %v1449
  %v1592 = vpack.c.b16 %v1452, %v1451
  %v1593 = vpack.c.b16 %v1454, %v1453
  %v1594 = vpack.c.b16 %v1456, %v1455
  %v1595 = vpack.c.b16 %v1458, %v1457
  %v1596 = vpack.c.b16 %v1460, %v1459
  %v1597 = vpack.c.b16 %v1462, %v1461
  %v1598 = vpack.c.b16 %v1464, %v1463
  %v1599 = vpack.c.b16 %v1466, %v1465
  %v1600 = vpack.c.b16 %v1468, %v1467
  %v1601 = vpack.c.b16 %v1470, %v1469
  %v1602 = vpack.c.b16 %v1472, %v1471
  %v1603 = vpack.c.b16 %v1474, %v1473
  %v1604 = vpack.c.b16 %v1476, %v1475
  %1733 = vmatprep.subr.bf16.mxu0 0
  %1734 = vmatpush1.bf16.msra.mxu0 %v1477
  %1735 = vmatprep.subr.bf16.mxu0 0
  %1736 = vmatpush1.bf16.msra.mxu0 %v1478
  %1737 = vmatprep.subr.bf16.mxu0 0
  %1738 = vmatpush1.bf16.msra.mxu0 %v1479
  %1739 = vmatprep.subr.bf16.mxu0 0
  %1740 = vmatpush1.bf16.msra.mxu0 %v1480
  %1741 = vmatprep.subr.bf16.mxu0 0
  %1742 = vmatpush1.bf16.msra.mxu0 %v1481
  %1743 = vmatprep.subr.bf16.mxu0 0
  %1744 = vmatpush1.bf16.msra.mxu0 %v1482
  %1745 = vmatprep.subr.bf16.mxu0 0
  %1746 = vmatpush1.bf16.msra.mxu0 %v1483
  %1747 = vmatprep.subr.bf16.mxu0 0
  %1748 = vmatpush1.bf16.msra.mxu0 %v1484
  %1749 = vmatprep.subr.bf16.mxu0 0
  %1750 = vmatpush1.bf16.msra.mxu0 %v1485
  %1751 = vmatprep.subr.bf16.mxu0 0
  %1752 = vmatpush1.bf16.msra.mxu0 %v1486
  %1753 = vmatprep.subr.bf16.mxu0 0
  %1754 = vmatpush1.bf16.msra.mxu0 %v1487
  %1755 = vmatprep.subr.bf16.mxu0 0
  %1756 = vmatpush1.bf16.msra.mxu0 %v1488
  %1757 = vmatprep.subr.bf16.mxu0 0
  %1758 = vmatpush1.bf16.msra.mxu0 %v1489
  %1759 = vmatprep.subr.bf16.mxu0 0
  %1760 = vmatpush1.bf16.msra.mxu0 %v1490
  %1761 = vmatprep.subr.bf16.mxu0 0
  %1762 = vmatpush1.bf16.msra.mxu0 %v1491
  %1763 = vmatprep.subr.bf16.mxu0 0
  %1764 = vmatpush1.bf16.msra.mxu0 %v1492
  %1765 = vmatprep.mubr.bf16.mxu0 %v687
  %1766 = vmatmul.mubr.bf16.gmra.mrb[0].mxu0 %v686
  %v1767 = vpop.f32.mrb[0].mxu0
  %v1768 = vadd.f32 %v963, %v1767
  %v1769 = vpop.f32.mrb[0].mxu0
  %v1770 = vpop.f32.mrb[0].mxu0
  %v1771 = vadd.f32 %v963, %v1770
  %v1772 = vpop.f32.mrb[0].mxu0
  %1773 = vdwg.mxu0
  %1774 = vmatprep.subr.bf16.mxu0 0
  %1775 = vmatpush1.bf16.msra.mxu0 %v1493
  %1776 = vmatprep.subr.bf16.mxu0 0
  %1777 = vmatpush1.bf16.msra.mxu0 %v1494
  %1778 = vmatprep.subr.bf16.mxu0 0
  %1779 = vmatpush1.bf16.msra.mxu0 %v1495
  %1780 = vmatprep.subr.bf16.mxu0 0
  %1781 = vmatpush1.bf16.msra.mxu0 %v1496
  %1782 = vmatprep.subr.bf16.mxu0 0
  %1783 = vmatpush1.bf16.msra.mxu0 %v1497
  %1784 = vmatprep.subr.bf16.mxu0 0
  %1785 = vmatpush1.bf16.msra.mxu0 %v1498
  %1786 = vmatprep.subr.bf16.mxu0 0
  %1787 = vmatpush1.bf16.msra.mxu0 %v1499
  %1788 = vmatprep.subr.bf16.mxu0 0
  %1789 = vmatpush1.bf16.msra.mxu0 %v1500
  %1790 = vmatprep.subr.bf16.mxu0 0
  %1791 = vmatpush1.bf16.msra.mxu0 %v1501
  %1792 = vmatprep.subr.bf16.mxu0 0
  %1793 = vmatpush1.bf16.msra.mxu0 %v1502
  %1794 = vmatprep.subr.bf16.mxu0 0
  %1795 = vmatpush1.bf16.msra.mxu0 %v1503
  %1796 = vmatprep.subr.bf16.mxu0 0
  %1797 = vmatpush1.bf16.msra.mxu0 %v1504
  %1798 = vmatprep.subr.bf16.mxu0 0
  %1799 = vmatpush1.bf16.msra.mxu0 %v1505
  %1800 = vmatprep.subr.bf16.mxu0 0
  %1801 = vmatpush1.bf16.msra.mxu0 %v1506
  %1802 = vmatprep.subr.bf16.mxu0 0
  %1803 = vmatpush1.bf16.msra.mxu0 %v1507
  %1804 = vmatprep.subr.bf16.mxu0 0
  %1805 = vmatpush1.bf16.msra.mxu0 %v1508
  %1806 = vmatprep.mubr.bf16.mxu0 %v689
  %1807 = vmatmul.mubr.bf16.gmra.mrb[0].mxu0 %v688
  %v1808 = vpop.f32.mrb[0].mxu0
  %v1809 = vadd.f32 %v1768, %v1808
  %v1810 = vpop.f32.mrb[0].mxu0
  %v1811 = vpop.f32.mrb[0].mxu0
  %v1812 = vadd.f32 %v1771, %v1811
  %v1813 = vpop.f32.mrb[0].mxu0
  %1814 = vdwg.mxu0
  %1815 = vmatprep.subr.bf16.mxu0 0
  %1816 = vmatpush1.bf16.msra.mxu0 %v1509
  %1817 = vmatprep.subr.bf16.mxu0 0
  %1818 = vmatpush1.bf16.msra.mxu0 %v1510
  %1819 = vmatprep.subr.bf16.mxu0 0
  %1820 = vmatpush1.bf16.msra.mxu0 %v1511
  %1821 = vmatprep.subr.bf16.mxu0 0
  %1822 = vmatpush1.bf16.msra.mxu0 %v1512
  %1823 = vmatprep.subr.bf16.mxu0 0
  %1824 = vmatpush1.bf16.msra.mxu0 %v1513
  %1825 = vmatprep.subr.bf16.mxu0 0
  %1826 = vmatpush1.bf16.msra.mxu0 %v1514
  %1827 = vmatprep.subr.bf16.mxu0 0
  %1828 = vmatpush1.bf16.msra.mxu0 %v1515
  %1829 = vmatprep.subr.bf16.mxu0 0
  %1830 = vmatpush1.bf16.msra.mxu0 %v1516
  %1831 = vmatprep.subr.bf16.mxu0 0
  %1832 = vmatpush1.bf16.msra.mxu0 %v1517
  %1833 = vmatprep.subr.bf16.mxu0 0
  %1834 = vmatpush1.bf16.msra.mxu0 %v1518
  %1835 = vmatprep.subr.bf16.mxu0 0
  %1836 = vmatpush1.bf16.msra.mxu0 %v1519
  %1837 = vmatprep.subr.bf16.mxu0 0
  %1838 = vmatpush1.bf16.msra.mxu0 %v1520
  %1839 = vmatprep.subr.bf16.mxu0 0
  %1840 = vmatpush1.bf16.msra.mxu0 %v1521
  %1841 = vmatprep.subr.bf16.mxu0 0
  %1842 = vmatpush1.bf16.msra.mxu0 %v1522
  %1843 = vmatprep.subr.bf16.mxu0 0
  %1844 = vmatpush1.bf16.msra.mxu0 %v1523
  %1845 = vmatprep.subr.bf16.mxu0 0
  %1846 = vmatpush1.bf16.msra.mxu0 %v1524
  %1847 = vmatprep.mubr.bf16.mxu0 %v691
  %1848 = vmatmul.mubr.bf16.gmra.mrb[0].mxu0 %v690
  %v1849 = vpop.f32.mrb[0].mxu0
  %v1850 = vadd.f32 %v1809, %v1849
  %v1851 = vpop.f32.mrb[0].mxu0
  %v1852 = vpop.f32.mrb[0].mxu0
  %v1853 = vadd.f32 %v1812, %v1852
  %v1854 = vpop.f32.mrb[0].mxu0
  %1855 = vdwg.mxu0
  %1856 = vmatprep.subr.bf16.mxu0 0
  %1857 = vmatpush1.bf16.msra.mxu0 %v1525
  %1858 = vmatprep.subr.bf16.mxu0 0
  %1859 = vmatpush1.bf16.msra.mxu0 %v1526
  %1860 = vmatprep.subr.bf16.mxu0 0
  %1861 = vmatpush1.bf16.msra.mxu0 %v1527
  %1862 = vmatprep.subr.bf16.mxu0 0
  %1863 = vmatpush1.bf16.msra.mxu0 %v1528
  %1864 = vmatprep.subr.bf16.mxu0 0
  %1865 = vmatpush1.bf16.msra.mxu0 %v1529
  %1866 = vmatprep.subr.bf16.mxu0 0
  %1867 = vmatpush1.bf16.msra.mxu0 %v1530
  %1868 = vmatprep.subr.bf16.mxu0 0
  %1869 = vmatpush1.bf16.msra.mxu0 %v1531
  %1870 = vmatprep.subr.bf16.mxu0 0
  %1871 = vmatpush1.bf16.msra.mxu0 %v1532
  %1872 = vmatprep.subr.bf16.mxu0 0
  %1873 = vmatpush1.bf16.msra.mxu0 %v1533
  %1874 = vmatprep.subr.bf16.mxu0 0
  %1875 = vmatpush1.bf16.msra.mxu0 %v1534
  %1876 = vmatprep.subr.bf16.mxu0 0
  %1877 = vmatpush1.bf16.msra.mxu0 %v1535
  %1878 = vmatprep.subr.bf16.mxu0 0
  %1879 = vmatpush1.bf16.msra.mxu0 %v1536
  %1880 = vmatprep.subr.bf16.mxu0 0
  %1881 = vmatpush1.bf16.msra.mxu0 %v1537
  %1882 = vmatprep.subr.bf16.mxu0 0
  %1883 = vmatpush1.bf16.msra.mxu0 %v1538
  %1884 = vmatprep.subr.bf16.mxu0 0
  %1885 = vmatpush1.bf16.msra.mxu0 %v1539
  %1886 = vmatprep.subr.bf16.mxu0 0
  %1887 = vmatpush1.bf16.msra.mxu0 %v1540
  %1888 = vmatprep.mubr.bf16.mxu0 %v693
  %1889 = vmatmul.mubr.bf16.gmra.mrb[0].mxu0 %v692
  %v1890 = vpop.f32.mrb[0].mxu0
  %v1891 = vadd.f32 %v1850, %v1890
  %v1892 = vpop.f32.mrb[0].mxu0
  %v1893 = vpop.f32.mrb[0].mxu0
  %v1894 = vadd.f32 %v1853, %v1893
  %v1895 = vpop.f32.mrb[0].mxu0
  %1896 = vdwg.mxu0
  %1897 = vmatprep.subr.bf16.mxu0 0
  %1898 = vmatpush1.bf16.msra.mxu0 %v1541
  %1899 = vmatprep.subr.bf16.mxu0 0
  %1900 = vmatpush1.bf16.msra.mxu0 %v1542
  %1901 = vmatprep.subr.bf16.mxu0 0
  %1902 = vmatpush1.bf16.msra.mxu0 %v1543
  %1903 = vmatprep.subr.bf16.mxu0 0
  %1904 = vmatpush1.bf16.msra.mxu0 %v1544
  %1905 = vmatprep.subr.bf16.mxu0 0
  %1906 = vmatpush1.bf16.msra.mxu0 %v1545
  %1907 = vmatprep.subr.bf16.mxu0 0
  %1908 = vmatpush1.bf16.msra.mxu0 %v1546
  %1909 = vmatprep.subr.bf16.mxu0 0
  %1910 = vmatpush1.bf16.msra.mxu0 %v1547
  %1911 = vmatprep.subr.bf16.mxu0 0
  %1912 = vmatpush1.bf16.msra.mxu0 %v1548
  %1913 = vmatprep.subr.bf16.mxu0 0
  %1914 = vmatpush1.bf16.msra.mxu0 %v1549
  %1915 = vmatprep.subr.bf16.mxu0 0
  %1916 = vmatpush1.bf16.msra.mxu0 %v1550
  %1917 = vmatprep.subr.bf16.mxu0 0
  %1918 = vmatpush1.bf16.msra.mxu0 %v1551
  %1919 = vmatprep.subr.bf16.mxu0 0
  %1920 = vmatpush1.bf16.msra.mxu0 %v1552
  %1921 = vmatprep.subr.bf16.mxu0 0
  %1922 = vmatpush1.bf16.msra.mxu0 %v1553
  %1923 = vmatprep.subr.bf16.mxu0 0
  %1924 = vmatpush1.bf16.msra.mxu0 %v1554
  %1925 = vmatprep.subr.bf16.mxu0 0
  %1926 = vmatpush1.bf16.msra.mxu0 %v1555
  %1927 = vmatprep.subr.bf16.mxu0 0
  %1928 = vmatpush1.bf16.msra.mxu0 %v1556
  %1929 = vmatprep.mubr.bf16.mxu0 %v695
  %1930 = vmatmul.mubr.bf16.gmra.mrb[0].mxu0 %v694
  %v1931 = vpop.f32.mrb[0].mxu0
  %v1932 = vadd.f32 %v1891, %v1931
  %v1933 = vpop.f32.mrb[0].mxu0
  %v1934 = vpop.f32.mrb[0].mxu0
  %v1935 = vadd.f32 %v1894, %v1934
  %v1936 = vpop.f32.mrb[0].mxu0
  %1937 = vdwg.mxu0
  %1938 = vmatprep.subr.bf16.mxu0 0
  %1939 = vmatpush1.bf16.msra.mxu0 %v1557
  %1940 = vmatprep.subr.bf16.mxu0 0
  %1941 = vmatpush1.bf16.msra.mxu0 %v1558
  %1942 = vmatprep.subr.bf16.mxu0 0
  %1943 = vmatpush1.bf16.msra.mxu0 %v1559
  %1944 = vmatprep.subr.bf16.mxu0 0
  %1945 = vmatpush1.bf16.msra.mxu0 %v1560
  %1946 = vmatprep.subr.bf16.mxu0 0
  %1947 = vmatpush1.bf16.msra.mxu0 %v1561
  %1948 = vmatprep.subr.bf16.mxu0 0
  %1949 = vmatpush1.bf16.msra.mxu0 %v1562
  %1950 = vmatprep.subr.bf16.mxu0 0
  %1951 = vmatpush1.bf16.msra.mxu0 %v1563
  %1952 = vmatprep.subr.bf16.mxu0 0
  %1953 = vmatpush1.bf16.msra.mxu0 %v1564
  %1954 = vmatprep.subr.bf16.mxu0 0
  %1955 = vmatpush1.bf16.msra.mxu0 %v1565
  %1956 = vmatprep.subr.bf16.mxu0 0
  %1957 = vmatpush1.bf16.msra.mxu0 %v1566
  %1958 = vmatprep.subr.bf16.mxu0 0
  %1959 = vmatpush1.bf16.msra.mxu0 %v1567
  %1960 = vmatprep.subr.bf16.mxu0 0
  %1961 = vmatpush1.bf16.msra.mxu0 %v1568
  %1962 = vmatprep.subr.bf16.mxu0 0
  %1963 = vmatpush1.bf16.msra.mxu0 %v1569
  %1964 = vmatprep.subr.bf16.mxu0 0
  %1965 = vmatpush1.bf16.msra.mxu0 %v1570
  %1966 = vmatprep.subr.bf16.mxu0 0
  %1967 = vmatpush1.bf16.msra.mxu0 %v1571
  %1968 = vmatprep.subr.bf16.mxu0 0
  %1969 = vmatpush1.bf16.msra.mxu0 %v1572
  %1970 = vmatprep.mubr.bf16.mxu0 %v697
  %1971 = vmatmul.mubr.bf16.gmra.mrb[0].mxu0 %v696
  %v1972 = vpop.f32.mrb[0].mxu0
  %v1973 = vadd.f32 %v1932, %v1972
  %v1974 = vpop.f32.mrb[0].mxu0
  %v1975 = vpop.f32.mrb[0].mxu0
  %v1976 = vadd.f32 %v1935, %v1975
  %v1977 = vpop.f32.mrb[0].mxu0
  %1978 = vdwg.mxu0
  %1979 = vmatprep.subr.bf16.mxu0 0
  %1980 = vmatpush1.bf16.msra.mxu0 %v1573
  %1981 = vmatprep.subr.bf16.mxu0 0
  %1982 = vmatpush1.bf16.msra.mxu0 %v1574
  %1983 = vmatprep.subr.bf16.mxu0 0
  %1984 = vmatpush1.bf16.msra.mxu0 %v1575
  %1985 = vmatprep.subr.bf16.mxu0 0
  %1986 = vmatpush1.bf16.msra.mxu0 %v1576
  %1987 = vmatprep.subr.bf16.mxu0 0
  %1988 = vmatpush1.bf16.msra.mxu0 %v1577
  %1989 = vmatprep.subr.bf16.mxu0 0
  %1990 = vmatpush1.bf16.msra.mxu0 %v1578
  %1991 = vmatprep.subr.bf16.mxu0 0
  %1992 = vmatpush1.bf16.msra.mxu0 %v1579
  %1993 = vmatprep.subr.bf16.mxu0 0
  %1994 = vmatpush1.bf16.msra.mxu0 %v1580
  %1995 = vmatprep.subr.bf16.mxu0 0
  %1996 = vmatpush1.bf16.msra.mxu0 %v1581
  %1997 = vmatprep.subr.bf16.mxu0 0
  %1998 = vmatpush1.bf16.msra.mxu0 %v1582
  %1999 = vmatprep.subr.bf16.mxu0 0
  %2000 = vmatpush1.bf16.msra.mxu0 %v1583
  %2001 = vmatprep.subr.bf16.mxu0 0
  %2002 = vmatpush1.bf16.msra.mxu0 %v1584
  %2003 = vmatprep.subr.bf16.mxu0 0
  %2004 = vmatpush1.bf16.msra.mxu0 %v1585
  %2005 = vmatprep.subr.bf16.mxu0 0
  %2006 = vmatpush1.bf16.msra.mxu0 %v1586
  %2007 = vmatprep.subr.bf16.mxu0 0
  %2008 = vmatpush1.bf16.msra.mxu0 %v1587
  %2009 = vmatprep.subr.bf16.mxu0 0
  %2010 = vmatpush1.bf16.msra.mxu0 %v1588
  %2011 = vmatprep.mubr.bf16.mxu0 %v699
  %2012 = vmatmul.mubr.bf16.gmra.mrb[0].mxu0 %v698
  %v2013 = vpop.f32.mrb[0].mxu0
  %v2014 = vadd.f32 %v1973, %v2013
  %v2015 = vpop.f32.mrb[0].mxu0
  %v2016 = vpop.f32.mrb[0].mxu0
  %v2017 = vadd.f32 %v1976, %v2016
  %v2018 = vpop.f32.mrb[0].mxu0
  %2019 = vdwg.mxu0
  %2020 = vmatprep.subr.bf16.mxu0 0
  %2021 = vmatpush1.bf16.msra.mxu0 %v1589
  %2022 = vmatprep.subr.bf16.mxu0 0
  %2023 = vmatpush1.bf16.msra.mxu0 %v1590
  %2024 = vmatprep.subr.bf16.mxu0 0
  %2025 = vmatpush1.bf16.msra.mxu0 %v1591
  %2026 = vmatprep.subr.bf16.mxu0 0
  %2027 = vmatpush1.bf16.msra.mxu0 %v1592
  %2028 = vmatprep.subr.bf16.mxu0 0
  %2029 = vmatpush1.bf16.msra.mxu0 %v1593
  %2030 = vmatprep.subr.bf16.mxu0 0
  %2031 = vmatpush1.bf16.msra.mxu0 %v1594
  %2032 = vmatprep.subr.bf16.mxu0 0
  %2033 = vmatpush1.bf16.msra.mxu0 %v1595
  %2034 = vmatprep.subr.bf16.mxu0 0
  %2035 = vmatpush1.bf16.msra.mxu0 %v1596
  %2036 = vmatprep.subr.bf16.mxu0 0
  %2037 = vmatpush1.bf16.msra.mxu0 %v1597
  %2038 = vmatprep.subr.bf16.mxu0 0
  %2039 = vmatpush1.bf16.msra.mxu0 %v1598
  %2040 = vmatprep.subr.bf16.mxu0 0
  %2041 = vmatpush1.bf16.msra.mxu0 %v1599
  %2042 = vmatprep.subr.bf16.mxu0 0
  %2043 = vmatpush1.bf16.msra.mxu0 %v1600
  %2044 = vmatprep.subr.bf16.mxu0 0
  %2045 = vmatpush1.bf16.msra.mxu0 %v1601
  %2046 = vmatprep.subr.bf16.mxu0 0
  %2047 = vmatpush1.bf16.msra.mxu0 %v1602
  %2048 = vmatprep.subr.bf16.mxu0 0
  %2049 = vmatpush1.bf16.msra.mxu0 %v1603
  %2050 = vmatprep.subr.bf16.mxu0 0
  %2051 = vmatpush1.bf16.msra.mxu0 %v1604
  %2052 = vmatprep.mubr.bf16.mxu0 %v701
  %2053 = vmatmul.mubr.bf16.gmra.mrb[0].mxu0 %v700
  %v2054 = vpop.f32.mrb[0].mxu0
  %v2055 = vadd.f32 %v2014, %v2054
  %v2056 = vpop.f32.mrb[0].mxu0
  %v2057 = vpop.f32.mrb[0].mxu0
  %v2058 = vadd.f32 %v2017, %v2057
  %v2059 = vpop.f32.mrb[0].mxu0
  %2060 = vdwg.mxu0
  %v2061 = vadd.f32 %v2055, %v27
  %v2062 = vadd.f32 %v2058, %v28
  %v2063 = vld [vmem:[%s5] sm:$0x1]
  %v2064 = vld [vmem:[%s6] sm:$0x1]
  %v2065 = vsel %vm306, %v2061, 0.0
  %2066 = vadd.xlane.f32.xlu0 %v2065
  %v2067 = vpop.xlane.xlu0 %2066
  %v2068 = vsel %vm306, %v2062, 0.0
  %2069 = vadd.xlane.f32.xlu0 %v2068
  %v2070 = vpop.xlane.xlu0 %2069
  %v2071 = vrcp.pop 32.0
  %v2072 = vmul.f32 %v2067, %v2071
  %v2073 = vmul.f32 %v2070, %v2071
  %v2074 = vsub.f32 %v2061, %v2072
  %v2075 = vsub.f32 %v2062, %v2073
  %v2076 = vmul.f32 %v2074, %v2074
  %v2077 = vmul.f32 %v2075, %v2075
  %v2078 = vsel %vm306, %v2076, 0.0
  %2079 = vadd.xlane.f32.xlu0 %v2078
  %v2080 = vpop.xlane.xlu0 %2079
  %v2081 = vsel %vm306, %v2077, 0.0
  %2082 = vadd.xlane.f32.xlu0 %v2081
  %v2083 = vpop.xlane.xlu0 %2082
  %v2084 = vmul.f32 %v2080, %v2071
  %v2085 = vmul.f32 %v2083, %v2071
  %v2086 = vadd.f32 %v2084, 1e-05
  %v2087 = vadd.f32 %v2085, 1e-05
  %v2088 = vrsqrt.pop %v2086
  %v2089 = vrsqrt.pop %v2087
  %v2090 = vmul.f32 %v2074, %v2088
  %v2091 = vmul.f32 %v2075, %v2089
  %v2093 = vlaneseq
  %v2094 = vshrl.u32 %v2093, 7
  %v2095 = vsub.s32 0, %v2094
  %v2096 = vrot.slane %v2063, %v2095
  %v2098 = vmul.f32 %v2090, %v2096
  %v2099 = vmul.f32 %v2091, %v2096
  %v2101 = vlaneseq
  %v2102 = vshrl.u32 %v2101, 7
  %v2103 = vsub.s32 0, %v2102
  %v2104 = vrot.slane %v2064, %v2103
  %v2106 = vadd.f32 %v2098, %v2104
  %v2107 = vadd.f32 %v2099, %v2104
  %2108 = vst.msk [vmem:[%s7] sm:$0xff] %vm306, %v2106
  %2109 = vst.msk [vmem:[%s7 + $0x8] sm:$0xff] %vm306, %v2107
  // Predicated region
  $region30: #{cltsbr_forward.34} parent=0 // pred_check
    _
  $region31: #{cltsbr_forward.34} parent=0 // pred_check_branch
    %2111 = sbr.rel (0) target = $region33
  $region32: #{cltsbr_forward.34} parent=0 // pred_region
    _
  $region33: #{cltsbr_forward.34} parent=0 // pred_fallthru
    _
  // Predicated region
  $region34: #{cltsbr_forward.34} parent=0 // pred_check
    _
  $region35: #{cltsbr_forward.34} parent=0 // pred_check_branch
    %2113 = sbr.rel (0) target = $region37
  $region36: #{cltsbr_forward.34} parent=0 // pred_region
    _
  $region37: #{cltsbr_forward.34} parent=0 // pred_fallthru
    _

</llo_original>
